<compile_context>
chip_gen: v6e
topology: v6e:2x2x1
jax: 0.10.0
libtpu: 0.0.40
codegen_flags: <defaults>
</compile_context>

<pallas_src>
import functools

import jax
import jax.numpy as jnp
import numpy as np
from jax.experimental import pallas as pl
from jax.experimental.pallas import tpu as pltpu


def _round_up(x, m):
    return (x + m - 1) // m * m


def _self_attention_kernel(x_ref, wfgh_ref, bfgh_ref, wv_ref, bv_ref, lam_ref,
                           o_ref, *, NB, TH, W, Ckp, compute_dtype):
    """One (NB, TH*W, C) slab per grid step.

    f/g/h 1x1 convs are one fused MXU matmul against a packed (C, 3*Ckp)
    weight whose per-conv slots are zero-padded to 128-aligned widths, so the
    channel slices below are lane-tile aligned and the padding is inert.
    """
    C = x_ref.shape[-1]
    R = NB * TH                       # attention rows (image-rows) in this slab
    M = R * W                         # pixels in this slab

    # Merge leading dims for the matmuls (layout-free when W % 8 == 0).
    x2 = x_ref[...].reshape(M, C)                                     # f32 (M, C)
    xd = x2.astype(compute_dtype)

    # Fused f|g|h projection: one MXU push, f32 accumulation.
    fgh = jnp.dot(xd, wfgh_ref[...].astype(compute_dtype),
                  preferred_element_type=jnp.float32) + bfgh_ref[...]  # (M, 3*Ckp)
    fgh = fgh.reshape(R, W, 3 * Ckp)           # split leading dim only
    f = fgh[..., 0 * Ckp:1 * Ckp]              # 128-aligned lane slices
    g = fgh[..., 1 * Ckp:2 * Ckp]
    h = fgh[..., 2 * Ckp:3 * Ckp]

    # atten[r, w] = sum_c f*g   (zero-padded channels contribute exactly 0).
    att = jnp.sum(f * g, axis=-1)                                     # (R, W)

    # Softmax over the width axis (lane axis) == torch Softmax(dim=-1).
    m = jnp.max(att, axis=-1, keepdims=True)
    e = jnp.exp(att - m)
    s = jnp.sum(e, axis=-1, keepdims=True)
    inv = pl.reciprocal(s, approx=True)        # EUP slot
    inv = inv * (2.0 - s * inv)                # one Newton step -> ~f32-exact rows
    att_n = e * inv                                                   # (R, W)

    # theta = h * atten (broadcast over channels), then 1x1 conv back to C.
    theta = (h * att_n[..., None]).reshape(M, Ckp)   # merge leading dims
    tv = jnp.dot(theta.astype(compute_dtype), wv_ref[...].astype(compute_dtype),
                 preferred_element_type=jnp.float32) + bv_ref[...]    # (M, C)

    lam = lam_ref[0]                                                  # SMEM scalar
    # Single fused residual store (no extra intermediate VMEM stores — v5e has
    # only one vector-store slot).
    o_ref[...] = (x2 + lam * tv).reshape(NB, TH * W, C).astype(o_ref.dtype)


def _choose_tiles(N, H, W, C, itemsize, block_budget_bytes):
    """Pick (NB, TH) with N % NB == 0, H % TH == 0.

    Maximizes the per-step slab under `block_budget_bytes` (input + output
    block).  If the *whole* problem is tiny (< 1 MiB of traffic) it is folded
    into a single grid step (per-step overhead dominates any core-sharding
    gain); otherwise at least 2 grid points are kept along the parallel axes
    so v7x's two TensorCores both get work.
    """
    def divisors(x):
        return [d for d in range(1, x + 1) if x % d == 0]

    def blk_bytes(nb, th):
        return 2 * nb * th * W * C * itemsize     # input block + output block

    cands = [(nb, th) for nb in divisors(N) for th in divisors(H)
             if blk_bytes(nb, th) <= block_budget_bytes]
    if not cands:
        # TODO(synk): also tile W (and/or C) for shapes where even a single
        # (1, W, C) row-slab exceeds the per-block budget.
        return 1, 1

    if blk_bytes(N, H) > (1 << 20):
        multi = [c for c in cands if (N // c[0]) * (H // c[1]) >= 2]
        if multi:
            cands = multi

    # Biggest slab; tie-break toward taller H-slabs (contiguous DMA in the
    # (N, H*W, C) layout), then toward batching images.
    nb, th = max(cands, key=lambda c: (c[0] * c[1], c[1], c[0]))
    return int(nb), int(th)


def self_attention_pallas(x_nhwc, params, *, compute_dtype=jnp.float32,
                          block_budget_bytes=4 << 20):
    """Optimized path: NHWC in, NHWC out (no layout transposes around the kernel).

    x_nhwc : (N, H, W, C).
    params : (wfgh (C, 3*Ckp), bfgh (1, 3*Ckp), wv (Ckp, C), bv (1, C), lam (1,))
             with each Ck-wide f/g/h slot zero-padded to Ckp (multiple of 128).
    compute_dtype : MXU operand dtype.  Use jnp.bfloat16 on v6e/v7x production
             deployments (accumulation & elementwise math stay f32).
    block_budget_bytes : per-step (input+output block) budget.  Default 4 MiB
             keeps the pipeline well inside v7x's 64 MiB VMEM; raise to
             ~16-32 MiB on v6e/v5e (128 MiB physical) for bigger slabs.
    """
    wfgh, bfgh, wv, bv, lam = params
    N, H, W, C = x_nhwc.shape
    Ckp = wv.shape[0]
    assert wfgh.shape == (C, 3 * Ckp) and Ckp % 128 == 0
    # TODO(synk): for W % 8 != 0 the in-kernel leading-dim reshapes become
    # VMEM relayout copies (correct but slower) — pad W in that case.
    HW = H * W

    itemsize = jnp.dtype(x_nhwc.dtype).itemsize
    NB, TH = _choose_tiles(N, H, W, C, itemsize, block_budget_bytes)
    THW = TH * W
    grid = (N // NB, H // TH)
    grid_steps = grid[0] * grid[1]

    # Contiguous (N,H,W,C) <-> (N,H*W,C) view — free, no transpose.
    x2 = x_nhwc.reshape(N, HW, C)

    kernel = functools.partial(_self_attention_kernel, NB=NB, TH=TH, W=W,
                               Ckp=Ckp, compute_dtype=compute_dtype)

    # Deeper input pipelining only pays once there are enough steps to hide
    # slab-boundary DMA latency (memory-bound production shapes).
    x_spec_kwargs = {"pipeline_mode": pl.Buffered(3)} if grid_steps >= 4 else {}
    x_spec = pl.BlockSpec((NB, THW, C), lambda n, h: (n, h, 0), **x_spec_kwargs)

    # Advisory cost for XLA's scheduler around the custom call.
    w_bytes = sum(int(a.size) * jnp.dtype(a.dtype).itemsize
                  for a in (wfgh, bfgh, wv, bv))
    cost = pl.CostEstimate(
        flops=2 * N * HW * C * (3 * Ckp) + 2 * N * HW * Ckp * C,
        transcendentals=N * HW,
        bytes_accessed=2 * N * HW * C * itemsize + w_bytes)

    # Only raise the scoped-VMEM limit when the chosen tiles actually need it
    # (leave headroom; stays far below v7x's 64 MiB physical VMEM at default
    #  budget, and below 100 MiB even with v6e-sized budgets).
    in_blk = NB * THW * C * itemsize
    bufs_in = 3 if grid_steps >= 4 else 2
    need = bufs_in * in_blk + 2 * in_blk + 2 * w_bytes + (2 << 20)
    vmem_limit = None if need <= (24 << 20) else int(min(need + (8 << 20), 100 << 20))

    out = pl.pallas_call(
        kernel,
        out_shape=jax.ShapeDtypeStruct((N, HW, C), x_nhwc.dtype),
        grid_spec=pltpu.PrefetchScalarGridSpec(
            num_scalar_prefetch=0,
            grid=grid,                                                # (N//NB, H//TH)
            in_specs=[
                x_spec,                                               # x slab
                pl.BlockSpec((C, 3 * Ckp), lambda n, h: (0, 0)),      # packed f|g|h W
                pl.BlockSpec((1, 3 * Ckp), lambda n, h: (0, 0)),      # packed f|g|h b
                pl.BlockSpec((Ckp, C), lambda n, h: (0, 0)),          # v weight
                pl.BlockSpec((1, C), lambda n, h: (0, 0)),            # v bias
                pl.BlockSpec(memory_space=pltpu.MemorySpace.SMEM),    # lambda scalar
            ],
            out_specs=pl.BlockSpec((NB, THW, C), lambda n, h: (n, h, 0)),
        ),
        compiler_params=pltpu.CompilerParams(
            dimension_semantics=("parallel", "parallel"),
            vmem_limit_bytes=vmem_limit),
        cost_estimate=cost,
    )(x2, wfgh, bfgh, wv, bv, lam)

    return out.reshape(N, H, W, C)


def self_attention_ref_nchw(x_nchw, ref_params):
    """Pure-JAX reference: literal port of the PyTorch forward (NCHW layout)."""
    wf, wg, wh, wv, bf, bg, bh, bv, lam = ref_params

    def conv1x1(x, w_in_out, b):        # x (N,Cin,H,W), w (Cin,Cout), b (1,Cout)
        return jnp.einsum('nchw,ck->nkhw', x, w_in_out) + b[0][None, :, None, None]

    f = conv1x1(x_nchw, wf, bf)
    g = conv1x1(x_nchw, wg, bg)
    h = conv1x1(x_nchw, wh, bh)
    # torch.einsum('ncwh,ncwh->nwh') on an NCHW tensor: the labels are just
    # names — it sums over channels and keeps the two spatial dims in order;
    # Softmax(dim=-1) then normalizes over the last (width) axis.
    att = jnp.einsum('nchw,nchw->nhw', f, g)
    att = jax.nn.softmax(att, axis=-1)
    theta = h * att[:, None, :, :]
    tv = conv1x1(theta, wv, bv)
    return x_nchw + lam[0] * tv


def _spectral_normalize(w_out_in):
    # Exact spectral norm of the flattened (out, in) 1x1-conv kernel.
    # (PyTorch's spectral_norm estimates sigma via power iteration; here we
    #  apply the exact normalization once as deterministic parameter setup.)
    sigma = np.linalg.norm(np.asarray(w_out_in), ord=2)
    return np.asarray(w_out_in) / sigma


def _init_params(key, C, k=8):
    Ck = C // k
    Ckp = _round_up(Ck, 128)          # lane-tile-aligned slot width
    ks = jax.random.split(key, 8)
    wf_raw = jax.random.normal(ks[0], (Ck, C), jnp.float32) * 0.2   # (out, in)
    wg_raw = jax.random.normal(ks[1], (Ck, C), jnp.float32) * 0.2
    wh_raw = jax.random.normal(ks[2], (Ck, C), jnp.float32) * 0.2
    wv_raw = jax.random.normal(ks[3], (C, Ck), jnp.float32) * 0.2
    bf = jax.random.normal(ks[4], (1, Ck), jnp.float32) * 0.1
    bg = jax.random.normal(ks[5], (1, Ck), jnp.float32) * 0.1
    bh = jax.random.normal(ks[6], (1, Ck), jnp.float32) * 0.1
    bv = jax.random.normal(ks[7], (1, C), jnp.float32) * 0.1

    # Kernel consumes weights as (Cin, Cout): a 1x1 conv == pixel-row @ W.
    wf = jnp.asarray(_spectral_normalize(wf_raw)).T                 # (C, Ck)
    wg = jnp.asarray(_spectral_normalize(wg_raw)).T
    wh = jnp.asarray(_spectral_normalize(wh_raw)).T
    wv = jnp.asarray(_spectral_normalize(wv_raw)).T                 # (Ck, C)

    # Packed, lane-aligned f|g|h projection: each Ck slot zero-padded to Ckp so
    # the in-kernel slices are 128-aligned; zero weight columns, zero bias
    # entries and zero wv rows are exact no-ops numerically.
    pad_cols = lambda a: jnp.pad(a, ((0, 0), (0, Ckp - Ck)))
    wfgh = jnp.concatenate([pad_cols(wf), pad_cols(wg), pad_cols(wh)], axis=1)
    bfgh = jnp.concatenate([pad_cols(bf), pad_cols(bg), pad_cols(bh)], axis=1)
    wvp = jnp.pad(wv, ((0, Ckp - Ck), (0, 0)))                      # (Ckp, C)

    # PyTorch inits llambda = 0 (output == x); use a nonzero deterministic
    # value so the attention branch is actually exercised/validated.
    lam = jnp.full((1,), 0.5, jnp.float32)

    kernel_params = (wfgh, bfgh, wvp, bv, lam)
    ref_params = (wf, wg, wh, wv, bf, bg, bh, bv, lam)
    return kernel_params, ref_params


if __name__ == "__main__":
    N, C, H, W, k = 2, 32, 16, 16, 8
    key = jax.random.PRNGKey(0)
    kx, kp = jax.random.split(key)
    kernel_params, ref_params = _init_params(kp, C, k)

    # Optimized path keeps the model NHWC end-to-end (no transposes around the
    # kernel).  The NCHW<->NHWC transposes below exist ONLY to validate against
    # a literal port of the PyTorch (NCHW) forward.
    x_nhwc = jax.random.normal(kx, (N, H, W, C), jnp.float32)

    out = jax.block_until_ready(self_attention_pallas(x_nhwc, kernel_params))

    x_nchw = jnp.transpose(x_nhwc, (0, 3, 1, 2))
    ref = jnp.transpose(self_attention_ref_nchw(x_nchw, ref_params), (0, 2, 3, 1))
    ref = jax.block_until_ready(ref)
    np.testing.assert_allclose(np.asarray(out), np.asarray(ref),
                               rtol=2e-3, atol=2e-3)

    # bf16 MXU-operand path (production default on v6e/v7x); f32 accumulation
    # and elementwise math, so only operand-rounding error -> loose tolerance.
    out_bf16 = jax.block_until_ready(
        self_attention_pallas(x_nhwc, kernel_params, compute_dtype=jnp.bfloat16))
    np.testing.assert_allclose(np.asarray(out_bf16), np.asarray(ref),
                               rtol=5e-2, atol=5e-2)

    print("KERNEL_OK")
</pallas_src>

<mosaic_0001>
module attributes {stable_mosaic.version = 11 : i64} {
  func.func @_self_attention_kernel(%arg0: i32, %arg1: i32, %arg2: memref<2x256x32xf32, #tpu.memory_space<vmem>>, %arg3: memref<32x384xf32, #tpu.memory_space<vmem>>, %arg4: memref<1x384xf32, #tpu.memory_space<vmem>>, %arg5: memref<128x32xf32, #tpu.memory_space<vmem>>, %arg6: memref<1x32xf32, #tpu.memory_space<vmem>>, %arg7: memref<1xf32, #tpu.memory_space<smem>>, %arg8: memref<2x256x32xf32, #tpu.memory_space<vmem>>) attributes {dimension_semantics = [#tpu.dimension_semantics<parallel>, #tpu.dimension_semantics<parallel>], iteration_bounds = array<i64: 1, 1>, scalar_prefetch = 0 : i64, scratch_operands = 0 : i64, tpu.core_type = #tpu.core_type<tc>, window_params = [{transform_indices = @transform_0, window_bounds = array<i64: 2, 256, 32>}, {pipeline_mode = #tpu.pipeline_mode<synchronous>, transform_indices = @transform_1, window_bounds = array<i64: 32, 384>}, {pipeline_mode = #tpu.pipeline_mode<synchronous>, transform_indices = @transform_2, window_bounds = array<i64: 1, 384>}, {pipeline_mode = #tpu.pipeline_mode<synchronous>, transform_indices = @transform_3, window_bounds = array<i64: 128, 32>}, {pipeline_mode = #tpu.pipeline_mode<synchronous>, transform_indices = @transform_4, window_bounds = array<i64: 1, 32>}, {transform_indices = @transform_5, window_bounds = array<i64: 1>}, {transform_indices = @transform_6, window_bounds = array<i64: 2, 256, 32>}]} {
    %c0 = arith.constant 0 : index
    %c0_0 = arith.constant 0 : index
    %c0_1 = arith.constant 0 : index
    %0 = vector.load %arg2[%c0, %c0_0, %c0_1] : memref<2x256x32xf32, #tpu.memory_space<vmem>>, vector<2x256x32xf32>
    %1 = vector.shape_cast %0 : vector<2x256x32xf32> to vector<512x32xf32>
    %c0_2 = arith.constant 0 : index
    %c0_3 = arith.constant 0 : index
    %2 = vector.load %arg3[%c0_2, %c0_3] : memref<32x384xf32, #tpu.memory_space<vmem>>, vector<32x384xf32>
    %cst = arith.constant dense<0.000000e+00> : vector<512x384xf32>
    %3 = tpu.matmul %1, %2, %cst {dimension_numbers = #tpu.dot_dimension_numbers<[1], [0], [0], [1], [0, 0, 1, 1], [], []>} : vector<512x32xf32>, vector<32x384xf32>, vector<512x384xf32> -> vector<512x384xf32>
    %c0_4 = arith.constant 0 : index
    %c0_5 = arith.constant 0 : index
    %4 = vector.load %arg4[%c0_4, %c0_5] : memref<1x384xf32, #tpu.memory_space<vmem>>, vector<1x384xf32>
    %5 = vector.broadcast %4 : vector<1x384xf32> to vector<512x384xf32>
    %6 = arith.addf %3, %5 : vector<512x384xf32>
    %7 = vector.shape_cast %6 : vector<512x384xf32> to vector<32x16x384xf32>
    %8 = vector.extract_strided_slice %7 {offsets = [0, 0, 0], sizes = [32, 16, 128], strides = [1, 1, 1]} : vector<32x16x384xf32> to vector<32x16x128xf32>
    %9 = vector.extract_strided_slice %7 {offsets = [0, 0, 128], sizes = [32, 16, 128], strides = [1, 1, 1]} : vector<32x16x384xf32> to vector<32x16x128xf32>
    %10 = vector.extract_strided_slice %7 {offsets = [0, 0, 256], sizes = [32, 16, 128], strides = [1, 1, 1]} : vector<32x16x384xf32> to vector<32x16x128xf32>
    %11 = arith.mulf %8, %9 : vector<32x16x128xf32>
    %cst_6 = arith.constant dense<0.000000e+00> : vector<32x16xf32>
    %12 = vector.multi_reduction <add>, %11, %cst_6 [2] : vector<32x16x128xf32> to vector<32x16xf32>
    %cst_7 = arith.constant dense<0xFF800000> : vector<32xf32>
    %13 = vector.multi_reduction <maximumf>, %12, %cst_7 [1] : vector<32x16xf32> to vector<32xf32>
    %14 = vector.shape_cast %13 : vector<32xf32> to vector<32x1xf32>
    %15 = vector.broadcast %14 : vector<32x1xf32> to vector<32x16xf32>
    %16 = arith.subf %12, %15 : vector<32x16xf32>
    %17 = math.exp %16 : vector<32x16xf32>
    %cst_8 = arith.constant dense<0.000000e+00> : vector<32xf32>
    %18 = vector.multi_reduction <add>, %17, %cst_8 [1] : vector<32x16xf32> to vector<32xf32>
    %19 = vector.shape_cast %18 : vector<32xf32> to vector<32x1xf32>
    %20 = tpu.reciprocal %19 {approx = true} : vector<32x1xf32> -> vector<32x1xf32>
    %21 = arith.mulf %19, %20 : vector<32x1xf32>
    %cst_9 = arith.constant 2.000000e+00 : f32
    %22 = vector.broadcast %cst_9 : f32 to vector<32x1xf32>
    %23 = arith.subf %22, %21 : vector<32x1xf32>
    %24 = arith.mulf %20, %23 : vector<32x1xf32>
    %25 = vector.broadcast %24 : vector<32x1xf32> to vector<32x16xf32>
    %26 = arith.mulf %17, %25 : vector<32x16xf32>
    %27 = vector.shape_cast %26 : vector<32x16xf32> to vector<32x16x1xf32>
    %28 = vector.broadcast %27 : vector<32x16x1xf32> to vector<32x16x128xf32>
    %29 = arith.mulf %10, %28 : vector<32x16x128xf32>
    %30 = vector.shape_cast %29 : vector<32x16x128xf32> to vector<512x128xf32>
    %c0_10 = arith.constant 0 : index
    %c0_11 = arith.constant 0 : index
    %31 = vector.load %arg5[%c0_10, %c0_11] : memref<128x32xf32, #tpu.memory_space<vmem>>, vector<128x32xf32>
    %cst_12 = arith.constant dense<0.000000e+00> : vector<512x32xf32>
    %32 = tpu.matmul %30, %31, %cst_12 {dimension_numbers = #tpu.dot_dimension_numbers<[1], [0], [0], [1], [0, 0, 1, 1], [], []>} : vector<512x128xf32>, vector<128x32xf32>, vector<512x32xf32> -> vector<512x32xf32>
    %c0_13 = arith.constant 0 : index
    %c0_14 = arith.constant 0 : index
    %33 = vector.load %arg6[%c0_13, %c0_14] : memref<1x32xf32, #tpu.memory_space<vmem>>, vector<1x32xf32>
    %34 = vector.broadcast %33 : vector<1x32xf32> to vector<512x32xf32>
    %35 = arith.addf %32, %34 : vector<512x32xf32>
    %c0_15 = arith.constant 0 : index
    %36 = memref.load %arg7[%c0_15] : memref<1xf32, #tpu.memory_space<smem>>
    %37 = vector.broadcast %36 : f32 to vector<512x32xf32>
    %38 = arith.mulf %37, %35 : vector<512x32xf32>
    %39 = arith.addf %1, %38 : vector<512x32xf32>
    %40 = vector.shape_cast %39 : vector<512x32xf32> to vector<2x256x32xf32>
    %c0_16 = arith.constant 0 : index
    %c0_17 = arith.constant 0 : index
    %c0_18 = arith.constant 0 : index
    %41 = vector.load %arg8[%c0_16, %c0_17, %c0_18] : memref<2x256x32xf32, #tpu.memory_space<vmem>>, vector<2x256x32xf32>
    tpu.vector_store %arg8[%c0_16, %c0_17, %c0_18], %40 {strides = array<i32>} : memref<2x256x32xf32, #tpu.memory_space<vmem>>, vector<2x256x32xf32>,
    return
  }
  func.func @transform_0(%arg0: i32, %arg1: i32) -> (i32, i32, i32) {
    %c0_i32 = arith.constant 0 : i32
    %c0_i32_0 = arith.constant 0 : i32
    return %arg0, %arg1, %c0_i32 : i32, i32, i32
  }
  func.func @transform_1(%arg0: i32, %arg1: i32) -> (i32, i32) {
    %c0_i32 = arith.constant 0 : i32
    %c0_i32_0 = arith.constant 0 : i32
    %c0_i32_1 = arith.constant 0 : i32
    return %c0_i32, %c0_i32_0 : i32, i32
  }
  func.func @transform_2(%arg0: i32, %arg1: i32) -> (i32, i32) {
    %c0_i32 = arith.constant 0 : i32
    %c0_i32_0 = arith.constant 0 : i32
    %c0_i32_1 = arith.constant 0 : i32
    return %c0_i32, %c0_i32_0 : i32, i32
  }
  func.func @transform_3(%arg0: i32, %arg1: i32) -> (i32, i32) {
    %c0_i32 = arith.constant 0 : i32
    %c0_i32_0 = arith.constant 0 : i32
    %c0_i32_1 = arith.constant 0 : i32
    return %c0_i32, %c0_i32_0 : i32, i32
  }
  func.func @transform_4(%arg0: i32, %arg1: i32) -> (i32, i32) {
    %c0_i32 = arith.constant 0 : i32
    %c0_i32_0 = arith.constant 0 : i32
    %c0_i32_1 = arith.constant 0 : i32
    return %c0_i32, %c0_i32_0 : i32, i32
  }
  func.func @transform_5(%arg0: i32, %arg1: i32) -> i32 {
    %c0_i32 = arith.constant 0 : i32
    %c0_i32_0 = arith.constant 0 : i32
    return %c0_i32 : i32
  }
  func.func @transform_6(%arg0: i32, %arg1: i32) -> (i32, i32, i32) {
    %c0_i32 = arith.constant 0 : i32
    %c0_i32_0 = arith.constant 0 : i32
    return %arg0, %arg1, %c0_i32 : i32, i32, i32
  }
}

</mosaic_0001>

<llo_original>
// kernel: tpu_custom_call.1
$region0: #{tpu_custom_call.1}
  #allocation0 [shape = 'u32[]', space=smem, size = 0x4, offset = 0x4, fixed_abs, tag = 'smem constant byte address 0x4 - core index']
  #allocation1 [shape = 'u32[144,128]{1,0:T(1,128)}', space=vmem, size = 0x12000, scoped, tag = 'internal scratch']
  #allocation2 [shape = 'f32[1]{0:T(128)S(6)}', space=smem, size = 0x200, scoped, tag = 'scoped memory for tpu_custom_call.1']
  %s0 = inlined_call_operand.vmem [shape: f32[2,256,32], index: 0, kind: input, shape index: {}]
  %s1 = inlined_call_operand.vmem [shape: f32[32,384], index: 1, kind: input, shape index: {}]
  %s2 = inlined_call_operand.vmem [shape: f32[1,384], index: 2, kind: input, shape index: {}]
  %s3 = inlined_call_operand.vmem [shape: f32[128,32], index: 3, kind: input, shape index: {}]
  %s4 = inlined_call_operand.vmem [shape: f32[1,32], index: 4, kind: input, shape index: {}]
  %s5 = inlined_call_operand.<no memory space> [shape: f32[1], index: 5, kind: input, shape index: {}]
  %s6 = inlined_call_operand.vmem [shape: f32[2,256,32], index: 6, kind: output, shape index: {}]
  %s7 = sld [smem:[#allocation0]]
  $region34: #{tpu_custom_call.1} parent=0
    _
  %s9 = ssub.s32 1, %s7
  %s10 = scalar_select 0, %s9, %s7
  %11 = sst [smem:[#allocation2]] %s5
  // Predicated region
  $region2: #{tpu_custom_call.1} parent=0 // pred_check
    _
  $region3: #{tpu_custom_call.1} parent=0 // pred_check_branch
    %13 = sbr.rel (0) target = $region5
  $region4: #{tpu_custom_call.1} parent=0 // pred_region
    _
  $region5: #{tpu_custom_call.1} parent=0 // pred_fallthru
    _
  // Predicated region
  $region6: #{tpu_custom_call.1} parent=0 // pred_check
    _
  $region7: #{tpu_custom_call.1} parent=0 // pred_check_branch
    %15 = sbr.rel (0) target = $region9
  $region8: #{tpu_custom_call.1} parent=0 // pred_region
    _
  $region9: #{tpu_custom_call.1} parent=0 // pred_fallthru
    _
  // Predicated region
  $region10: #{tpu_custom_call.1} parent=0 // pred_check
    _
  $region11: #{tpu_custom_call.1} parent=0 // pred_check_branch
    %17 = sbr.rel (0) target = $region13
  $region12: #{tpu_custom_call.1} parent=0 // pred_region
    _
  $region13: #{tpu_custom_call.1} parent=0 // pred_fallthru
    _
  // Predicated region
  $region14: #{tpu_custom_call.1} parent=0 // pred_check
    _
  $region15: #{tpu_custom_call.1} parent=0 // pred_check_branch
    %19 = sbr.rel (0) target = $region17
  $region16: #{tpu_custom_call.1} parent=0 // pred_region
    _
  $region17: #{tpu_custom_call.1} parent=0 // pred_fallthru
    _
  // Predicated region
  $region18: #{tpu_custom_call.1} parent=0 // pred_check
    _
  $region19: #{tpu_custom_call.1} parent=0 // pred_check_branch
    %21 = sbr.rel (0) target = $region21
  $region20: #{tpu_custom_call.1} parent=0 // pred_region
    _
  $region21: #{tpu_custom_call.1} parent=0 // pred_fallthru
    _
  // Predicated region
  $region22: #{tpu_custom_call.1} parent=0 // pred_check
    _
  $region23: #{tpu_custom_call.1} parent=0 // pred_check_branch
    %23 = sbr.rel (0) target = $region25
  $region24: #{tpu_custom_call.1} parent=0 // pred_region
    _
  $region25: #{tpu_custom_call.1} parent=0 // pred_fallthru
    _
  %v24 = vld [vmem:[%s0] sm:$0xff]
  %v25 = vld [vmem:[%s0 + $0x8] sm:$0xff]
  %v26 = vld [vmem:[%s0 + $0x10] sm:$0xff]
  %v27 = vld [vmem:[%s0 + $0x18] sm:$0xff]
  %v28 = vld [vmem:[%s0 + $0x20] sm:$0xff]
  %v29 = vld [vmem:[%s0 + $0x28] sm:$0xff]
  %v30 = vld [vmem:[%s0 + $0x30] sm:$0xff]
  %v31 = vld [vmem:[%s0 + $0x38] sm:$0xff]
  %v32 = vld [vmem:[%s0 + $0x40] sm:$0xff]
  %v33 = vld [vmem:[%s0 + $0x48] sm:$0xff]
  %v34 = vld [vmem:[%s0 + $0x50] sm:$0xff]
  %v35 = vld [vmem:[%s0 + $0x58] sm:$0xff]
  %v36 = vld [vmem:[%s0 + $0x60] sm:$0xff]
  %v37 = vld [vmem:[%s0 + $0x68] sm:$0xff]
  %v38 = vld [vmem:[%s0 + $0x70] sm:$0xff]
  %v39 = vld [vmem:[%s0 + $0x78] sm:$0xff]
  %v40 = vld [vmem:[%s0 + $0x80] sm:$0xff]
  %v41 = vld [vmem:[%s0 + $0x88] sm:$0xff]
  %v42 = vld [vmem:[%s0 + $0x90] sm:$0xff]
  %v43 = vld [vmem:[%s0 + $0x98] sm:$0xff]
  %v44 = vld [vmem:[%s0 + $0xa0] sm:$0xff]
  %v45 = vld [vmem:[%s0 + $0xa8] sm:$0xff]
  %v46 = vld [vmem:[%s0 + $0xb0] sm:$0xff]
  %v47 = vld [vmem:[%s0 + $0xb8] sm:$0xff]
  %v48 = vld [vmem:[%s0 + $0xc0] sm:$0xff]
  %v49 = vld [vmem:[%s0 + $0xc8] sm:$0xff]
  %v50 = vld [vmem:[%s0 + $0xd0] sm:$0xff]
  %v51 = vld [vmem:[%s0 + $0xd8] sm:$0xff]
  %v52 = vld [vmem:[%s0 + $0xe0] sm:$0xff]
  %v53 = vld [vmem:[%s0 + $0xe8] sm:$0xff]
  %v54 = vld [vmem:[%s0 + $0xf0] sm:$0xff]
  %v55 = vld [vmem:[%s0 + $0xf8] sm:$0xff]
  %v56 = vld [vmem:[%s0 + $0x100] sm:$0xff]
  %v57 = vld [vmem:[%s0 + $0x108] sm:$0xff]
  %v58 = vld [vmem:[%s0 + $0x110] sm:$0xff]
  %v59 = vld [vmem:[%s0 + $0x118] sm:$0xff]
  %v60 = vld [vmem:[%s0 + $0x120] sm:$0xff]
  %v61 = vld [vmem:[%s0 + $0x128] sm:$0xff]
  %v62 = vld [vmem:[%s0 + $0x130] sm:$0xff]
  %v63 = vld [vmem:[%s0 + $0x138] sm:$0xff]
  %v64 = vld [vmem:[%s0 + $0x140] sm:$0xff]
  %v65 = vld [vmem:[%s0 + $0x148] sm:$0xff]
  %v66 = vld [vmem:[%s0 + $0x150] sm:$0xff]
  %v67 = vld [vmem:[%s0 + $0x158] sm:$0xff]
  %v68 = vld [vmem:[%s0 + $0x160] sm:$0xff]
  %v69 = vld [vmem:[%s0 + $0x168] sm:$0xff]
  %v70 = vld [vmem:[%s0 + $0x170] sm:$0xff]
  %v71 = vld [vmem:[%s0 + $0x178] sm:$0xff]
  %v72 = vld [vmem:[%s0 + $0x180] sm:$0xff]
  %v73 = vld [vmem:[%s0 + $0x188] sm:$0xff]
  %v74 = vld [vmem:[%s0 + $0x190] sm:$0xff]
  %v75 = vld [vmem:[%s0 + $0x198] sm:$0xff]
  %v76 = vld [vmem:[%s0 + $0x1a0] sm:$0xff]
  %v77 = vld [vmem:[%s0 + $0x1a8] sm:$0xff]
  %v78 = vld [vmem:[%s0 + $0x1b0] sm:$0xff]
  %v79 = vld [vmem:[%s0 + $0x1b8] sm:$0xff]
  %v80 = vld [vmem:[%s0 + $0x1c0] sm:$0xff]
  %v81 = vld [vmem:[%s0 + $0x1c8] sm:$0xff]
  %v82 = vld [vmem:[%s0 + $0x1d0] sm:$0xff]
  %v83 = vld [vmem:[%s0 + $0x1d8] sm:$0xff]
  %v84 = vld [vmem:[%s0 + $0x1e0] sm:$0xff]
  %v85 = vld [vmem:[%s0 + $0x1e8] sm:$0xff]
  %v86 = vld [vmem:[%s0 + $0x1f0] sm:$0xff]
  %v87 = vld [vmem:[%s0 + $0x1f8] sm:$0xff]
  %v88 = vld [vmem:[%s1] sm:$0xff]
  %v89 = vld [vmem:[%s1 + $0x8] sm:$0xff]
  %v90 = vld [vmem:[%s1 + $0x10] sm:$0xff]
  %v91 = vld [vmem:[%s1 + $0x18] sm:$0xff]
  %v92 = vld [vmem:[%s1 + $0x20] sm:$0xff]
  %v93 = vld [vmem:[%s1 + $0x28] sm:$0xff]
  %v94 = vld [vmem:[%s1 + $0x30] sm:$0xff]
  %v95 = vld [vmem:[%s1 + $0x38] sm:$0xff]
  %v96 = vld [vmem:[%s1 + $0x40] sm:$0xff]
  %v97 = vld [vmem:[%s1 + $0x48] sm:$0xff]
  %v98 = vld [vmem:[%s1 + $0x50] sm:$0xff]
  %v99 = vld [vmem:[%s1 + $0x58] sm:$0xff]
  %v100 = vld [vmem:[%s2] sm:$0x7]
  %v102 = vlaneseq
  %v103 = vshrl.u32 %v102, 7
  %v104 = vsub.s32 0, %v103
  %v105 = vrot.slane %v100, %v104
  %v106 = vlaneseq
  %v107 = vshrl.u32 %v106, 7
  %v108 = vsub.s32 1, %v107
  %v109 = vrot.slane %v100, %v108
  %v110 = vlaneseq
  %v111 = vshrl.u32 %v110, 7
  %v112 = vsub.s32 2, %v111
  %v113 = vrot.slane %v100, %v112
  %vm117 = vcmask 261120
  %v119 = vsel %vm117, %v24, 0
  %v122 = vsel %vm117, %v25, 0
  %v125 = vsel %vm117, %v26, 0
  %v128 = vsel %vm117, %v27, 0
  %v131 = vsel %vm117, %v28, 0
  %v134 = vsel %vm117, %v29, 0
  %v137 = vsel %vm117, %v30, 0
  %v140 = vsel %vm117, %v31, 0
  %v143 = vsel %vm117, %v32, 0
  %v146 = vsel %vm117, %v33, 0
  %v149 = vsel %vm117, %v34, 0
  %v152 = vsel %vm117, %v35, 0
  %v155 = vsel %vm117, %v36, 0
  %v158 = vsel %vm117, %v37, 0
  %v161 = vsel %vm117, %v38, 0
  %v164 = vsel %vm117, %v39, 0
  %v167 = vsel %vm117, %v40, 0
  %v170 = vsel %vm117, %v41, 0
  %v173 = vsel %vm117, %v42, 0
  %v176 = vsel %vm117, %v43, 0
  %v179 = vsel %vm117, %v44, 0
  %v182 = vsel %vm117, %v45, 0
  %v185 = vsel %vm117, %v46, 0
  %v188 = vsel %vm117, %v47, 0
  %v191 = vsel %vm117, %v48, 0
  %v194 = vsel %vm117, %v49, 0
  %v197 = vsel %vm117, %v50, 0
  %v200 = vsel %vm117, %v51, 0
  %v203 = vsel %vm117, %v52, 0
  %v206 = vsel %vm117, %v53, 0
  %v209 = vsel %vm117, %v54, 0
  %v212 = vsel %vm117, %v55, 0
  %v215 = vsel %vm117, %v56, 0
  %v218 = vsel %vm117, %v57, 0
  %v221 = vsel %vm117, %v58, 0
  %v224 = vsel %vm117, %v59, 0
  %v227 = vsel %vm117, %v60, 0
  %v230 = vsel %vm117, %v61, 0
  %v233 = vsel %vm117, %v62, 0
  %v236 = vsel %vm117, %v63, 0
  %v239 = vsel %vm117, %v64, 0
  %v242 = vsel %vm117, %v65, 0
  %v245 = vsel %vm117, %v66, 0
  %v248 = vsel %vm117, %v67, 0
  %v251 = vsel %vm117, %v68, 0
  %v254 = vsel %vm117, %v69, 0
  %v257 = vsel %vm117, %v70, 0
  %v260 = vsel %vm117, %v71, 0
  %v263 = vsel %vm117, %v72, 0
  %v266 = vsel %vm117, %v73, 0
  %v269 = vsel %vm117, %v74, 0
  %v272 = vsel %vm117, %v75, 0
  %v275 = vsel %vm117, %v76, 0
  %v278 = vsel %vm117, %v77, 0
  %v281 = vsel %vm117, %v78, 0
  %v284 = vsel %vm117, %v79, 0
  %v287 = vsel %vm117, %v80, 0
  %v290 = vsel %vm117, %v81, 0
  %v293 = vsel %vm117, %v82, 0
  %v296 = vsel %vm117, %v83, 0
  %v299 = vsel %vm117, %v84, 0
  %v302 = vsel %vm117, %v85, 0
  %v305 = vsel %vm117, %v86, 0
  %v308 = vsel %vm117, %v87, 0
  %310 = vmatprep.subr.mxu0 0.0
  %311 = vmatpush1.msra.mxu0 0.0
  %312 = vmatprep.subr.mxu0 0.0
  %313 = vmatpush1.msra.mxu0 0.0
  %314 = vmatprep.subr.mxu0 0.0
  %315 = vmatpush1.msra.mxu0 0.0
  %316 = vmatprep.subr.mxu0 0.0
  %317 = vmatpush1.msra.mxu0 0.0
  %318 = vmatprep.subr.mxu0 0.0
  %319 = vmatpush1.msra.mxu0 0.0
  %320 = vmatprep.subr.mxu0 0.0
  %321 = vmatpush1.msra.mxu0 0.0
  %322 = vmatprep.subr.mxu0 0.0
  %323 = vmatpush1.msra.mxu0 0.0
  %324 = vmatprep.subr.mxu0 0.0
  %325 = vmatpush1.msra.mxu0 0.0
  %326 = vmatprep.subr.mxu0 0.0
  %327 = vmatpush1.msra.mxu0 0.0
  %328 = vmatprep.subr.mxu0 0.0
  %329 = vmatpush1.msra.mxu0 0.0
  %330 = vmatprep.subr.mxu0 0.0
  %331 = vmatpush1.msra.mxu0 0.0
  %332 = vmatprep.subr.mxu0 0.0
  %333 = vmatpush1.msra.mxu0 0.0
  %334 = vmatprep.subr.mxu0 %v98
  %335 = vmatpush1.msra.mxu0 %v97
  %336 = vmatprep.subr.mxu0 %v95
  %337 = vmatpush1.msra.mxu0 %v94
  %338 = vmatprep.subr.mxu0 %v92
  %339 = vmatpush1.msra.mxu0 %v91
  %340 = vmatprep.subr.mxu0 %v89
  %341 = vmatpush1.msra.mxu0 %v88
  %342 = vmatprep.subr.mxu0 0.0
  %343 = vmatpush2.msra.mxu0 0.0
  %344 = vmatprep.subr.mxu0 0.0
  %345 = vmatpush2.msra.mxu0 0.0
  %346 = vmatprep.subr.mxu0 0.0
  %347 = vmatpush2.msra.mxu0 0.0
  %348 = vmatprep.subr.mxu0 0.0
  %349 = vmatpush2.msra.mxu0 0.0
  %350 = vmatprep.subr.mxu0 0.0
  %351 = vmatpush2.msra.mxu0 0.0
  %352 = vmatprep.subr.mxu0 0.0
  %353 = vmatpush2.msra.mxu0 0.0
  %354 = vmatprep.subr.mxu0 0.0
  %355 = vmatpush2.msra.mxu0 0.0
  %356 = vmatprep.subr.mxu0 0.0
  %357 = vmatpush2.msra.mxu0 0.0
  %358 = vmatprep.subr.mxu0 0.0
  %359 = vmatpush2.msra.mxu0 0.0
  %360 = vmatprep.subr.mxu0 0.0
  %361 = vmatpush2.msra.mxu0 0.0
  %362 = vmatprep.subr.mxu0 0.0
  %363 = vmatpush2.msra.mxu0 0.0
  %364 = vmatprep.subr.mxu0 0.0
  %365 = vmatpush2.msra.mxu0 0.0
  %366 = vmatprep.subr.mxu0 0.0
  %367 = vmatpush2.msra.mxu0 0.0
  %368 = vmatprep.subr.mxu0 0.0
  %369 = vmatpush2.msra.mxu0 0.0
  %370 = vmatprep.subr.mxu0 0.0
  %371 = vmatpush2.msra.mxu0 0.0
  %372 = vmatprep.subr.mxu0 0.0
  %373 = vmatpush2.msra.mxu0 0.0
  %374 = vmatprep.mubr.f32.mxu0 0.0
  %375 = vmatmul.mubr.f32.gmra.mxu0 %v119
  %v376 = vpop.f32.mrf.mxu0
  %v377 = vadd.f32 %v105, %v376
  %v378 = vpop.f32.mrf.mxu0
  %v379 = vadd.f32 %v109, %v378
  %380 = vmatprep.mubr.f32.mxu0 0.0
  %381 = vmatmul.mubr.f32.gmra.mxu0 %v122
  %v382 = vpop.f32.mrf.mxu0
  %v383 = vadd.f32 %v105, %v382
  %v384 = vpop.f32.mrf.mxu0
  %v385 = vadd.f32 %v109, %v384
  %386 = vmatprep.mubr.f32.mxu0 0.0
  %387 = vmatmul.mubr.f32.gmra.mxu0 %v125
  %v388 = vpop.f32.mrf.mxu0
  %v389 = vadd.f32 %v105, %v388
  %v390 = vpop.f32.mrf.mxu0
  %v391 = vadd.f32 %v109, %v390
  %392 = vmatprep.mubr.f32.mxu0 0.0
  %393 = vmatmul.mubr.f32.gmra.mxu0 %v128
  %v394 = vpop.f32.mrf.mxu0
  %v395 = vadd.f32 %v105, %v394
  %v396 = vpop.f32.mrf.mxu0
  %v397 = vadd.f32 %v109, %v396
  %398 = vmatprep.mubr.f32.mxu0 0.0
  %399 = vmatmul.mubr.f32.gmra.mxu0 %v131
  %v400 = vpop.f32.mrf.mxu0
  %v401 = vadd.f32 %v105, %v400
  %v402 = vpop.f32.mrf.mxu0
  %v403 = vadd.f32 %v109, %v402
  %404 = vmatprep.mubr.f32.mxu0 0.0
  %405 = vmatmul.mubr.f32.gmra.mxu0 %v134
  %v406 = vpop.f32.mrf.mxu0
  %v407 = vadd.f32 %v105, %v406
  %v408 = vpop.f32.mrf.mxu0
  %v409 = vadd.f32 %v109, %v408
  %410 = vmatprep.mubr.f32.mxu0 0.0
  %411 = vmatmul.mubr.f32.gmra.mxu0 %v137
  %v412 = vpop.f32.mrf.mxu0
  %v413 = vadd.f32 %v105, %v412
  %v414 = vpop.f32.mrf.mxu0
  %v415 = vadd.f32 %v109, %v414
  %416 = vmatprep.mubr.f32.mxu0 0.0
  %417 = vmatmul.mubr.f32.gmra.mxu0 %v140
  %v418 = vpop.f32.mrf.mxu0
  %v419 = vadd.f32 %v105, %v418
  %v420 = vpop.f32.mrf.mxu0
  %v421 = vadd.f32 %v109, %v420
  %422 = vmatprep.mubr.f32.mxu0 0.0
  %423 = vmatmul.mubr.f32.gmra.mxu0 %v143
  %v424 = vpop.f32.mrf.mxu0
  %v425 = vadd.f32 %v105, %v424
  %v426 = vpop.f32.mrf.mxu0
  %v427 = vadd.f32 %v109, %v426
  %428 = vmatprep.mubr.f32.mxu0 0.0
  %429 = vmatmul.mubr.f32.gmra.mxu0 %v146
  %v430 = vpop.f32.mrf.mxu0
  %v431 = vadd.f32 %v105, %v430
  %v432 = vpop.f32.mrf.mxu0
  %v433 = vadd.f32 %v109, %v432
  %434 = vmatprep.mubr.f32.mxu0 0.0
  %435 = vmatmul.mubr.f32.gmra.mxu0 %v149
  %v436 = vpop.f32.mrf.mxu0
  %v437 = vadd.f32 %v105, %v436
  %v438 = vpop.f32.mrf.mxu0
  %v439 = vadd.f32 %v109, %v438
  %440 = vmatprep.mubr.f32.mxu0 0.0
  %441 = vmatmul.mubr.f32.gmra.mxu0 %v152
  %v442 = vpop.f32.mrf.mxu0
  %v443 = vadd.f32 %v105, %v442
  %v444 = vpop.f32.mrf.mxu0
  %v445 = vadd.f32 %v109, %v444
  %446 = vmatprep.mubr.f32.mxu0 0.0
  %447 = vmatmul.mubr.f32.gmra.mxu0 %v155
  %v448 = vpop.f32.mrf.mxu0
  %v449 = vadd.f32 %v105, %v448
  %v450 = vpop.f32.mrf.mxu0
  %v451 = vadd.f32 %v109, %v450
  %452 = vmatprep.mubr.f32.mxu0 0.0
  %453 = vmatmul.mubr.f32.gmra.mxu0 %v158
  %v454 = vpop.f32.mrf.mxu0
  %v455 = vadd.f32 %v105, %v454
  %v456 = vpop.f32.mrf.mxu0
  %v457 = vadd.f32 %v109, %v456
  %458 = vmatprep.mubr.f32.mxu0 0.0
  %459 = vmatmul.mubr.f32.gmra.mxu0 %v161
  %v460 = vpop.f32.mrf.mxu0
  %v461 = vadd.f32 %v105, %v460
  %v462 = vpop.f32.mrf.mxu0
  %v463 = vadd.f32 %v109, %v462
  %464 = vmatprep.mubr.f32.mxu0 0.0
  %465 = vmatmul.mubr.f32.gmra.mxu0 %v164
  %v466 = vpop.f32.mrf.mxu0
  %v467 = vadd.f32 %v105, %v466
  %v468 = vpop.f32.mrf.mxu0
  %v469 = vadd.f32 %v109, %v468
  %470 = vmatprep.mubr.f32.mxu0 0.0
  %471 = vmatmul.mubr.f32.gmra.mxu0 %v167
  %v472 = vpop.f32.mrf.mxu0
  %v473 = vadd.f32 %v105, %v472
  %v474 = vpop.f32.mrf.mxu0
  %v475 = vadd.f32 %v109, %v474
  %476 = vmatprep.mubr.f32.mxu0 0.0
  %477 = vmatmul.mubr.f32.gmra.mxu0 %v170
  %v478 = vpop.f32.mrf.mxu0
  %v479 = vadd.f32 %v105, %v478
  %v480 = vpop.f32.mrf.mxu0
  %v481 = vadd.f32 %v109, %v480
  %482 = vmatprep.mubr.f32.mxu0 0.0
  %483 = vmatmul.mubr.f32.gmra.mxu0 %v173
  %v484 = vpop.f32.mrf.mxu0
  %v485 = vadd.f32 %v105, %v484
  %v486 = vpop.f32.mrf.mxu0
  %v487 = vadd.f32 %v109, %v486
  %488 = vmatprep.mubr.f32.mxu0 0.0
  %489 = vmatmul.mubr.f32.gmra.mxu0 %v176
  %v490 = vpop.f32.mrf.mxu0
  %v491 = vadd.f32 %v105, %v490
  %v492 = vpop.f32.mrf.mxu0
  %v493 = vadd.f32 %v109, %v492
  %494 = vmatprep.mubr.f32.mxu0 0.0
  %495 = vmatmul.mubr.f32.gmra.mxu0 %v179
  %v496 = vpop.f32.mrf.mxu0
  %v497 = vadd.f32 %v105, %v496
  %v498 = vpop.f32.mrf.mxu0
  %v499 = vadd.f32 %v109, %v498
  %500 = vmatprep.mubr.f32.mxu0 0.0
  %501 = vmatmul.mubr.f32.gmra.mxu0 %v182
  %v502 = vpop.f32.mrf.mxu0
  %v503 = vadd.f32 %v105, %v502
  %v504 = vpop.f32.mrf.mxu0
  %v505 = vadd.f32 %v109, %v504
  %506 = vmatprep.mubr.f32.mxu0 0.0
  %507 = vmatmul.mubr.f32.gmra.mxu0 %v185
  %v508 = vpop.f32.mrf.mxu0
  %v509 = vadd.f32 %v105, %v508
  %v510 = vpop.f32.mrf.mxu0
  %v511 = vadd.f32 %v109, %v510
  %512 = vmatprep.mubr.f32.mxu0 0.0
  %513 = vmatmul.mubr.f32.gmra.mxu0 %v188
  %v514 = vpop.f32.mrf.mxu0
  %v515 = vadd.f32 %v105, %v514
  %v516 = vpop.f32.mrf.mxu0
  %v517 = vadd.f32 %v109, %v516
  %518 = vmatprep.mubr.f32.mxu0 0.0
  %519 = vmatmul.mubr.f32.gmra.mxu0 %v191
  %v520 = vpop.f32.mrf.mxu0
  %v521 = vadd.f32 %v105, %v520
  %v522 = vpop.f32.mrf.mxu0
  %v523 = vadd.f32 %v109, %v522
  %524 = vmatprep.mubr.f32.mxu0 0.0
  %525 = vmatmul.mubr.f32.gmra.mxu0 %v194
  %v526 = vpop.f32.mrf.mxu0
  %v527 = vadd.f32 %v105, %v526
  %v528 = vpop.f32.mrf.mxu0
  %v529 = vadd.f32 %v109, %v528
  %530 = vmatprep.mubr.f32.mxu0 0.0
  %531 = vmatmul.mubr.f32.gmra.mxu0 %v197
  %v532 = vpop.f32.mrf.mxu0
  %v533 = vadd.f32 %v105, %v532
  %v534 = vpop.f32.mrf.mxu0
  %v535 = vadd.f32 %v109, %v534
  %536 = vmatprep.mubr.f32.mxu0 0.0
  %537 = vmatmul.mubr.f32.gmra.mxu0 %v200
  %v538 = vpop.f32.mrf.mxu0
  %v539 = vadd.f32 %v105, %v538
  %v540 = vpop.f32.mrf.mxu0
  %v541 = vadd.f32 %v109, %v540
  %542 = vmatprep.mubr.f32.mxu0 0.0
  %543 = vmatmul.mubr.f32.gmra.mxu0 %v203
  %v544 = vpop.f32.mrf.mxu0
  %v545 = vadd.f32 %v105, %v544
  %v546 = vpop.f32.mrf.mxu0
  %v547 = vadd.f32 %v109, %v546
  %548 = vmatprep.mubr.f32.mxu0 0.0
  %549 = vmatmul.mubr.f32.gmra.mxu0 %v206
  %v550 = vpop.f32.mrf.mxu0
  %v551 = vadd.f32 %v105, %v550
  %v552 = vpop.f32.mrf.mxu0
  %v553 = vadd.f32 %v109, %v552
  %554 = vmatprep.mubr.f32.mxu0 0.0
  %555 = vmatmul.mubr.f32.gmra.mxu0 %v209
  %v556 = vpop.f32.mrf.mxu0
  %v557 = vadd.f32 %v105, %v556
  %v558 = vpop.f32.mrf.mxu0
  %v559 = vadd.f32 %v109, %v558
  %560 = vmatprep.mubr.f32.mxu0 0.0
  %561 = vmatmul.mubr.f32.gmra.mxu0 %v212
  %v562 = vpop.f32.mrf.mxu0
  %v563 = vadd.f32 %v105, %v562
  %v564 = vpop.f32.mrf.mxu0
  %v565 = vadd.f32 %v109, %v564
  %566 = vmatprep.mubr.f32.mxu0 0.0
  %567 = vmatmul.mubr.f32.gmra.mxu0 %v215
  %v568 = vpop.f32.mrf.mxu0
  %v569 = vadd.f32 %v105, %v568
  %v570 = vpop.f32.mrf.mxu0
  %v571 = vadd.f32 %v109, %v570
  %572 = vmatprep.mubr.f32.mxu0 0.0
  %573 = vmatmul.mubr.f32.gmra.mxu0 %v218
  %v574 = vpop.f32.mrf.mxu0
  %v575 = vadd.f32 %v105, %v574
  %v576 = vpop.f32.mrf.mxu0
  %v577 = vadd.f32 %v109, %v576
  %578 = vmatprep.mubr.f32.mxu0 0.0
  %579 = vmatmul.mubr.f32.gmra.mxu0 %v221
  %v580 = vpop.f32.mrf.mxu0
  %v581 = vadd.f32 %v105, %v580
  %v582 = vpop.f32.mrf.mxu0
  %v583 = vadd.f32 %v109, %v582
  %584 = vmatprep.mubr.f32.mxu0 0.0
  %585 = vmatmul.mubr.f32.gmra.mxu0 %v224
  %v586 = vpop.f32.mrf.mxu0
  %v587 = vadd.f32 %v105, %v586
  %v588 = vpop.f32.mrf.mxu0
  %v589 = vadd.f32 %v109, %v588
  %590 = vmatprep.mubr.f32.mxu0 0.0
  %591 = vmatmul.mubr.f32.gmra.mxu0 %v227
  %v592 = vpop.f32.mrf.mxu0
  %v593 = vadd.f32 %v105, %v592
  %v594 = vpop.f32.mrf.mxu0
  %v595 = vadd.f32 %v109, %v594
  %596 = vmatprep.mubr.f32.mxu0 0.0
  %597 = vmatmul.mubr.f32.gmra.mxu0 %v230
  %v598 = vpop.f32.mrf.mxu0
  %v599 = vadd.f32 %v105, %v598
  %v600 = vpop.f32.mrf.mxu0
  %v601 = vadd.f32 %v109, %v600
  %602 = vmatprep.mubr.f32.mxu0 0.0
  %603 = vmatmul.mubr.f32.gmra.mxu0 %v233
  %v604 = vpop.f32.mrf.mxu0
  %v605 = vadd.f32 %v105, %v604
  %v606 = vpop.f32.mrf.mxu0
  %v607 = vadd.f32 %v109, %v606
  %608 = vmatprep.mubr.f32.mxu0 0.0
  %609 = vmatmul.mubr.f32.gmra.mxu0 %v236
  %v610 = vpop.f32.mrf.mxu0
  %v611 = vadd.f32 %v105, %v610
  %v612 = vpop.f32.mrf.mxu0
  %v613 = vadd.f32 %v109, %v612
  %614 = vmatprep.mubr.f32.mxu0 0.0
  %615 = vmatmul.mubr.f32.gmra.mxu0 %v239
  %v616 = vpop.f32.mrf.mxu0
  %v617 = vadd.f32 %v105, %v616
  %v618 = vpop.f32.mrf.mxu0
  %v619 = vadd.f32 %v109, %v618
  %620 = vmatprep.mubr.f32.mxu0 0.0
  %621 = vmatmul.mubr.f32.gmra.mxu0 %v242
  %v622 = vpop.f32.mrf.mxu0
  %v623 = vadd.f32 %v105, %v622
  %v624 = vpop.f32.mrf.mxu0
  %v625 = vadd.f32 %v109, %v624
  %626 = vmatprep.mubr.f32.mxu0 0.0
  %627 = vmatmul.mubr.f32.gmra.mxu0 %v245
  %v628 = vpop.f32.mrf.mxu0
  %v629 = vadd.f32 %v105, %v628
  %v630 = vpop.f32.mrf.mxu0
  %v631 = vadd.f32 %v109, %v630
  %632 = vmatprep.mubr.f32.mxu0 0.0
  %633 = vmatmul.mubr.f32.gmra.mxu0 %v248
  %v634 = vpop.f32.mrf.mxu0
  %v635 = vadd.f32 %v105, %v634
  %v636 = vpop.f32.mrf.mxu0
  %v637 = vadd.f32 %v109, %v636
  %638 = vmatprep.mubr.f32.mxu0 0.0
  %639 = vmatmul.mubr.f32.gmra.mxu0 %v251
  %v640 = vpop.f32.mrf.mxu0
  %v641 = vadd.f32 %v105, %v640
  %v642 = vpop.f32.mrf.mxu0
  %v643 = vadd.f32 %v109, %v642
  %644 = vmatprep.mubr.f32.mxu0 0.0
  %645 = vmatmul.mubr.f32.gmra.mxu0 %v254
  %v646 = vpop.f32.mrf.mxu0
  %v647 = vadd.f32 %v105, %v646
  %v648 = vpop.f32.mrf.mxu0
  %v649 = vadd.f32 %v109, %v648
  %650 = vmatprep.mubr.f32.mxu0 0.0
  %651 = vmatmul.mubr.f32.gmra.mxu0 %v257
  %v652 = vpop.f32.mrf.mxu0
  %v653 = vadd.f32 %v105, %v652
  %v654 = vpop.f32.mrf.mxu0
  %v655 = vadd.f32 %v109, %v654
  %656 = vmatprep.mubr.f32.mxu0 0.0
  %657 = vmatmul.mubr.f32.gmra.mxu0 %v260
  %v658 = vpop.f32.mrf.mxu0
  %v659 = vadd.f32 %v105, %v658
  %v660 = vpop.f32.mrf.mxu0
  %v661 = vadd.f32 %v109, %v660
  %662 = vmatprep.mubr.f32.mxu0 0.0
  %663 = vmatmul.mubr.f32.gmra.mxu0 %v263
  %v664 = vpop.f32.mrf.mxu0
  %v665 = vadd.f32 %v105, %v664
  %v666 = vpop.f32.mrf.mxu0
  %v667 = vadd.f32 %v109, %v666
  %668 = vmatprep.mubr.f32.mxu0 0.0
  %669 = vmatmul.mubr.f32.gmra.mxu0 %v266
  %v670 = vpop.f32.mrf.mxu0
  %v671 = vadd.f32 %v105, %v670
  %v672 = vpop.f32.mrf.mxu0
  %v673 = vadd.f32 %v109, %v672
  %674 = vmatprep.mubr.f32.mxu0 0.0
  %675 = vmatmul.mubr.f32.gmra.mxu0 %v269
  %v676 = vpop.f32.mrf.mxu0
  %v677 = vadd.f32 %v105, %v676
  %v678 = vpop.f32.mrf.mxu0
  %v679 = vadd.f32 %v109, %v678
  %680 = vmatprep.mubr.f32.mxu0 0.0
  %681 = vmatmul.mubr.f32.gmra.mxu0 %v272
  %v682 = vpop.f32.mrf.mxu0
  %v683 = vadd.f32 %v105, %v682
  %v684 = vpop.f32.mrf.mxu0
  %v685 = vadd.f32 %v109, %v684
  %686 = vmatprep.mubr.f32.mxu0 0.0
  %687 = vmatmul.mubr.f32.gmra.mxu0 %v275
  %v688 = vpop.f32.mrf.mxu0
  %v689 = vadd.f32 %v105, %v688
  %v690 = vpop.f32.mrf.mxu0
  %v691 = vadd.f32 %v109, %v690
  %692 = vmatprep.mubr.f32.mxu0 0.0
  %693 = vmatmul.mubr.f32.gmra.mxu0 %v278
  %v694 = vpop.f32.mrf.mxu0
  %v695 = vadd.f32 %v105, %v694
  %v696 = vpop.f32.mrf.mxu0
  %v697 = vadd.f32 %v109, %v696
  %698 = vmatprep.mubr.f32.mxu0 0.0
  %699 = vmatmul.mubr.f32.gmra.mxu0 %v281
  %v700 = vpop.f32.mrf.mxu0
  %v701 = vadd.f32 %v105, %v700
  %v702 = vpop.f32.mrf.mxu0
  %v703 = vadd.f32 %v109, %v702
  %704 = vmatprep.mubr.f32.mxu0 0.0
  %705 = vmatmul.mubr.f32.gmra.mxu0 %v284
  %v706 = vpop.f32.mrf.mxu0
  %v707 = vadd.f32 %v105, %v706
  %v708 = vpop.f32.mrf.mxu0
  %v709 = vadd.f32 %v109, %v708
  %710 = vmatprep.mubr.f32.mxu0 0.0
  %711 = vmatmul.mubr.f32.gmra.mxu0 %v287
  %v712 = vpop.f32.mrf.mxu0
  %v713 = vadd.f32 %v105, %v712
  %v714 = vpop.f32.mrf.mxu0
  %v715 = vadd.f32 %v109, %v714
  %716 = vmatprep.mubr.f32.mxu0 0.0
  %717 = vmatmul.mubr.f32.gmra.mxu0 %v290
  %v718 = vpop.f32.mrf.mxu0
  %v719 = vadd.f32 %v105, %v718
  %v720 = vpop.f32.mrf.mxu0
  %v721 = vadd.f32 %v109, %v720
  %722 = vmatprep.mubr.f32.mxu0 0.0
  %723 = vmatmul.mubr.f32.gmra.mxu0 %v293
  %v724 = vpop.f32.mrf.mxu0
  %v725 = vadd.f32 %v105, %v724
  %v726 = vpop.f32.mrf.mxu0
  %v727 = vadd.f32 %v109, %v726
  %728 = vmatprep.mubr.f32.mxu0 0.0
  %729 = vmatmul.mubr.f32.gmra.mxu0 %v296
  %v730 = vpop.f32.mrf.mxu0
  %v731 = vadd.f32 %v105, %v730
  %v732 = vpop.f32.mrf.mxu0
  %v733 = vadd.f32 %v109, %v732
  %734 = vmatprep.mubr.f32.mxu0 0.0
  %735 = vmatmul.mubr.f32.gmra.mxu0 %v299
  %v736 = vpop.f32.mrf.mxu0
  %v737 = vadd.f32 %v105, %v736
  %v738 = vpop.f32.mrf.mxu0
  %v739 = vadd.f32 %v109, %v738
  %740 = vmatprep.mubr.f32.mxu0 0.0
  %741 = vmatmul.mubr.f32.gmra.mxu0 %v302
  %v742 = vpop.f32.mrf.mxu0
  %v743 = vadd.f32 %v105, %v742
  %v744 = vpop.f32.mrf.mxu0
  %v745 = vadd.f32 %v109, %v744
  %746 = vmatprep.mubr.f32.mxu0 0.0
  %747 = vmatmul.mubr.f32.gmra.mxu0 %v305
  %v748 = vpop.f32.mrf.mxu0
  %v749 = vadd.f32 %v105, %v748
  %v750 = vpop.f32.mrf.mxu0
  %v751 = vadd.f32 %v109, %v750
  %752 = vmatprep.mubr.f32.mxu0 0.0
  %753 = vmatmul.mubr.f32.gmra.mxu0 %v308
  %v754 = vpop.f32.mrf.mxu0
  %v755 = vadd.f32 %v105, %v754
  %v756 = vpop.f32.mrf.mxu0
  %v757 = vadd.f32 %v109, %v756
  %758 = vdwg.mxu0
  %759 = vmatprep.subr.mxu0 0.0
  %760 = vmatpush1.msra.mxu0 0.0
  %761 = vmatprep.subr.mxu0 0.0
  %762 = vmatpush1.msra.mxu0 0.0
  %763 = vmatprep.subr.mxu0 0.0
  %764 = vmatpush1.msra.mxu0 0.0
  %765 = vmatprep.subr.mxu0 0.0
  %766 = vmatpush1.msra.mxu0 0.0
  %767 = vmatprep.subr.mxu0 0.0
  %768 = vmatpush1.msra.mxu0 0.0
  %769 = vmatprep.subr.mxu0 0.0
  %770 = vmatpush1.msra.mxu0 0.0
  %771 = vmatprep.subr.mxu0 0.0
  %772 = vmatpush1.msra.mxu0 0.0
  %773 = vmatprep.subr.mxu0 0.0
  %774 = vmatpush1.msra.mxu0 0.0
  %775 = vmatprep.subr.mxu0 0.0
  %776 = vmatpush1.msra.mxu0 0.0
  %777 = vmatprep.subr.mxu0 0.0
  %778 = vmatpush1.msra.mxu0 0.0
  %779 = vmatprep.subr.mxu0 0.0
  %780 = vmatpush1.msra.mxu0 0.0
  %781 = vmatprep.subr.mxu0 0.0
  %782 = vmatpush1.msra.mxu0 0.0
  %783 = vmatprep.subr.mxu0 0.0
  %784 = vmatpush1.msra.mxu0 %v99
  %785 = vmatprep.subr.mxu0 0.0
  %786 = vmatpush1.msra.mxu0 %v96
  %787 = vmatprep.subr.mxu0 0.0
  %788 = vmatpush1.msra.mxu0 %v93
  %789 = vmatprep.subr.mxu0 0.0
  %790 = vmatpush1.msra.mxu0 %v90
  %791 = vmatprep.subr.mxu0 0.0
  %792 = vmatpush2.msra.mxu0 0.0
  %793 = vmatprep.subr.mxu0 0.0
  %794 = vmatpush2.msra.mxu0 0.0
  %795 = vmatprep.subr.mxu0 0.0
  %796 = vmatpush2.msra.mxu0 0.0
  %797 = vmatprep.subr.mxu0 0.0
  %798 = vmatpush2.msra.mxu0 0.0
  %799 = vmatprep.subr.mxu0 0.0
  %800 = vmatpush2.msra.mxu0 0.0
  %801 = vmatprep.subr.mxu0 0.0
  %802 = vmatpush2.msra.mxu0 0.0
  %803 = vmatprep.subr.mxu0 0.0
  %804 = vmatpush2.msra.mxu0 0.0
  %805 = vmatprep.subr.mxu0 0.0
  %806 = vmatpush2.msra.mxu0 0.0
  %807 = vmatprep.subr.mxu0 0.0
  %808 = vmatpush2.msra.mxu0 0.0
  %809 = vmatprep.subr.mxu0 0.0
  %810 = vmatpush2.msra.mxu0 0.0
  %811 = vmatprep.subr.mxu0 0.0
  %812 = vmatpush2.msra.mxu0 0.0
  %813 = vmatprep.subr.mxu0 0.0
  %814 = vmatpush2.msra.mxu0 0.0
  %815 = vmatprep.subr.mxu0 0.0
  %816 = vmatpush2.msra.mxu0 0.0
  %817 = vmatprep.subr.mxu0 0.0
  %818 = vmatpush2.msra.mxu0 0.0
  %819 = vmatprep.subr.mxu0 0.0
  %820 = vmatpush2.msra.mxu0 0.0
  %821 = vmatprep.subr.mxu0 0.0
  %822 = vmatpush2.msra.mxu0 0.0
  %823 = vmatprep.mubr.f32.mxu0 0.0
  %824 = vmatmul.mubr.f32.gmra.mxu0 %v119
  %v825 = vpop.f32.mrf.mxu0
  %v826 = vadd.f32 %v113, %v825
  %v827 = vpop.f32.mrf.mxu0
  %828 = vmatprep.mubr.f32.mxu0 0.0
  %829 = vmatmul.mubr.f32.gmra.mxu0 %v122
  %v830 = vpop.f32.mrf.mxu0
  %v831 = vadd.f32 %v113, %v830
  %v832 = vpop.f32.mrf.mxu0
  %833 = vmatprep.mubr.f32.mxu0 0.0
  %834 = vmatmul.mubr.f32.gmra.mxu0 %v125
  %v835 = vpop.f32.mrf.mxu0
  %v836 = vadd.f32 %v113, %v835
  %v837 = vpop.f32.mrf.mxu0
  %838 = vmatprep.mubr.f32.mxu0 0.0
  %839 = vmatmul.mubr.f32.gmra.mxu0 %v128
  %v840 = vpop.f32.mrf.mxu0
  %v841 = vadd.f32 %v113, %v840
  %v842 = vpop.f32.mrf.mxu0
  %843 = vmatprep.mubr.f32.mxu0 0.0
  %844 = vmatmul.mubr.f32.gmra.mxu0 %v131
  %v845 = vpop.f32.mrf.mxu0
  %v846 = vadd.f32 %v113, %v845
  %v847 = vpop.f32.mrf.mxu0
  %848 = vmatprep.mubr.f32.mxu0 0.0
  %849 = vmatmul.mubr.f32.gmra.mxu0 %v134
  %v850 = vpop.f32.mrf.mxu0
  %v851 = vadd.f32 %v113, %v850
  %v852 = vpop.f32.mrf.mxu0
  %853 = vmatprep.mubr.f32.mxu0 0.0
  %854 = vmatmul.mubr.f32.gmra.mxu0 %v137
  %v855 = vpop.f32.mrf.mxu0
  %v856 = vadd.f32 %v113, %v855
  %v857 = vpop.f32.mrf.mxu0
  %858 = vmatprep.mubr.f32.mxu0 0.0
  %859 = vmatmul.mubr.f32.gmra.mxu0 %v140
  %v860 = vpop.f32.mrf.mxu0
  %v861 = vadd.f32 %v113, %v860
  %v862 = vpop.f32.mrf.mxu0
  %863 = vmatprep.mubr.f32.mxu0 0.0
  %864 = vmatmul.mubr.f32.gmra.mxu0 %v143
  %v865 = vpop.f32.mrf.mxu0
  %v866 = vadd.f32 %v113, %v865
  %v867 = vpop.f32.mrf.mxu0
  %868 = vmatprep.mubr.f32.mxu0 0.0
  %869 = vmatmul.mubr.f32.gmra.mxu0 %v146
  %v870 = vpop.f32.mrf.mxu0
  %v871 = vadd.f32 %v113, %v870
  %v872 = vpop.f32.mrf.mxu0
  %873 = vmatprep.mubr.f32.mxu0 0.0
  %874 = vmatmul.mubr.f32.gmra.mxu0 %v149
  %v875 = vpop.f32.mrf.mxu0
  %v876 = vadd.f32 %v113, %v875
  %v877 = vpop.f32.mrf.mxu0
  %878 = vmatprep.mubr.f32.mxu0 0.0
  %879 = vmatmul.mubr.f32.gmra.mxu0 %v152
  %v880 = vpop.f32.mrf.mxu0
  %v881 = vadd.f32 %v113, %v880
  %v882 = vpop.f32.mrf.mxu0
  %883 = vmatprep.mubr.f32.mxu0 0.0
  %884 = vmatmul.mubr.f32.gmra.mxu0 %v155
  %v885 = vpop.f32.mrf.mxu0
  %v886 = vadd.f32 %v113, %v885
  %v887 = vpop.f32.mrf.mxu0
  %888 = vmatprep.mubr.f32.mxu0 0.0
  %889 = vmatmul.mubr.f32.gmra.mxu0 %v158
  %v890 = vpop.f32.mrf.mxu0
  %v891 = vadd.f32 %v113, %v890
  %v892 = vpop.f32.mrf.mxu0
  %893 = vmatprep.mubr.f32.mxu0 0.0
  %894 = vmatmul.mubr.f32.gmra.mxu0 %v161
  %v895 = vpop.f32.mrf.mxu0
  %v896 = vadd.f32 %v113, %v895
  %v897 = vpop.f32.mrf.mxu0
  %898 = vmatprep.mubr.f32.mxu0 0.0
  %899 = vmatmul.mubr.f32.gmra.mxu0 %v164
  %v900 = vpop.f32.mrf.mxu0
  %v901 = vadd.f32 %v113, %v900
  %v902 = vpop.f32.mrf.mxu0
  %903 = vmatprep.mubr.f32.mxu0 0.0
  %904 = vmatmul.mubr.f32.gmra.mxu0 %v167
  %v905 = vpop.f32.mrf.mxu0
  %v906 = vadd.f32 %v113, %v905
  %v907 = vpop.f32.mrf.mxu0
  %908 = vmatprep.mubr.f32.mxu0 0.0
  %909 = vmatmul.mubr.f32.gmra.mxu0 %v170
  %v910 = vpop.f32.mrf.mxu0
  %v911 = vadd.f32 %v113, %v910
  %v912 = vpop.f32.mrf.mxu0
  %913 = vmatprep.mubr.f32.mxu0 0.0
  %914 = vmatmul.mubr.f32.gmra.mxu0 %v173
  %v915 = vpop.f32.mrf.mxu0
  %v916 = vadd.f32 %v113, %v915
  %v917 = vpop.f32.mrf.mxu0
  %918 = vmatprep.mubr.f32.mxu0 0.0
  %919 = vmatmul.mubr.f32.gmra.mxu0 %v176
  %v920 = vpop.f32.mrf.mxu0
  %v921 = vadd.f32 %v113, %v920
  %v922 = vpop.f32.mrf.mxu0
  %923 = vmatprep.mubr.f32.mxu0 0.0
  %924 = vmatmul.mubr.f32.gmra.mxu0 %v179
  %v925 = vpop.f32.mrf.mxu0
  %v926 = vadd.f32 %v113, %v925
  %v927 = vpop.f32.mrf.mxu0
  %928 = vmatprep.mubr.f32.mxu0 0.0
  %929 = vmatmul.mubr.f32.gmra.mxu0 %v182
  %v930 = vpop.f32.mrf.mxu0
  %v931 = vadd.f32 %v113, %v930
  %v932 = vpop.f32.mrf.mxu0
  %933 = vmatprep.mubr.f32.mxu0 0.0
  %934 = vmatmul.mubr.f32.gmra.mxu0 %v185
  %v935 = vpop.f32.mrf.mxu0
  %v936 = vadd.f32 %v113, %v935
  %v937 = vpop.f32.mrf.mxu0
  %938 = vmatprep.mubr.f32.mxu0 0.0
  %939 = vmatmul.mubr.f32.gmra.mxu0 %v188
  %v940 = vpop.f32.mrf.mxu0
  %v941 = vadd.f32 %v113, %v940
  %v942 = vpop.f32.mrf.mxu0
  %943 = vmatprep.mubr.f32.mxu0 0.0
  %944 = vmatmul.mubr.f32.gmra.mxu0 %v191
  %v945 = vpop.f32.mrf.mxu0
  %v946 = vadd.f32 %v113, %v945
  %v947 = vpop.f32.mrf.mxu0
  %948 = vmatprep.mubr.f32.mxu0 0.0
  %949 = vmatmul.mubr.f32.gmra.mxu0 %v194
  %v950 = vpop.f32.mrf.mxu0
  %v951 = vadd.f32 %v113, %v950
  %v952 = vpop.f32.mrf.mxu0
  %953 = vmatprep.mubr.f32.mxu0 0.0
  %954 = vmatmul.mubr.f32.gmra.mxu0 %v197
  %v955 = vpop.f32.mrf.mxu0
  %v956 = vadd.f32 %v113, %v955
  %v957 = vpop.f32.mrf.mxu0
  %958 = vmatprep.mubr.f32.mxu0 0.0
  %959 = vmatmul.mubr.f32.gmra.mxu0 %v200
  %v960 = vpop.f32.mrf.mxu0
  %v961 = vadd.f32 %v113, %v960
  %v962 = vpop.f32.mrf.mxu0
  %963 = vmatprep.mubr.f32.mxu0 0.0
  %964 = vmatmul.mubr.f32.gmra.mxu0 %v203
  %v965 = vpop.f32.mrf.mxu0
  %v966 = vadd.f32 %v113, %v965
  %v967 = vpop.f32.mrf.mxu0
  %968 = vmatprep.mubr.f32.mxu0 0.0
  %969 = vmatmul.mubr.f32.gmra.mxu0 %v206
  %v970 = vpop.f32.mrf.mxu0
  %v971 = vadd.f32 %v113, %v970
  %v972 = vpop.f32.mrf.mxu0
  %973 = vmatprep.mubr.f32.mxu0 0.0
  %974 = vmatmul.mubr.f32.gmra.mxu0 %v209
  %v975 = vpop.f32.mrf.mxu0
  %v976 = vadd.f32 %v113, %v975
  %v977 = vpop.f32.mrf.mxu0
  %978 = vmatprep.mubr.f32.mxu0 0.0
  %979 = vmatmul.mubr.f32.gmra.mxu0 %v212
  %v980 = vpop.f32.mrf.mxu0
  %v981 = vadd.f32 %v113, %v980
  %v982 = vpop.f32.mrf.mxu0
  %983 = vmatprep.mubr.f32.mxu0 0.0
  %984 = vmatmul.mubr.f32.gmra.mxu0 %v215
  %v985 = vpop.f32.mrf.mxu0
  %v986 = vadd.f32 %v113, %v985
  %v987 = vpop.f32.mrf.mxu0
  %988 = vmatprep.mubr.f32.mxu0 0.0
  %989 = vmatmul.mubr.f32.gmra.mxu0 %v218
  %v990 = vpop.f32.mrf.mxu0
  %v991 = vadd.f32 %v113, %v990
  %v992 = vpop.f32.mrf.mxu0
  %993 = vmatprep.mubr.f32.mxu0 0.0
  %994 = vmatmul.mubr.f32.gmra.mxu0 %v221
  %v995 = vpop.f32.mrf.mxu0
  %v996 = vadd.f32 %v113, %v995
  %v997 = vpop.f32.mrf.mxu0
  %998 = vmatprep.mubr.f32.mxu0 0.0
  %999 = vmatmul.mubr.f32.gmra.mxu0 %v224
  %v1000 = vpop.f32.mrf.mxu0
  %v1001 = vadd.f32 %v113, %v1000
  %v1002 = vpop.f32.mrf.mxu0
  %1003 = vmatprep.mubr.f32.mxu0 0.0
  %1004 = vmatmul.mubr.f32.gmra.mxu0 %v227
  %v1005 = vpop.f32.mrf.mxu0
  %v1006 = vadd.f32 %v113, %v1005
  %v1007 = vpop.f32.mrf.mxu0
  %1008 = vmatprep.mubr.f32.mxu0 0.0
  %1009 = vmatmul.mubr.f32.gmra.mxu0 %v230
  %v1010 = vpop.f32.mrf.mxu0
  %v1011 = vadd.f32 %v113, %v1010
  %v1012 = vpop.f32.mrf.mxu0
  %1013 = vmatprep.mubr.f32.mxu0 0.0
  %1014 = vmatmul.mubr.f32.gmra.mxu0 %v233
  %v1015 = vpop.f32.mrf.mxu0
  %v1016 = vadd.f32 %v113, %v1015
  %v1017 = vpop.f32.mrf.mxu0
  %1018 = vmatprep.mubr.f32.mxu0 0.0
  %1019 = vmatmul.mubr.f32.gmra.mxu0 %v236
  %v1020 = vpop.f32.mrf.mxu0
  %v1021 = vadd.f32 %v113, %v1020
  %v1022 = vpop.f32.mrf.mxu0
  %1023 = vmatprep.mubr.f32.mxu0 0.0
  %1024 = vmatmul.mubr.f32.gmra.mxu0 %v239
  %v1025 = vpop.f32.mrf.mxu0
  %v1026 = vadd.f32 %v113, %v1025
  %v1027 = vpop.f32.mrf.mxu0
  %1028 = vmatprep.mubr.f32.mxu0 0.0
  %1029 = vmatmul.mubr.f32.gmra.mxu0 %v242
  %v1030 = vpop.f32.mrf.mxu0
  %v1031 = vadd.f32 %v113, %v1030
  %v1032 = vpop.f32.mrf.mxu0
  %1033 = vmatprep.mubr.f32.mxu0 0.0
  %1034 = vmatmul.mubr.f32.gmra.mxu0 %v245
  %v1035 = vpop.f32.mrf.mxu0
  %v1036 = vadd.f32 %v113, %v1035
  %v1037 = vpop.f32.mrf.mxu0
  %1038 = vmatprep.mubr.f32.mxu0 0.0
  %1039 = vmatmul.mubr.f32.gmra.mxu0 %v248
  %v1040 = vpop.f32.mrf.mxu0
  %v1041 = vadd.f32 %v113, %v1040
  %v1042 = vpop.f32.mrf.mxu0
  %1043 = vmatprep.mubr.f32.mxu0 0.0
  %1044 = vmatmul.mubr.f32.gmra.mxu0 %v251
  %v1045 = vpop.f32.mrf.mxu0
  %v1046 = vadd.f32 %v113, %v1045
  %v1047 = vpop.f32.mrf.mxu0
  %1048 = vmatprep.mubr.f32.mxu0 0.0
  %1049 = vmatmul.mubr.f32.gmra.mxu0 %v254
  %v1050 = vpop.f32.mrf.mxu0
  %v1051 = vadd.f32 %v113, %v1050
  %v1052 = vpop.f32.mrf.mxu0
  %1053 = vmatprep.mubr.f32.mxu0 0.0
  %1054 = vmatmul.mubr.f32.gmra.mxu0 %v257
  %v1055 = vpop.f32.mrf.mxu0
  %v1056 = vadd.f32 %v113, %v1055
  %v1057 = vpop.f32.mrf.mxu0
  %1058 = vmatprep.mubr.f32.mxu0 0.0
  %1059 = vmatmul.mubr.f32.gmra.mxu0 %v260
  %v1060 = vpop.f32.mrf.mxu0
  %v1061 = vadd.f32 %v113, %v1060
  %v1062 = vpop.f32.mrf.mxu0
  %1063 = vmatprep.mubr.f32.mxu0 0.0
  %1064 = vmatmul.mubr.f32.gmra.mxu0 %v263
  %v1065 = vpop.f32.mrf.mxu0
  %v1066 = vadd.f32 %v113, %v1065
  %v1067 = vpop.f32.mrf.mxu0
  %1068 = vmatprep.mubr.f32.mxu0 0.0
  %1069 = vmatmul.mubr.f32.gmra.mxu0 %v266
  %v1070 = vpop.f32.mrf.mxu0
  %v1071 = vadd.f32 %v113, %v1070
  %v1072 = vpop.f32.mrf.mxu0
  %1073 = vmatprep.mubr.f32.mxu0 0.0
  %1074 = vmatmul.mubr.f32.gmra.mxu0 %v269
  %v1075 = vpop.f32.mrf.mxu0
  %v1076 = vadd.f32 %v113, %v1075
  %v1077 = vpop.f32.mrf.mxu0
  %1078 = vmatprep.mubr.f32.mxu0 0.0
  %1079 = vmatmul.mubr.f32.gmra.mxu0 %v272
  %v1080 = vpop.f32.mrf.mxu0
  %v1081 = vadd.f32 %v113, %v1080
  %v1082 = vpop.f32.mrf.mxu0
  %1083 = vmatprep.mubr.f32.mxu0 0.0
  %1084 = vmatmul.mubr.f32.gmra.mxu0 %v275
  %v1085 = vpop.f32.mrf.mxu0
  %v1086 = vadd.f32 %v113, %v1085
  %v1087 = vpop.f32.mrf.mxu0
  %1088 = vmatprep.mubr.f32.mxu0 0.0
  %1089 = vmatmul.mubr.f32.gmra.mxu0 %v278
  %v1090 = vpop.f32.mrf.mxu0
  %v1091 = vadd.f32 %v113, %v1090
  %v1092 = vpop.f32.mrf.mxu0
  %1093 = vmatprep.mubr.f32.mxu0 0.0
  %1094 = vmatmul.mubr.f32.gmra.mxu0 %v281
  %v1095 = vpop.f32.mrf.mxu0
  %v1096 = vadd.f32 %v113, %v1095
  %v1097 = vpop.f32.mrf.mxu0
  %1098 = vmatprep.mubr.f32.mxu0 0.0
  %1099 = vmatmul.mubr.f32.gmra.mxu0 %v284
  %v1100 = vpop.f32.mrf.mxu0
  %v1101 = vadd.f32 %v113, %v1100
  %v1102 = vpop.f32.mrf.mxu0
  %1103 = vmatprep.mubr.f32.mxu0 0.0
  %1104 = vmatmul.mubr.f32.gmra.mxu0 %v287
  %v1105 = vpop.f32.mrf.mxu0
  %v1106 = vadd.f32 %v113, %v1105
  %v1107 = vpop.f32.mrf.mxu0
  %1108 = vmatprep.mubr.f32.mxu0 0.0
  %1109 = vmatmul.mubr.f32.gmra.mxu0 %v290
  %v1110 = vpop.f32.mrf.mxu0
  %v1111 = vadd.f32 %v113, %v1110
  %v1112 = vpop.f32.mrf.mxu0
  %1113 = vmatprep.mubr.f32.mxu0 0.0
  %1114 = vmatmul.mubr.f32.gmra.mxu0 %v293
  %v1115 = vpop.f32.mrf.mxu0
  %v1116 = vadd.f32 %v113, %v1115
  %v1117 = vpop.f32.mrf.mxu0
  %1118 = vmatprep.mubr.f32.mxu0 0.0
  %1119 = vmatmul.mubr.f32.gmra.mxu0 %v296
  %v1120 = vpop.f32.mrf.mxu0
  %v1121 = vadd.f32 %v113, %v1120
  %v1122 = vpop.f32.mrf.mxu0
  %1123 = vmatprep.mubr.f32.mxu0 0.0
  %1124 = vmatmul.mubr.f32.gmra.mxu0 %v299
  %v1125 = vpop.f32.mrf.mxu0
  %v1126 = vadd.f32 %v113, %v1125
  %v1127 = vpop.f32.mrf.mxu0
  %1128 = vmatprep.mubr.f32.mxu0 0.0
  %1129 = vmatmul.mubr.f32.gmra.mxu0 %v302
  %v1130 = vpop.f32.mrf.mxu0
  %v1131 = vadd.f32 %v113, %v1130
  %v1132 = vpop.f32.mrf.mxu0
  %1133 = vmatprep.mubr.f32.mxu0 0.0
  %1134 = vmatmul.mubr.f32.gmra.mxu0 %v305
  %v1135 = vpop.f32.mrf.mxu0
  %v1136 = vadd.f32 %v113, %v1135
  %v1137 = vpop.f32.mrf.mxu0
  %1138 = vmatprep.mubr.f32.mxu0 0.0
  %1139 = vmatmul.mubr.f32.gmra.mxu0 %v308
  %v1140 = vpop.f32.mrf.mxu0
  %v1141 = vadd.f32 %v113, %v1140
  %v1142 = vpop.f32.mrf.mxu0
  %1143 = vdwg.mxu0
  %v1144 = vmul.f32 %v377, %v379
  %v1145 = vmul.f32 %v383, %v385
  %v1146 = vmul.f32 %v389, %v391
  %v1147 = vmul.f32 %v395, %v397
  %v1148 = vmul.f32 %v401, %v403
  %v1149 = vmul.f32 %v407, %v409
  %v1150 = vmul.f32 %v413, %v415
  %v1151 = vmul.f32 %v419, %v421
  %v1152 = vmul.f32 %v425, %v427
  %v1153 = vmul.f32 %v431, %v433
  %v1154 = vmul.f32 %v437, %v439
  %v1155 = vmul.f32 %v443, %v445
  %v1156 = vmul.f32 %v449, %v451
  %v1157 = vmul.f32 %v455, %v457
  %v1158 = vmul.f32 %v461, %v463
  %v1159 = vmul.f32 %v467, %v469
  %v1160 = vmul.f32 %v473, %v475
  %v1161 = vmul.f32 %v479, %v481
  %v1162 = vmul.f32 %v485, %v487
  %v1163 = vmul.f32 %v491, %v493
  %v1164 = vmul.f32 %v497, %v499
  %v1165 = vmul.f32 %v503, %v505
  %v1166 = vmul.f32 %v509, %v511
  %v1167 = vmul.f32 %v515, %v517
  %v1168 = vmul.f32 %v521, %v523
  %v1169 = vmul.f32 %v527, %v529
  %v1170 = vmul.f32 %v533, %v535
  %v1171 = vmul.f32 %v539, %v541
  %v1172 = vmul.f32 %v545, %v547
  %v1173 = vmul.f32 %v551, %v553
  %v1174 = vmul.f32 %v557, %v559
  %v1175 = vmul.f32 %v563, %v565
  %v1176 = vmul.f32 %v569, %v571
  %v1177 = vmul.f32 %v575, %v577
  %v1178 = vmul.f32 %v581, %v583
  %v1179 = vmul.f32 %v587, %v589
  %v1180 = vmul.f32 %v593, %v595
  %v1181 = vmul.f32 %v599, %v601
  %v1182 = vmul.f32 %v605, %v607
  %v1183 = vmul.f32 %v611, %v613
  %v1184 = vmul.f32 %v617, %v619
  %v1185 = vmul.f32 %v623, %v625
  %v1186 = vmul.f32 %v629, %v631
  %v1187 = vmul.f32 %v635, %v637
  %v1188 = vmul.f32 %v641, %v643
  %v1189 = vmul.f32 %v647, %v649
  %v1190 = vmul.f32 %v653, %v655
  %v1191 = vmul.f32 %v659, %v661
  %v1192 = vmul.f32 %v665, %v667
  %v1193 = vmul.f32 %v671, %v673
  %v1194 = vmul.f32 %v677, %v679
  %v1195 = vmul.f32 %v683, %v685
  %v1196 = vmul.f32 %v689, %v691
  %v1197 = vmul.f32 %v695, %v697
  %v1198 = vmul.f32 %v701, %v703
  %v1199 = vmul.f32 %v707, %v709
  %v1200 = vmul.f32 %v713, %v715
  %v1201 = vmul.f32 %v719, %v721
  %v1202 = vmul.f32 %v725, %v727
  %v1203 = vmul.f32 %v731, %v733
  %v1204 = vmul.f32 %v737, %v739
  %v1205 = vmul.f32 %v743, %v745
  %v1206 = vmul.f32 %v749, %v751
  %v1207 = vmul.f32 %v755, %v757
  %1208 = vadd.xlane.f32.xlu0 %v1144
  %v1209 = vpop.xlane.xlu0 %1208
  %1210 = vadd.xlane.f32.xlu0 %v1145
  %v1211 = vpop.xlane.xlu0 %1210
  %1212 = vadd.xlane.f32.xlu0 %v1146
  %v1213 = vpop.xlane.xlu0 %1212
  %1214 = vadd.xlane.f32.xlu0 %v1147
  %v1215 = vpop.xlane.xlu0 %1214
  %1216 = vadd.xlane.f32.xlu0 %v1148
  %v1217 = vpop.xlane.xlu0 %1216
  %1218 = vadd.xlane.f32.xlu0 %v1149
  %v1219 = vpop.xlane.xlu0 %1218
  %1220 = vadd.xlane.f32.xlu0 %v1150
  %v1221 = vpop.xlane.xlu0 %1220
  %1222 = vadd.xlane.f32.xlu0 %v1151
  %v1223 = vpop.xlane.xlu0 %1222
  %1224 = vadd.xlane.f32.xlu0 %v1152
  %v1225 = vpop.xlane.xlu0 %1224
  %1226 = vadd.xlane.f32.xlu0 %v1153
  %v1227 = vpop.xlane.xlu0 %1226
  %1228 = vadd.xlane.f32.xlu0 %v1154
  %v1229 = vpop.xlane.xlu0 %1228
  %1230 = vadd.xlane.f32.xlu0 %v1155
  %v1231 = vpop.xlane.xlu0 %1230
  %1232 = vadd.xlane.f32.xlu0 %v1156
  %v1233 = vpop.xlane.xlu0 %1232
  %1234 = vadd.xlane.f32.xlu0 %v1157
  %v1235 = vpop.xlane.xlu0 %1234
  %1236 = vadd.xlane.f32.xlu0 %v1158
  %v1237 = vpop.xlane.xlu0 %1236
  %1238 = vadd.xlane.f32.xlu0 %v1159
  %v1239 = vpop.xlane.xlu0 %1238
  %1240 = vadd.xlane.f32.xlu0 %v1160
  %v1241 = vpop.xlane.xlu0 %1240
  %1242 = vadd.xlane.f32.xlu0 %v1161
  %v1243 = vpop.xlane.xlu0 %1242
  %1244 = vadd.xlane.f32.xlu0 %v1162
  %v1245 = vpop.xlane.xlu0 %1244
  %1246 = vadd.xlane.f32.xlu0 %v1163
  %v1247 = vpop.xlane.xlu0 %1246
  %1248 = vadd.xlane.f32.xlu0 %v1164
  %v1249 = vpop.xlane.xlu0 %1248
  %1250 = vadd.xlane.f32.xlu0 %v1165
  %v1251 = vpop.xlane.xlu0 %1250
  %1252 = vadd.xlane.f32.xlu0 %v1166
  %v1253 = vpop.xlane.xlu0 %1252
  %1254 = vadd.xlane.f32.xlu0 %v1167
  %v1255 = vpop.xlane.xlu0 %1254
  %1256 = vadd.xlane.f32.xlu0 %v1168
  %v1257 = vpop.xlane.xlu0 %1256
  %1258 = vadd.xlane.f32.xlu0 %v1169
  %v1259 = vpop.xlane.xlu0 %1258
  %1260 = vadd.xlane.f32.xlu0 %v1170
  %v1261 = vpop.xlane.xlu0 %1260
  %1262 = vadd.xlane.f32.xlu0 %v1171
  %v1263 = vpop.xlane.xlu0 %1262
  %1264 = vadd.xlane.f32.xlu0 %v1172
  %v1265 = vpop.xlane.xlu0 %1264
  %1266 = vadd.xlane.f32.xlu0 %v1173
  %v1267 = vpop.xlane.xlu0 %1266
  %1268 = vadd.xlane.f32.xlu0 %v1174
  %v1269 = vpop.xlane.xlu0 %1268
  %1270 = vadd.xlane.f32.xlu0 %v1175
  %v1271 = vpop.xlane.xlu0 %1270
  %1272 = vadd.xlane.f32.xlu0 %v1176
  %v1273 = vpop.xlane.xlu0 %1272
  %1274 = vadd.xlane.f32.xlu0 %v1177
  %v1275 = vpop.xlane.xlu0 %1274
  %1276 = vadd.xlane.f32.xlu0 %v1178
  %v1277 = vpop.xlane.xlu0 %1276
  %1278 = vadd.xlane.f32.xlu0 %v1179
  %v1279 = vpop.xlane.xlu0 %1278
  %1280 = vadd.xlane.f32.xlu0 %v1180
  %v1281 = vpop.xlane.xlu0 %1280
  %1282 = vadd.xlane.f32.xlu0 %v1181
  %v1283 = vpop.xlane.xlu0 %1282
  %1284 = vadd.xlane.f32.xlu0 %v1182
  %v1285 = vpop.xlane.xlu0 %1284
  %1286 = vadd.xlane.f32.xlu0 %v1183
  %v1287 = vpop.xlane.xlu0 %1286
  %1288 = vadd.xlane.f32.xlu0 %v1184
  %v1289 = vpop.xlane.xlu0 %1288
  %1290 = vadd.xlane.f32.xlu0 %v1185
  %v1291 = vpop.xlane.xlu0 %1290
  %1292 = vadd.xlane.f32.xlu0 %v1186
  %v1293 = vpop.xlane.xlu0 %1292
  %1294 = vadd.xlane.f32.xlu0 %v1187
  %v1295 = vpop.xlane.xlu0 %1294
  %1296 = vadd.xlane.f32.xlu0 %v1188
  %v1297 = vpop.xlane.xlu0 %1296
  %1298 = vadd.xlane.f32.xlu0 %v1189
  %v1299 = vpop.xlane.xlu0 %1298
  %1300 = vadd.xlane.f32.xlu0 %v1190
  %v1301 = vpop.xlane.xlu0 %1300
  %1302 = vadd.xlane.f32.xlu0 %v1191
  %v1303 = vpop.xlane.xlu0 %1302
  %1304 = vadd.xlane.f32.xlu0 %v1192
  %v1305 = vpop.xlane.xlu0 %1304
  %1306 = vadd.xlane.f32.xlu0 %v1193
  %v1307 = vpop.xlane.xlu0 %1306
  %1308 = vadd.xlane.f32.xlu0 %v1194
  %v1309 = vpop.xlane.xlu0 %1308
  %1310 = vadd.xlane.f32.xlu0 %v1195
  %v1311 = vpop.xlane.xlu0 %1310
  %1312 = vadd.xlane.f32.xlu0 %v1196
  %v1313 = vpop.xlane.xlu0 %1312
  %1314 = vadd.xlane.f32.xlu0 %v1197
  %v1315 = vpop.xlane.xlu0 %1314
  %1316 = vadd.xlane.f32.xlu0 %v1198
  %v1317 = vpop.xlane.xlu0 %1316
  %1318 = vadd.xlane.f32.xlu0 %v1199
  %v1319 = vpop.xlane.xlu0 %1318
  %1320 = vadd.xlane.f32.xlu0 %v1200
  %v1321 = vpop.xlane.xlu0 %1320
  %1322 = vadd.xlane.f32.xlu0 %v1201
  %v1323 = vpop.xlane.xlu0 %1322
  %1324 = vadd.xlane.f32.xlu0 %v1202
  %v1325 = vpop.xlane.xlu0 %1324
  %1326 = vadd.xlane.f32.xlu0 %v1203
  %v1327 = vpop.xlane.xlu0 %1326
  %1328 = vadd.xlane.f32.xlu0 %v1204
  %v1329 = vpop.xlane.xlu0 %1328
  %1330 = vadd.xlane.f32.xlu0 %v1205
  %v1331 = vpop.xlane.xlu0 %1330
  %1332 = vadd.xlane.f32.xlu0 %v1206
  %v1333 = vpop.xlane.xlu0 %1332
  %1334 = vadd.xlane.f32.xlu0 %v1207
  %v1335 = vpop.xlane.xlu0 %1334
  %v1400 = vlaneseq
  %v1401 = vand.u32 %v1400, 127
  %v1402 = vlaneseq
  %v1403 = vshrl.u32 %v1402, 7
  %v1404 = vsub.s32 %v1401, %v1403
  %v1405 = vrot.slane %v1209, %v1404
  %v1406 = vadd.s32 %v1401, 4294967288
  %v1407 = vlaneseq
  %v1408 = vshrl.u32 %v1407, 7
  %v1409 = vsub.s32 %v1406, %v1408
  %v1410 = vrot.slane %v1211, %v1409
  %vm1411 = vcmask 130112
  %v1412 = vsel %vm1411, %v1410, %v1405
  %v1413 = vlaneseq
  %v1414 = vshrl.u32 %v1413, 7
  %v1415 = vsub.s32 %v1401, %v1414
  %v1416 = vrot.slane %v1213, %v1415
  %v1417 = vlaneseq
  %v1418 = vshrl.u32 %v1417, 7
  %v1419 = vsub.s32 %v1406, %v1418
  %v1420 = vrot.slane %v1215, %v1419
  %v1421 = vsel %vm1411, %v1420, %v1416
  %v1422 = vlaneseq
  %v1423 = vshrl.u32 %v1422, 7
  %v1424 = vsub.s32 %v1401, %v1423
  %v1425 = vrot.slane %v1217, %v1424
  %v1426 = vlaneseq
  %v1427 = vshrl.u32 %v1426, 7
  %v1428 = vsub.s32 %v1406, %v1427
  %v1429 = vrot.slane %v1219, %v1428
  %v1430 = vsel %vm1411, %v1429, %v1425
  %v1431 = vlaneseq
  %v1432 = vshrl.u32 %v1431, 7
  %v1433 = vsub.s32 %v1401, %v1432
  %v1434 = vrot.slane %v1221, %v1433
  %v1435 = vlaneseq
  %v1436 = vshrl.u32 %v1435, 7
  %v1437 = vsub.s32 %v1406, %v1436
  %v1438 = vrot.slane %v1223, %v1437
  %v1439 = vsel %vm1411, %v1438, %v1434
  %v1440 = vlaneseq
  %v1441 = vshrl.u32 %v1440, 7
  %v1442 = vsub.s32 %v1401, %v1441
  %v1443 = vrot.slane %v1225, %v1442
  %v1444 = vlaneseq
  %v1445 = vshrl.u32 %v1444, 7
  %v1446 = vsub.s32 %v1406, %v1445
  %v1447 = vrot.slane %v1227, %v1446
  %v1448 = vsel %vm1411, %v1447, %v1443
  %v1449 = vlaneseq
  %v1450 = vshrl.u32 %v1449, 7
  %v1451 = vsub.s32 %v1401, %v1450
  %v1452 = vrot.slane %v1229, %v1451
  %v1453 = vlaneseq
  %v1454 = vshrl.u32 %v1453, 7
  %v1455 = vsub.s32 %v1406, %v1454
  %v1456 = vrot.slane %v1231, %v1455
  %v1457 = vsel %vm1411, %v1456, %v1452
  %v1458 = vlaneseq
  %v1459 = vshrl.u32 %v1458, 7
  %v1460 = vsub.s32 %v1401, %v1459
  %v1461 = vrot.slane %v1233, %v1460
  %v1462 = vlaneseq
  %v1463 = vshrl.u32 %v1462, 7
  %v1464 = vsub.s32 %v1406, %v1463
  %v1465 = vrot.slane %v1235, %v1464
  %v1466 = vsel %vm1411, %v1465, %v1461
  %v1467 = vlaneseq
  %v1468 = vshrl.u32 %v1467, 7
  %v1469 = vsub.s32 %v1401, %v1468
  %v1470 = vrot.slane %v1237, %v1469
  %v1471 = vlaneseq
  %v1472 = vshrl.u32 %v1471, 7
  %v1473 = vsub.s32 %v1406, %v1472
  %v1474 = vrot.slane %v1239, %v1473
  %v1475 = vsel %vm1411, %v1474, %v1470
  %v1476 = vlaneseq
  %v1477 = vshrl.u32 %v1476, 7
  %v1478 = vsub.s32 %v1401, %v1477
  %v1479 = vrot.slane %v1241, %v1478
  %v1480 = vlaneseq
  %v1481 = vshrl.u32 %v1480, 7
  %v1482 = vsub.s32 %v1406, %v1481
  %v1483 = vrot.slane %v1243, %v1482
  %v1484 = vsel %vm1411, %v1483, %v1479
  %v1485 = vlaneseq
  %v1486 = vshrl.u32 %v1485, 7
  %v1487 = vsub.s32 %v1401, %v1486
  %v1488 = vrot.slane %v1245, %v1487
  %v1489 = vlaneseq
  %v1490 = vshrl.u32 %v1489, 7
  %v1491 = vsub.s32 %v1406, %v1490
  %v1492 = vrot.slane %v1247, %v1491
  %v1493 = vsel %vm1411, %v1492, %v1488
  %v1494 = vlaneseq
  %v1495 = vshrl.u32 %v1494, 7
  %v1496 = vsub.s32 %v1401, %v1495
  %v1497 = vrot.slane %v1249, %v1496
  %v1498 = vlaneseq
  %v1499 = vshrl.u32 %v1498, 7
  %v1500 = vsub.s32 %v1406, %v1499
  %v1501 = vrot.slane %v1251, %v1500
  %v1502 = vsel %vm1411, %v1501, %v1497
  %v1503 = vlaneseq
  %v1504 = vshrl.u32 %v1503, 7
  %v1505 = vsub.s32 %v1401, %v1504
  %v1506 = vrot.slane %v1253, %v1505
  %v1507 = vlaneseq
  %v1508 = vshrl.u32 %v1507, 7
  %v1509 = vsub.s32 %v1406, %v1508
  %v1510 = vrot.slane %v1255, %v1509
  %v1511 = vsel %vm1411, %v1510, %v1506
  %v1512 = vlaneseq
  %v1513 = vshrl.u32 %v1512, 7
  %v1514 = vsub.s32 %v1401, %v1513
  %v1515 = vrot.slane %v1257, %v1514
  %v1516 = vlaneseq
  %v1517 = vshrl.u32 %v1516, 7
  %v1518 = vsub.s32 %v1406, %v1517
  %v1519 = vrot.slane %v1259, %v1518
  %v1520 = vsel %vm1411, %v1519, %v1515
  %v1521 = vlaneseq
  %v1522 = vshrl.u32 %v1521, 7
  %v1523 = vsub.s32 %v1401, %v1522
  %v1524 = vrot.slane %v1261, %v1523
  %v1525 = vlaneseq
  %v1526 = vshrl.u32 %v1525, 7
  %v1527 = vsub.s32 %v1406, %v1526
  %v1528 = vrot.slane %v1263, %v1527
  %v1529 = vsel %vm1411, %v1528, %v1524
  %v1530 = vlaneseq
  %v1531 = vshrl.u32 %v1530, 7
  %v1532 = vsub.s32 %v1401, %v1531
  %v1533 = vrot.slane %v1265, %v1532
  %v1534 = vlaneseq
  %v1535 = vshrl.u32 %v1534, 7
  %v1536 = vsub.s32 %v1406, %v1535
  %v1537 = vrot.slane %v1267, %v1536
  %v1538 = vsel %vm1411, %v1537, %v1533
  %v1539 = vlaneseq
  %v1540 = vshrl.u32 %v1539, 7
  %v1541 = vsub.s32 %v1401, %v1540
  %v1542 = vrot.slane %v1269, %v1541
  %v1543 = vlaneseq
  %v1544 = vshrl.u32 %v1543, 7
  %v1545 = vsub.s32 %v1406, %v1544
  %v1546 = vrot.slane %v1271, %v1545
  %v1547 = vsel %vm1411, %v1546, %v1542
  %v1548 = vlaneseq
  %v1549 = vshrl.u32 %v1548, 7
  %v1550 = vsub.s32 %v1401, %v1549
  %v1551 = vrot.slane %v1273, %v1550
  %v1552 = vlaneseq
  %v1553 = vshrl.u32 %v1552, 7
  %v1554 = vsub.s32 %v1406, %v1553
  %v1555 = vrot.slane %v1275, %v1554
  %v1556 = vsel %vm1411, %v1555, %v1551
  %v1557 = vlaneseq
  %v1558 = vshrl.u32 %v1557, 7
  %v1559 = vsub.s32 %v1401, %v1558
  %v1560 = vrot.slane %v1277, %v1559
  %v1561 = vlaneseq
  %v1562 = vshrl.u32 %v1561, 7
  %v1563 = vsub.s32 %v1406, %v1562
  %v1564 = vrot.slane %v1279, %v1563
  %v1565 = vsel %vm1411, %v1564, %v1560
  %v1566 = vlaneseq
  %v1567 = vshrl.u32 %v1566, 7
  %v1568 = vsub.s32 %v1401, %v1567
  %v1569 = vrot.slane %v1281, %v1568
  %v1570 = vlaneseq
  %v1571 = vshrl.u32 %v1570, 7
  %v1572 = vsub.s32 %v1406, %v1571
  %v1573 = vrot.slane %v1283, %v1572
  %v1574 = vsel %vm1411, %v1573, %v1569
  %v1575 = vlaneseq
  %v1576 = vshrl.u32 %v1575, 7
  %v1577 = vsub.s32 %v1401, %v1576
  %v1578 = vrot.slane %v1285, %v1577
  %v1579 = vlaneseq
  %v1580 = vshrl.u32 %v1579, 7
  %v1581 = vsub.s32 %v1406, %v1580
  %v1582 = vrot.slane %v1287, %v1581
  %v1583 = vsel %vm1411, %v1582, %v1578
  %v1584 = vlaneseq
  %v1585 = vshrl.u32 %v1584, 7
  %v1586 = vsub.s32 %v1401, %v1585
  %v1587 = vrot.slane %v1289, %v1586
  %v1588 = vlaneseq
  %v1589 = vshrl.u32 %v1588, 7
  %v1590 = vsub.s32 %v1406, %v1589
  %v1591 = vrot.slane %v1291, %v1590
  %v1592 = vsel %vm1411, %v1591, %v1587
  %v1593 = vlaneseq
  %v1594 = vshrl.u32 %v1593, 7
  %v1595 = vsub.s32 %v1401, %v1594
  %v1596 = vrot.slane %v1293, %v1595
  %v1597 = vlaneseq
  %v1598 = vshrl.u32 %v1597, 7
  %v1599 = vsub.s32 %v1406, %v1598
  %v1600 = vrot.slane %v1295, %v1599
  %v1601 = vsel %vm1411, %v1600, %v1596
  %v1602 = vlaneseq
  %v1603 = vshrl.u32 %v1602, 7
  %v1604 = vsub.s32 %v1401, %v1603
  %v1605 = vrot.slane %v1297, %v1604
  %v1606 = vlaneseq
  %v1607 = vshrl.u32 %v1606, 7
  %v1608 = vsub.s32 %v1406, %v1607
  %v1609 = vrot.slane %v1299, %v1608
  %v1610 = vsel %vm1411, %v1609, %v1605
  %v1611 = vlaneseq
  %v1612 = vshrl.u32 %v1611, 7
  %v1613 = vsub.s32 %v1401, %v1612
  %v1614 = vrot.slane %v1301, %v1613
  %v1615 = vlaneseq
  %v1616 = vshrl.u32 %v1615, 7
  %v1617 = vsub.s32 %v1406, %v1616
  %v1618 = vrot.slane %v1303, %v1617
  %v1619 = vsel %vm1411, %v1618, %v1614
  %v1620 = vlaneseq
  %v1621 = vshrl.u32 %v1620, 7
  %v1622 = vsub.s32 %v1401, %v1621
  %v1623 = vrot.slane %v1305, %v1622
  %v1624 = vlaneseq
  %v1625 = vshrl.u32 %v1624, 7
  %v1626 = vsub.s32 %v1406, %v1625
  %v1627 = vrot.slane %v1307, %v1626
  %v1628 = vsel %vm1411, %v1627, %v1623
  %v1629 = vlaneseq
  %v1630 = vshrl.u32 %v1629, 7
  %v1631 = vsub.s32 %v1401, %v1630
  %v1632 = vrot.slane %v1309, %v1631
  %v1633 = vlaneseq
  %v1634 = vshrl.u32 %v1633, 7
  %v1635 = vsub.s32 %v1406, %v1634
  %v1636 = vrot.slane %v1311, %v1635
  %v1637 = vsel %vm1411, %v1636, %v1632
  %v1638 = vlaneseq
  %v1639 = vshrl.u32 %v1638, 7
  %v1640 = vsub.s32 %v1401, %v1639
  %v1641 = vrot.slane %v1313, %v1640
  %v1642 = vlaneseq
  %v1643 = vshrl.u32 %v1642, 7
  %v1644 = vsub.s32 %v1406, %v1643
  %v1645 = vrot.slane %v1315, %v1644
  %v1646 = vsel %vm1411, %v1645, %v1641
  %v1647 = vlaneseq
  %v1648 = vshrl.u32 %v1647, 7
  %v1649 = vsub.s32 %v1401, %v1648
  %v1650 = vrot.slane %v1317, %v1649
  %v1651 = vlaneseq
  %v1652 = vshrl.u32 %v1651, 7
  %v1653 = vsub.s32 %v1406, %v1652
  %v1654 = vrot.slane %v1319, %v1653
  %v1655 = vsel %vm1411, %v1654, %v1650
  %v1656 = vlaneseq
  %v1657 = vshrl.u32 %v1656, 7
  %v1658 = vsub.s32 %v1401, %v1657
  %v1659 = vrot.slane %v1321, %v1658
  %v1660 = vlaneseq
  %v1661 = vshrl.u32 %v1660, 7
  %v1662 = vsub.s32 %v1406, %v1661
  %v1663 = vrot.slane %v1323, %v1662
  %v1664 = vsel %vm1411, %v1663, %v1659
  %v1665 = vlaneseq
  %v1666 = vshrl.u32 %v1665, 7
  %v1667 = vsub.s32 %v1401, %v1666
  %v1668 = vrot.slane %v1325, %v1667
  %v1669 = vlaneseq
  %v1670 = vshrl.u32 %v1669, 7
  %v1671 = vsub.s32 %v1406, %v1670
  %v1672 = vrot.slane %v1327, %v1671
  %v1673 = vsel %vm1411, %v1672, %v1668
  %v1674 = vlaneseq
  %v1675 = vshrl.u32 %v1674, 7
  %v1676 = vsub.s32 %v1401, %v1675
  %v1677 = vrot.slane %v1329, %v1676
  %v1678 = vlaneseq
  %v1679 = vshrl.u32 %v1678, 7
  %v1680 = vsub.s32 %v1406, %v1679
  %v1681 = vrot.slane %v1331, %v1680
  %v1682 = vsel %vm1411, %v1681, %v1677
  %v1683 = vlaneseq
  %v1684 = vshrl.u32 %v1683, 7
  %v1685 = vsub.s32 %v1401, %v1684
  %v1686 = vrot.slane %v1333, %v1685
  %v1687 = vlaneseq
  %v1688 = vshrl.u32 %v1687, 7
  %v1689 = vsub.s32 %v1406, %v1688
  %v1690 = vrot.slane %v1335, %v1689
  %v1691 = vsel %vm1411, %v1690, %v1686
  %vm1692 = vcmask 1041409
  %v1693 = vsel %vm1692, %v1421, %v1412
  %vm1694 = vcmask 1042434
  %v1695 = vsel %vm1694, %v1430, %v1693
  %vm1696 = vcmask 1043459
  %v1697 = vsel %vm1696, %v1439, %v1695
  %vm1698 = vcmask 1044484
  %v1699 = vsel %vm1698, %v1448, %v1697
  %vm1700 = vcmask 1045509
  %v1701 = vsel %vm1700, %v1457, %v1699
  %vm1702 = vcmask 1046534
  %v1703 = vsel %vm1702, %v1466, %v1701
  %vm1704 = vcmask 1047559
  %v1705 = vsel %vm1704, %v1475, %v1703
  %v1706 = vsel %vm1692, %v1493, %v1484
  %v1707 = vsel %vm1694, %v1502, %v1706
  %v1708 = vsel %vm1696, %v1511, %v1707
  %v1709 = vsel %vm1698, %v1520, %v1708
  %v1710 = vsel %vm1700, %v1529, %v1709
  %v1711 = vsel %vm1702, %v1538, %v1710
  %v1712 = vsel %vm1704, %v1547, %v1711
  %v1713 = vsel %vm1692, %v1565, %v1556
  %v1714 = vsel %vm1694, %v1574, %v1713
  %v1715 = vsel %vm1696, %v1583, %v1714
  %v1716 = vsel %vm1698, %v1592, %v1715
  %v1717 = vsel %vm1700, %v1601, %v1716
  %v1718 = vsel %vm1702, %v1610, %v1717
  %v1719 = vsel %vm1704, %v1619, %v1718
  %v1720 = vsel %vm1692, %v1637, %v1628
  %v1721 = vsel %vm1694, %v1646, %v1720
  %v1722 = vsel %vm1696, %v1655, %v1721
  %v1723 = vsel %vm1698, %v1664, %v1722
  %v1724 = vsel %vm1700, %v1673, %v1723
  %v1725 = vsel %vm1702, %v1682, %v1724
  %v1726 = vsel %vm1704, %v1691, %v1725
  %vm1731 = vcmask 130048
  %v1732 = vsel %vm1731, %v1705, -inf
  %1733 = vmax.xlane.f32.xlu0 %v1732
  %v1734 = vpop.xlane.xlu0 %1733
  %v1735 = vsel %vm1731, %v1712, -inf
  %1736 = vmax.xlane.f32.xlu0 %v1735
  %v1737 = vpop.xlane.xlu0 %1736
  %v1738 = vsel %vm1731, %v1719, -inf
  %1739 = vmax.xlane.f32.xlu0 %v1738
  %v1740 = vpop.xlane.xlu0 %1739
  %v1741 = vsel %vm1731, %v1726, -inf
  %1742 = vmax.xlane.f32.xlu0 %v1741
  %v1743 = vpop.xlane.xlu0 %1742
  %v1748 = vlaneseq
  %v1749 = vshrl.u32 %v1748, 7
  %v1750 = vsub.s32 0, %v1749
  %v1751 = vrot.slane %v1734, %v1750
  %v1752 = vlaneseq
  %v1753 = vshrl.u32 %v1752, 7
  %v1754 = vsub.s32 1, %v1753
  %v1755 = vrot.slane %v1734, %v1754
  %v1756 = vlaneseq
  %v1757 = vshrl.u32 %v1756, 7
  %v1758 = vsub.s32 2, %v1757
  %v1759 = vrot.slane %v1734, %v1758
  %v1760 = vlaneseq
  %v1761 = vshrl.u32 %v1760, 7
  %v1762 = vsub.s32 3, %v1761
  %v1763 = vrot.slane %v1734, %v1762
  %v1764 = vlaneseq
  %v1765 = vshrl.u32 %v1764, 7
  %v1766 = vsub.s32 4, %v1765
  %v1767 = vrot.slane %v1734, %v1766
  %v1768 = vlaneseq
  %v1769 = vshrl.u32 %v1768, 7
  %v1770 = vsub.s32 5, %v1769
  %v1771 = vrot.slane %v1734, %v1770
  %v1772 = vlaneseq
  %v1773 = vshrl.u32 %v1772, 7
  %v1774 = vsub.s32 6, %v1773
  %v1775 = vrot.slane %v1734, %v1774
  %v1776 = vlaneseq
  %v1777 = vshrl.u32 %v1776, 7
  %v1778 = vsub.s32 7, %v1777
  %v1779 = vrot.slane %v1734, %v1778
  %v1780 = vlaneseq
  %v1781 = vshrl.u32 %v1780, 7
  %v1782 = vsub.s32 0, %v1781
  %v1783 = vrot.slane %v1737, %v1782
  %v1784 = vlaneseq
  %v1785 = vshrl.u32 %v1784, 7
  %v1786 = vsub.s32 1, %v1785
  %v1787 = vrot.slane %v1737, %v1786
  %v1788 = vlaneseq
  %v1789 = vshrl.u32 %v1788, 7
  %v1790 = vsub.s32 2, %v1789
  %v1791 = vrot.slane %v1737, %v1790
  %v1792 = vlaneseq
  %v1793 = vshrl.u32 %v1792, 7
  %v1794 = vsub.s32 3, %v1793
  %v1795 = vrot.slane %v1737, %v1794
  %v1796 = vlaneseq
  %v1797 = vshrl.u32 %v1796, 7
  %v1798 = vsub.s32 4, %v1797
  %v1799 = vrot.slane %v1737, %v1798
  %v1800 = vlaneseq
  %v1801 = vshrl.u32 %v1800, 7
  %v1802 = vsub.s32 5, %v1801
  %v1803 = vrot.slane %v1737, %v1802
  %v1804 = vlaneseq
  %v1805 = vshrl.u32 %v1804, 7
  %v1806 = vsub.s32 6, %v1805
  %v1807 = vrot.slane %v1737, %v1806
  %v1808 = vlaneseq
  %v1809 = vshrl.u32 %v1808, 7
  %v1810 = vsub.s32 7, %v1809
  %v1811 = vrot.slane %v1737, %v1810
  %v1812 = vlaneseq
  %v1813 = vshrl.u32 %v1812, 7
  %v1814 = vsub.s32 0, %v1813
  %v1815 = vrot.slane %v1740, %v1814
  %v1816 = vlaneseq
  %v1817 = vshrl.u32 %v1816, 7
  %v1818 = vsub.s32 1, %v1817
  %v1819 = vrot.slane %v1740, %v1818
  %v1820 = vlaneseq
  %v1821 = vshrl.u32 %v1820, 7
  %v1822 = vsub.s32 2, %v1821
  %v1823 = vrot.slane %v1740, %v1822
  %v1824 = vlaneseq
  %v1825 = vshrl.u32 %v1824, 7
  %v1826 = vsub.s32 3, %v1825
  %v1827 = vrot.slane %v1740, %v1826
  %v1828 = vlaneseq
  %v1829 = vshrl.u32 %v1828, 7
  %v1830 = vsub.s32 4, %v1829
  %v1831 = vrot.slane %v1740, %v1830
  %v1832 = vlaneseq
  %v1833 = vshrl.u32 %v1832, 7
  %v1834 = vsub.s32 5, %v1833
  %v1835 = vrot.slane %v1740, %v1834
  %v1836 = vlaneseq
  %v1837 = vshrl.u32 %v1836, 7
  %v1838 = vsub.s32 6, %v1837
  %v1839 = vrot.slane %v1740, %v1838
  %v1840 = vlaneseq
  %v1841 = vshrl.u32 %v1840, 7
  %v1842 = vsub.s32 7, %v1841
  %v1843 = vrot.slane %v1740, %v1842
  %v1844 = vlaneseq
  %v1845 = vshrl.u32 %v1844, 7
  %v1846 = vsub.s32 0, %v1845
  %v1847 = vrot.slane %v1743, %v1846
  %v1848 = vlaneseq
  %v1849 = vshrl.u32 %v1848, 7
  %v1850 = vsub.s32 1, %v1849
  %v1851 = vrot.slane %v1743, %v1850
  %v1852 = vlaneseq
  %v1853 = vshrl.u32 %v1852, 7
  %v1854 = vsub.s32 2, %v1853
  %v1855 = vrot.slane %v1743, %v1854
  %v1856 = vlaneseq
  %v1857 = vshrl.u32 %v1856, 7
  %v1858 = vsub.s32 3, %v1857
  %v1859 = vrot.slane %v1743, %v1858
  %v1860 = vlaneseq
  %v1861 = vshrl.u32 %v1860, 7
  %v1862 = vsub.s32 4, %v1861
  %v1863 = vrot.slane %v1743, %v1862
  %v1864 = vlaneseq
  %v1865 = vshrl.u32 %v1864, 7
  %v1866 = vsub.s32 5, %v1865
  %v1867 = vrot.slane %v1743, %v1866
  %v1868 = vlaneseq
  %v1869 = vshrl.u32 %v1868, 7
  %v1870 = vsub.s32 6, %v1869
  %v1871 = vrot.slane %v1743, %v1870
  %v1872 = vlaneseq
  %v1873 = vshrl.u32 %v1872, 7
  %v1874 = vsub.s32 7, %v1873
  %v1875 = vrot.slane %v1743, %v1874
  %v1908 = vsub.f32 %v1209, %v1751
  %v1909 = vsub.f32 %v1211, %v1751
  %v1910 = vsub.f32 %v1213, %v1755
  %v1911 = vsub.f32 %v1215, %v1755
  %v1912 = vsub.f32 %v1217, %v1759
  %v1913 = vsub.f32 %v1219, %v1759
  %v1914 = vsub.f32 %v1221, %v1763
  %v1915 = vsub.f32 %v1223, %v1763
  %v1916 = vsub.f32 %v1225, %v1767
  %v1917 = vsub.f32 %v1227, %v1767
  %v1918 = vsub.f32 %v1229, %v1771
  %v1919 = vsub.f32 %v1231, %v1771
  %v1920 = vsub.f32 %v1233, %v1775
  %v1921 = vsub.f32 %v1235, %v1775
  %v1922 = vsub.f32 %v1237, %v1779
  %v1923 = vsub.f32 %v1239, %v1779
  %v1924 = vsub.f32 %v1241, %v1783
  %v1925 = vsub.f32 %v1243, %v1783
  %v1926 = vsub.f32 %v1245, %v1787
  %v1927 = vsub.f32 %v1247, %v1787
  %v1928 = vsub.f32 %v1249, %v1791
  %v1929 = vsub.f32 %v1251, %v1791
  %v1930 = vsub.f32 %v1253, %v1795
  %v1931 = vsub.f32 %v1255, %v1795
  %v1932 = vsub.f32 %v1257, %v1799
  %v1933 = vsub.f32 %v1259, %v1799
  %v1934 = vsub.f32 %v1261, %v1803
  %v1935 = vsub.f32 %v1263, %v1803
  %v1936 = vsub.f32 %v1265, %v1807
  %v1937 = vsub.f32 %v1267, %v1807
  %v1938 = vsub.f32 %v1269, %v1811
  %v1939 = vsub.f32 %v1271, %v1811
  %v1940 = vsub.f32 %v1273, %v1815
  %v1941 = vsub.f32 %v1275, %v1815
  %v1942 = vsub.f32 %v1277, %v1819
  %v1943 = vsub.f32 %v1279, %v1819
  %v1944 = vsub.f32 %v1281, %v1823
  %v1945 = vsub.f32 %v1283, %v1823
  %v1946 = vsub.f32 %v1285, %v1827
  %v1947 = vsub.f32 %v1287, %v1827
  %v1948 = vsub.f32 %v1289, %v1831
  %v1949 = vsub.f32 %v1291, %v1831
  %v1950 = vsub.f32 %v1293, %v1835
  %v1951 = vsub.f32 %v1295, %v1835
  %v1952 = vsub.f32 %v1297, %v1839
  %v1953 = vsub.f32 %v1299, %v1839
  %v1954 = vsub.f32 %v1301, %v1843
  %v1955 = vsub.f32 %v1303, %v1843
  %v1956 = vsub.f32 %v1305, %v1847
  %v1957 = vsub.f32 %v1307, %v1847
  %v1958 = vsub.f32 %v1309, %v1851
  %v1959 = vsub.f32 %v1311, %v1851
  %v1960 = vsub.f32 %v1313, %v1855
  %v1961 = vsub.f32 %v1315, %v1855
  %v1962 = vsub.f32 %v1317, %v1859
  %v1963 = vsub.f32 %v1319, %v1859
  %v1964 = vsub.f32 %v1321, %v1863
  %v1965 = vsub.f32 %v1323, %v1863
  %v1966 = vsub.f32 %v1325, %v1867
  %v1967 = vsub.f32 %v1327, %v1867
  %v1968 = vsub.f32 %v1329, %v1871
  %v1969 = vsub.f32 %v1331, %v1871
  %v1970 = vsub.f32 %v1333, %v1875
  %v1971 = vsub.f32 %v1335, %v1875
  %v1972 = vmul.f32 %v1908, 1.442695
  %v1973 = vpow.pop %v1972
  %v1974 = vmul.f32 %v1909, 1.442695
  %v1975 = vpow.pop %v1974
  %v1976 = vmul.f32 %v1910, 1.442695
  %v1977 = vpow.pop %v1976
  %v1978 = vmul.f32 %v1911, 1.442695
  %v1979 = vpow.pop %v1978
  %v1980 = vmul.f32 %v1912, 1.442695
  %v1981 = vpow.pop %v1980
  %v1982 = vmul.f32 %v1913, 1.442695
  %v1983 = vpow.pop %v1982
  %v1984 = vmul.f32 %v1914, 1.442695
  %v1985 = vpow.pop %v1984
  %v1986 = vmul.f32 %v1915, 1.442695
  %v1987 = vpow.pop %v1986
  %v1988 = vmul.f32 %v1916, 1.442695
  %v1989 = vpow.pop %v1988
  %v1990 = vmul.f32 %v1917, 1.442695
  %v1991 = vpow.pop %v1990
  %v1992 = vmul.f32 %v1918, 1.442695
  %v1993 = vpow.pop %v1992
  %v1994 = vmul.f32 %v1919, 1.442695
  %v1995 = vpow.pop %v1994
  %v1996 = vmul.f32 %v1920, 1.442695
  %v1997 = vpow.pop %v1996
  %v1998 = vmul.f32 %v1921, 1.442695
  %v1999 = vpow.pop %v1998
  %v2000 = vmul.f32 %v1922, 1.442695
  %v2001 = vpow.pop %v2000
  %v2002 = vmul.f32 %v1923, 1.442695
  %v2003 = vpow.pop %v2002
  %v2004 = vmul.f32 %v1924, 1.442695
  %v2005 = vpow.pop %v2004
  %v2006 = vmul.f32 %v1925, 1.442695
  %v2007 = vpow.pop %v2006
  %v2008 = vmul.f32 %v1926, 1.442695
  %v2009 = vpow.pop %v2008
  %v2010 = vmul.f32 %v1927, 1.442695
  %v2011 = vpow.pop %v2010
  %v2012 = vmul.f32 %v1928, 1.442695
  %v2013 = vpow.pop %v2012
  %v2014 = vmul.f32 %v1929, 1.442695
  %v2015 = vpow.pop %v2014
  %v2016 = vmul.f32 %v1930, 1.442695
  %v2017 = vpow.pop %v2016
  %v2018 = vmul.f32 %v1931, 1.442695
  %v2019 = vpow.pop %v2018
  %v2020 = vmul.f32 %v1932, 1.442695
  %v2021 = vpow.pop %v2020
  %v2022 = vmul.f32 %v1933, 1.442695
  %v2023 = vpow.pop %v2022
  %v2024 = vmul.f32 %v1934, 1.442695
  %v2025 = vpow.pop %v2024
  %v2026 = vmul.f32 %v1935, 1.442695
  %v2027 = vpow.pop %v2026
  %v2028 = vmul.f32 %v1936, 1.442695
  %v2029 = vpow.pop %v2028
  %v2030 = vmul.f32 %v1937, 1.442695
  %v2031 = vpow.pop %v2030
  %v2032 = vmul.f32 %v1938, 1.442695
  %v2033 = vpow.pop %v2032
  %v2034 = vmul.f32 %v1939, 1.442695
  %v2035 = vpow.pop %v2034
  %v2036 = vmul.f32 %v1940, 1.442695
  %v2037 = vpow.pop %v2036
  %v2038 = vmul.f32 %v1941, 1.442695
  %v2039 = vpow.pop %v2038
  %v2040 = vmul.f32 %v1942, 1.442695
  %v2041 = vpow.pop %v2040
  %v2042 = vmul.f32 %v1943, 1.442695
  %v2043 = vpow.pop %v2042
  %v2044 = vmul.f32 %v1944, 1.442695
  %v2045 = vpow.pop %v2044
  %v2046 = vmul.f32 %v1945, 1.442695
  %v2047 = vpow.pop %v2046
  %v2048 = vmul.f32 %v1946, 1.442695
  %v2049 = vpow.pop %v2048
  %v2050 = vmul.f32 %v1947, 1.442695
  %v2051 = vpow.pop %v2050
  %v2052 = vmul.f32 %v1948, 1.442695
  %v2053 = vpow.pop %v2052
  %v2054 = vmul.f32 %v1949, 1.442695
  %v2055 = vpow.pop %v2054
  %v2056 = vmul.f32 %v1950, 1.442695
  %v2057 = vpow.pop %v2056
  %v2058 = vmul.f32 %v1951, 1.442695
  %v2059 = vpow.pop %v2058
  %v2060 = vmul.f32 %v1952, 1.442695
  %v2061 = vpow.pop %v2060
  %v2062 = vmul.f32 %v1953, 1.442695
  %v2063 = vpow.pop %v2062
  %v2064 = vmul.f32 %v1954, 1.442695
  %v2065 = vpow.pop %v2064
  %v2066 = vmul.f32 %v1955, 1.442695
  %v2067 = vpow.pop %v2066
  %v2068 = vmul.f32 %v1956, 1.442695
  %v2069 = vpow.pop %v2068
  %v2070 = vmul.f32 %v1957, 1.442695
  %v2071 = vpow.pop %v2070
  %v2072 = vmul.f32 %v1958, 1.442695
  %v2073 = vpow.pop %v2072
  %v2074 = vmul.f32 %v1959, 1.442695
  %v2075 = vpow.pop %v2074
  %v2076 = vmul.f32 %v1960, 1.442695
  %v2077 = vpow.pop %v2076
  %v2078 = vmul.f32 %v1961, 1.442695
  %v2079 = vpow.pop %v2078
  %v2080 = vmul.f32 %v1962, 1.442695
  %v2081 = vpow.pop %v2080
  %v2082 = vmul.f32 %v1963, 1.442695
  %v2083 = vpow.pop %v2082
  %v2084 = vmul.f32 %v1964, 1.442695
  %v2085 = vpow.pop %v2084
  %v2086 = vmul.f32 %v1965, 1.442695
  %v2087 = vpow.pop %v2086
  %v2088 = vmul.f32 %v1966, 1.442695
  %v2089 = vpow.pop %v2088
  %v2090 = vmul.f32 %v1967, 1.442695
  %v2091 = vpow.pop %v2090
  %v2092 = vmul.f32 %v1968, 1.442695
  %v2093 = vpow.pop %v2092
  %v2094 = vmul.f32 %v1969, 1.442695
  %v2095 = vpow.pop %v2094
  %v2096 = vmul.f32 %v1970, 1.442695
  %v2097 = vpow.pop %v2096
  %v2098 = vmul.f32 %v1971, 1.442695
  %v2099 = vpow.pop %v2098
  %2164 = vset.pattern.permute.xlu0 0
  %2165 = vperm.xlu0 %2164, %v1973
  %v2166 = vpop.permute.xlu0 %2165
  %2167 = vset.pattern.permute.xlu0 0
  %2168 = vperm.xlu0 %2167, %v1975
  %v2169 = vpop.permute.xlu0 %2168
  %2170 = vset.pattern.permute.xlu0 0
  %2171 = vperm.xlu0 %2170, %v1977
  %v2172 = vpop.permute.xlu0 %2171
  %2173 = vset.pattern.permute.xlu0 0
  %2174 = vperm.xlu0 %2173, %v1979
  %v2175 = vpop.permute.xlu0 %2174
  %2176 = vset.pattern.permute.xlu0 0
  %2177 = vperm.xlu0 %2176, %v1981
  %v2178 = vpop.permute.xlu0 %2177
  %2179 = vset.pattern.permute.xlu0 0
  %2180 = vperm.xlu0 %2179, %v1983
  %v2181 = vpop.permute.xlu0 %2180
  %2182 = vset.pattern.permute.xlu0 0
  %2183 = vperm.xlu0 %2182, %v1985
  %v2184 = vpop.permute.xlu0 %2183
  %2185 = vset.pattern.permute.xlu0 0
  %2186 = vperm.xlu0 %2185, %v1987
  %v2187 = vpop.permute.xlu0 %2186
  %2188 = vset.pattern.permute.xlu0 0
  %2189 = vperm.xlu0 %2188, %v1989
  %v2190 = vpop.permute.xlu0 %2189
  %2191 = vset.pattern.permute.xlu0 0
  %2192 = vperm.xlu0 %2191, %v1991
  %v2193 = vpop.permute.xlu0 %2192
  %2194 = vset.pattern.permute.xlu0 0
  %2195 = vperm.xlu0 %2194, %v1993
  %v2196 = vpop.permute.xlu0 %2195
  %2197 = vset.pattern.permute.xlu0 0
  %2198 = vperm.xlu0 %2197, %v1995
  %v2199 = vpop.permute.xlu0 %2198
  %2200 = vset.pattern.permute.xlu0 0
  %2201 = vperm.xlu0 %2200, %v1997
  %v2202 = vpop.permute.xlu0 %2201
  %2203 = vset.pattern.permute.xlu0 0
  %2204 = vperm.xlu0 %2203, %v1999
  %v2205 = vpop.permute.xlu0 %2204
  %2206 = vset.pattern.permute.xlu0 0
  %2207 = vperm.xlu0 %2206, %v2001
  %v2208 = vpop.permute.xlu0 %2207
  %2209 = vset.pattern.permute.xlu0 0
  %2210 = vperm.xlu0 %2209, %v2003
  %v2211 = vpop.permute.xlu0 %2210
  %2212 = vset.pattern.permute.xlu0 0
  %2213 = vperm.xlu0 %2212, %v2005
  %v2214 = vpop.permute.xlu0 %2213
  %2215 = vset.pattern.permute.xlu0 0
  %2216 = vperm.xlu0 %2215, %v2007
  %v2217 = vpop.permute.xlu0 %2216
  %2218 = vset.pattern.permute.xlu0 0
  %2219 = vperm.xlu0 %2218, %v2009
  %v2220 = vpop.permute.xlu0 %2219
  %2221 = vset.pattern.permute.xlu0 0
  %2222 = vperm.xlu0 %2221, %v2011
  %v2223 = vpop.permute.xlu0 %2222
  %2224 = vset.pattern.permute.xlu0 0
  %2225 = vperm.xlu0 %2224, %v2013
  %v2226 = vpop.permute.xlu0 %2225
  %2227 = vset.pattern.permute.xlu0 0
  %2228 = vperm.xlu0 %2227, %v2015
  %v2229 = vpop.permute.xlu0 %2228
  %2230 = vset.pattern.permute.xlu0 0
  %2231 = vperm.xlu0 %2230, %v2017
  %v2232 = vpop.permute.xlu0 %2231
  %2233 = vset.pattern.permute.xlu0 0
  %2234 = vperm.xlu0 %2233, %v2019
  %v2235 = vpop.permute.xlu0 %2234
  %2236 = vset.pattern.permute.xlu0 0
  %2237 = vperm.xlu0 %2236, %v2021
  %v2238 = vpop.permute.xlu0 %2237
  %2239 = vset.pattern.permute.xlu0 0
  %2240 = vperm.xlu0 %2239, %v2023
  %v2241 = vpop.permute.xlu0 %2240
  %2242 = vset.pattern.permute.xlu0 0
  %2243 = vperm.xlu0 %2242, %v2025
  %v2244 = vpop.permute.xlu0 %2243
  %2245 = vset.pattern.permute.xlu0 0
  %2246 = vperm.xlu0 %2245, %v2027
  %v2247 = vpop.permute.xlu0 %2246
  %2248 = vset.pattern.permute.xlu0 0
  %2249 = vperm.xlu0 %2248, %v2029
  %v2250 = vpop.permute.xlu0 %2249
  %2251 = vset.pattern.permute.xlu0 0
  %2252 = vperm.xlu0 %2251, %v2031
  %v2253 = vpop.permute.xlu0 %2252
  %2254 = vset.pattern.permute.xlu0 0
  %2255 = vperm.xlu0 %2254, %v2033
  %v2256 = vpop.permute.xlu0 %2255
  %2257 = vset.pattern.permute.xlu0 0
  %2258 = vperm.xlu0 %2257, %v2035
  %v2259 = vpop.permute.xlu0 %2258
  %2260 = vset.pattern.permute.xlu0 0
  %2261 = vperm.xlu0 %2260, %v2037
  %v2262 = vpop.permute.xlu0 %2261
  %2263 = vset.pattern.permute.xlu0 0
  %2264 = vperm.xlu0 %2263, %v2039
  %v2265 = vpop.permute.xlu0 %2264
  %2266 = vset.pattern.permute.xlu0 0
  %2267 = vperm.xlu0 %2266, %v2041
  %v2268 = vpop.permute.xlu0 %2267
  %2269 = vset.pattern.permute.xlu0 0
  %2270 = vperm.xlu0 %2269, %v2043
  %v2271 = vpop.permute.xlu0 %2270
  %2272 = vset.pattern.permute.xlu0 0
  %2273 = vperm.xlu0 %2272, %v2045
  %v2274 = vpop.permute.xlu0 %2273
  %2275 = vset.pattern.permute.xlu0 0
  %2276 = vperm.xlu0 %2275, %v2047
  %v2277 = vpop.permute.xlu0 %2276
  %2278 = vset.pattern.permute.xlu0 0
  %2279 = vperm.xlu0 %2278, %v2049
  %v2280 = vpop.permute.xlu0 %2279
  %2281 = vset.pattern.permute.xlu0 0
  %2282 = vperm.xlu0 %2281, %v2051
  %v2283 = vpop.permute.xlu0 %2282
  %2284 = vset.pattern.permute.xlu0 0
  %2285 = vperm.xlu0 %2284, %v2053
  %v2286 = vpop.permute.xlu0 %2285
  %2287 = vset.pattern.permute.xlu0 0
  %2288 = vperm.xlu0 %2287, %v2055
  %v2289 = vpop.permute.xlu0 %2288
  %2290 = vset.pattern.permute.xlu0 0
  %2291 = vperm.xlu0 %2290, %v2057
  %v2292 = vpop.permute.xlu0 %2291
  %2293 = vset.pattern.permute.xlu0 0
  %2294 = vperm.xlu0 %2293, %v2059
  %v2295 = vpop.permute.xlu0 %2294
  %2296 = vset.pattern.permute.xlu0 0
  %2297 = vperm.xlu0 %2296, %v2061
  %v2298 = vpop.permute.xlu0 %2297
  %2299 = vset.pattern.permute.xlu0 0
  %2300 = vperm.xlu0 %2299, %v2063
  %v2301 = vpop.permute.xlu0 %2300
  %2302 = vset.pattern.permute.xlu0 0
  %2303 = vperm.xlu0 %2302, %v2065
  %v2304 = vpop.permute.xlu0 %2303
  %2305 = vset.pattern.permute.xlu0 0
  %2306 = vperm.xlu0 %2305, %v2067
  %v2307 = vpop.permute.xlu0 %2306
  %2308 = vset.pattern.permute.xlu0 0
  %2309 = vperm.xlu0 %2308, %v2069
  %v2310 = vpop.permute.xlu0 %2309
  %2311 = vset.pattern.permute.xlu0 0
  %2312 = vperm.xlu0 %2311, %v2071
  %v2313 = vpop.permute.xlu0 %2312
  %2314 = vset.pattern.permute.xlu0 0
  %2315 = vperm.xlu0 %2314, %v2073
  %v2316 = vpop.permute.xlu0 %2315
  %2317 = vset.pattern.permute.xlu0 0
  %2318 = vperm.xlu0 %2317, %v2075
  %v2319 = vpop.permute.xlu0 %2318
  %2320 = vset.pattern.permute.xlu0 0
  %2321 = vperm.xlu0 %2320, %v2077
  %v2322 = vpop.permute.xlu0 %2321
  %2323 = vset.pattern.permute.xlu0 0
  %2324 = vperm.xlu0 %2323, %v2079
  %v2325 = vpop.permute.xlu0 %2324
  %2326 = vset.pattern.permute.xlu0 0
  %2327 = vperm.xlu0 %2326, %v2081
  %v2328 = vpop.permute.xlu0 %2327
  %2329 = vset.pattern.permute.xlu0 0
  %2330 = vperm.xlu0 %2329, %v2083
  %v2331 = vpop.permute.xlu0 %2330
  %2332 = vset.pattern.permute.xlu0 0
  %2333 = vperm.xlu0 %2332, %v2085
  %v2334 = vpop.permute.xlu0 %2333
  %2335 = vset.pattern.permute.xlu0 0
  %2336 = vperm.xlu0 %2335, %v2087
  %v2337 = vpop.permute.xlu0 %2336
  %2338 = vset.pattern.permute.xlu0 0
  %2339 = vperm.xlu0 %2338, %v2089
  %v2340 = vpop.permute.xlu0 %2339
  %2341 = vset.pattern.permute.xlu0 0
  %2342 = vperm.xlu0 %2341, %v2091
  %v2343 = vpop.permute.xlu0 %2342
  %2344 = vset.pattern.permute.xlu0 0
  %2345 = vperm.xlu0 %2344, %v2093
  %v2346 = vpop.permute.xlu0 %2345
  %2347 = vset.pattern.permute.xlu0 0
  %2348 = vperm.xlu0 %2347, %v2095
  %v2349 = vpop.permute.xlu0 %2348
  %2350 = vset.pattern.permute.xlu0 0
  %2351 = vperm.xlu0 %2350, %v2097
  %v2352 = vpop.permute.xlu0 %2351
  %2353 = vset.pattern.permute.xlu0 0
  %2354 = vperm.xlu0 %2353, %v2099
  %v2355 = vpop.permute.xlu0 %2354
  %v2356 = vlaneseq
  %v2357 = vshrl.u32 %v2356, 7
  %v2358 = vsub.s32 %v1401, %v2357
  %v2359 = vrot.slane %v2166, %v2358
  %v2360 = vlaneseq
  %v2361 = vshrl.u32 %v2360, 7
  %v2362 = vsub.s32 %v1406, %v2361
  %v2363 = vrot.slane %v2169, %v2362
  %v2364 = vsel %vm1411, %v2363, %v2359
  %v2365 = vlaneseq
  %v2366 = vshrl.u32 %v2365, 7
  %v2367 = vsub.s32 %v1401, %v2366
  %v2368 = vrot.slane %v2172, %v2367
  %v2369 = vlaneseq
  %v2370 = vshrl.u32 %v2369, 7
  %v2371 = vsub.s32 %v1406, %v2370
  %v2372 = vrot.slane %v2175, %v2371
  %v2373 = vsel %vm1411, %v2372, %v2368
  %v2374 = vlaneseq
  %v2375 = vshrl.u32 %v2374, 7
  %v2376 = vsub.s32 %v1401, %v2375
  %v2377 = vrot.slane %v2178, %v2376
  %v2378 = vlaneseq
  %v2379 = vshrl.u32 %v2378, 7
  %v2380 = vsub.s32 %v1406, %v2379
  %v2381 = vrot.slane %v2181, %v2380
  %v2382 = vsel %vm1411, %v2381, %v2377
  %v2383 = vlaneseq
  %v2384 = vshrl.u32 %v2383, 7
  %v2385 = vsub.s32 %v1401, %v2384
  %v2386 = vrot.slane %v2184, %v2385
  %v2387 = vlaneseq
  %v2388 = vshrl.u32 %v2387, 7
  %v2389 = vsub.s32 %v1406, %v2388
  %v2390 = vrot.slane %v2187, %v2389
  %v2391 = vsel %vm1411, %v2390, %v2386
  %v2392 = vlaneseq
  %v2393 = vshrl.u32 %v2392, 7
  %v2394 = vsub.s32 %v1401, %v2393
  %v2395 = vrot.slane %v2190, %v2394
  %v2396 = vlaneseq
  %v2397 = vshrl.u32 %v2396, 7
  %v2398 = vsub.s32 %v1406, %v2397
  %v2399 = vrot.slane %v2193, %v2398
  %v2400 = vsel %vm1411, %v2399, %v2395
  %v2401 = vlaneseq
  %v2402 = vshrl.u32 %v2401, 7
  %v2403 = vsub.s32 %v1401, %v2402
  %v2404 = vrot.slane %v2196, %v2403
  %v2405 = vlaneseq
  %v2406 = vshrl.u32 %v2405, 7
  %v2407 = vsub.s32 %v1406, %v2406
  %v2408 = vrot.slane %v2199, %v2407
  %v2409 = vsel %vm1411, %v2408, %v2404
  %v2410 = vlaneseq
  %v2411 = vshrl.u32 %v2410, 7
  %v2412 = vsub.s32 %v1401, %v2411
  %v2413 = vrot.slane %v2202, %v2412
  %v2414 = vlaneseq
  %v2415 = vshrl.u32 %v2414, 7
  %v2416 = vsub.s32 %v1406, %v2415
  %v2417 = vrot.slane %v2205, %v2416
  %v2418 = vsel %vm1411, %v2417, %v2413
  %v2419 = vlaneseq
  %v2420 = vshrl.u32 %v2419, 7
  %v2421 = vsub.s32 %v1401, %v2420
  %v2422 = vrot.slane %v2208, %v2421
  %v2423 = vlaneseq
  %v2424 = vshrl.u32 %v2423, 7
  %v2425 = vsub.s32 %v1406, %v2424
  %v2426 = vrot.slane %v2211, %v2425
  %v2427 = vsel %vm1411, %v2426, %v2422
  %v2428 = vlaneseq
  %v2429 = vshrl.u32 %v2428, 7
  %v2430 = vsub.s32 %v1401, %v2429
  %v2431 = vrot.slane %v2214, %v2430
  %v2432 = vlaneseq
  %v2433 = vshrl.u32 %v2432, 7
  %v2434 = vsub.s32 %v1406, %v2433
  %v2435 = vrot.slane %v2217, %v2434
  %v2436 = vsel %vm1411, %v2435, %v2431
  %v2437 = vlaneseq
  %v2438 = vshrl.u32 %v2437, 7
  %v2439 = vsub.s32 %v1401, %v2438
  %v2440 = vrot.slane %v2220, %v2439
  %v2441 = vlaneseq
  %v2442 = vshrl.u32 %v2441, 7
  %v2443 = vsub.s32 %v1406, %v2442
  %v2444 = vrot.slane %v2223, %v2443
  %v2445 = vsel %vm1411, %v2444, %v2440
  %v2446 = vlaneseq
  %v2447 = vshrl.u32 %v2446, 7
  %v2448 = vsub.s32 %v1401, %v2447
  %v2449 = vrot.slane %v2226, %v2448
  %v2450 = vlaneseq
  %v2451 = vshrl.u32 %v2450, 7
  %v2452 = vsub.s32 %v1406, %v2451
  %v2453 = vrot.slane %v2229, %v2452
  %v2454 = vsel %vm1411, %v2453, %v2449
  %v2455 = vlaneseq
  %v2456 = vshrl.u32 %v2455, 7
  %v2457 = vsub.s32 %v1401, %v2456
  %v2458 = vrot.slane %v2232, %v2457
  %v2459 = vlaneseq
  %v2460 = vshrl.u32 %v2459, 7
  %v2461 = vsub.s32 %v1406, %v2460
  %v2462 = vrot.slane %v2235, %v2461
  %v2463 = vsel %vm1411, %v2462, %v2458
  %v2464 = vlaneseq
  %v2465 = vshrl.u32 %v2464, 7
  %v2466 = vsub.s32 %v1401, %v2465
  %v2467 = vrot.slane %v2238, %v2466
  %v2468 = vlaneseq
  %v2469 = vshrl.u32 %v2468, 7
  %v2470 = vsub.s32 %v1406, %v2469
  %v2471 = vrot.slane %v2241, %v2470
  %v2472 = vsel %vm1411, %v2471, %v2467
  %v2473 = vlaneseq
  %v2474 = vshrl.u32 %v2473, 7
  %v2475 = vsub.s32 %v1401, %v2474
  %v2476 = vrot.slane %v2244, %v2475
  %v2477 = vlaneseq
  %v2478 = vshrl.u32 %v2477, 7
  %v2479 = vsub.s32 %v1406, %v2478
  %v2480 = vrot.slane %v2247, %v2479
  %v2481 = vsel %vm1411, %v2480, %v2476
  %v2482 = vlaneseq
  %v2483 = vshrl.u32 %v2482, 7
  %v2484 = vsub.s32 %v1401, %v2483
  %v2485 = vrot.slane %v2250, %v2484
  %v2486 = vlaneseq
  %v2487 = vshrl.u32 %v2486, 7
  %v2488 = vsub.s32 %v1406, %v2487
  %v2489 = vrot.slane %v2253, %v2488
  %v2490 = vsel %vm1411, %v2489, %v2485
  %v2491 = vlaneseq
  %v2492 = vshrl.u32 %v2491, 7
  %v2493 = vsub.s32 %v1401, %v2492
  %v2494 = vrot.slane %v2256, %v2493
  %v2495 = vlaneseq
  %v2496 = vshrl.u32 %v2495, 7
  %v2497 = vsub.s32 %v1406, %v2496
  %v2498 = vrot.slane %v2259, %v2497
  %v2499 = vsel %vm1411, %v2498, %v2494
  %v2500 = vlaneseq
  %v2501 = vshrl.u32 %v2500, 7
  %v2502 = vsub.s32 %v1401, %v2501
  %v2503 = vrot.slane %v2262, %v2502
  %v2504 = vlaneseq
  %v2505 = vshrl.u32 %v2504, 7
  %v2506 = vsub.s32 %v1406, %v2505
  %v2507 = vrot.slane %v2265, %v2506
  %v2508 = vsel %vm1411, %v2507, %v2503
  %v2509 = vlaneseq
  %v2510 = vshrl.u32 %v2509, 7
  %v2511 = vsub.s32 %v1401, %v2510
  %v2512 = vrot.slane %v2268, %v2511
  %v2513 = vlaneseq
  %v2514 = vshrl.u32 %v2513, 7
  %v2515 = vsub.s32 %v1406, %v2514
  %v2516 = vrot.slane %v2271, %v2515
  %v2517 = vsel %vm1411, %v2516, %v2512
  %v2518 = vlaneseq
  %v2519 = vshrl.u32 %v2518, 7
  %v2520 = vsub.s32 %v1401, %v2519
  %v2521 = vrot.slane %v2274, %v2520
  %v2522 = vlaneseq
  %v2523 = vshrl.u32 %v2522, 7
  %v2524 = vsub.s32 %v1406, %v2523
  %v2525 = vrot.slane %v2277, %v2524
  %v2526 = vsel %vm1411, %v2525, %v2521
  %v2527 = vlaneseq
  %v2528 = vshrl.u32 %v2527, 7
  %v2529 = vsub.s32 %v1401, %v2528
  %v2530 = vrot.slane %v2280, %v2529
  %v2531 = vlaneseq
  %v2532 = vshrl.u32 %v2531, 7
  %v2533 = vsub.s32 %v1406, %v2532
  %v2534 = vrot.slane %v2283, %v2533
  %v2535 = vsel %vm1411, %v2534, %v2530
  %v2536 = vlaneseq
  %v2537 = vshrl.u32 %v2536, 7
  %v2538 = vsub.s32 %v1401, %v2537
  %v2539 = vrot.slane %v2286, %v2538
  %v2540 = vlaneseq
  %v2541 = vshrl.u32 %v2540, 7
  %v2542 = vsub.s32 %v1406, %v2541
  %v2543 = vrot.slane %v2289, %v2542
  %v2544 = vsel %vm1411, %v2543, %v2539
  %v2545 = vlaneseq
  %v2546 = vshrl.u32 %v2545, 7
  %v2547 = vsub.s32 %v1401, %v2546
  %v2548 = vrot.slane %v2292, %v2547
  %v2549 = vlaneseq
  %v2550 = vshrl.u32 %v2549, 7
  %v2551 = vsub.s32 %v1406, %v2550
  %v2552 = vrot.slane %v2295, %v2551
  %v2553 = vsel %vm1411, %v2552, %v2548
  %v2554 = vlaneseq
  %v2555 = vshrl.u32 %v2554, 7
  %v2556 = vsub.s32 %v1401, %v2555
  %v2557 = vrot.slane %v2298, %v2556
  %v2558 = vlaneseq
  %v2559 = vshrl.u32 %v2558, 7
  %v2560 = vsub.s32 %v1406, %v2559
  %v2561 = vrot.slane %v2301, %v2560
  %v2562 = vsel %vm1411, %v2561, %v2557
  %v2563 = vlaneseq
  %v2564 = vshrl.u32 %v2563, 7
  %v2565 = vsub.s32 %v1401, %v2564
  %v2566 = vrot.slane %v2304, %v2565
  %v2567 = vlaneseq
  %v2568 = vshrl.u32 %v2567, 7
  %v2569 = vsub.s32 %v1406, %v2568
  %v2570 = vrot.slane %v2307, %v2569
  %v2571 = vsel %vm1411, %v2570, %v2566
  %v2572 = vlaneseq
  %v2573 = vshrl.u32 %v2572, 7
  %v2574 = vsub.s32 %v1401, %v2573
  %v2575 = vrot.slane %v2310, %v2574
  %v2576 = vlaneseq
  %v2577 = vshrl.u32 %v2576, 7
  %v2578 = vsub.s32 %v1406, %v2577
  %v2579 = vrot.slane %v2313, %v2578
  %v2580 = vsel %vm1411, %v2579, %v2575
  %v2581 = vlaneseq
  %v2582 = vshrl.u32 %v2581, 7
  %v2583 = vsub.s32 %v1401, %v2582
  %v2584 = vrot.slane %v2316, %v2583
  %v2585 = vlaneseq
  %v2586 = vshrl.u32 %v2585, 7
  %v2587 = vsub.s32 %v1406, %v2586
  %v2588 = vrot.slane %v2319, %v2587
  %v2589 = vsel %vm1411, %v2588, %v2584
  %v2590 = vlaneseq
  %v2591 = vshrl.u32 %v2590, 7
  %v2592 = vsub.s32 %v1401, %v2591
  %v2593 = vrot.slane %v2322, %v2592
  %v2594 = vlaneseq
  %v2595 = vshrl.u32 %v2594, 7
  %v2596 = vsub.s32 %v1406, %v2595
  %v2597 = vrot.slane %v2325, %v2596
  %v2598 = vsel %vm1411, %v2597, %v2593
  %v2599 = vlaneseq
  %v2600 = vshrl.u32 %v2599, 7
  %v2601 = vsub.s32 %v1401, %v2600
  %v2602 = vrot.slane %v2328, %v2601
  %v2603 = vlaneseq
  %v2604 = vshrl.u32 %v2603, 7
  %v2605 = vsub.s32 %v1406, %v2604
  %v2606 = vrot.slane %v2331, %v2605
  %v2607 = vsel %vm1411, %v2606, %v2602
  %v2608 = vlaneseq
  %v2609 = vshrl.u32 %v2608, 7
  %v2610 = vsub.s32 %v1401, %v2609
  %v2611 = vrot.slane %v2334, %v2610
  %v2612 = vlaneseq
  %v2613 = vshrl.u32 %v2612, 7
  %v2614 = vsub.s32 %v1406, %v2613
  %v2615 = vrot.slane %v2337, %v2614
  %v2616 = vsel %vm1411, %v2615, %v2611
  %v2617 = vlaneseq
  %v2618 = vshrl.u32 %v2617, 7
  %v2619 = vsub.s32 %v1401, %v2618
  %v2620 = vrot.slane %v2340, %v2619
  %v2621 = vlaneseq
  %v2622 = vshrl.u32 %v2621, 7
  %v2623 = vsub.s32 %v1406, %v2622
  %v2624 = vrot.slane %v2343, %v2623
  %v2625 = vsel %vm1411, %v2624, %v2620
  %v2626 = vlaneseq
  %v2627 = vshrl.u32 %v2626, 7
  %v2628 = vsub.s32 %v1401, %v2627
  %v2629 = vrot.slane %v2346, %v2628
  %v2630 = vlaneseq
  %v2631 = vshrl.u32 %v2630, 7
  %v2632 = vsub.s32 %v1406, %v2631
  %v2633 = vrot.slane %v2349, %v2632
  %v2634 = vsel %vm1411, %v2633, %v2629
  %v2635 = vlaneseq
  %v2636 = vshrl.u32 %v2635, 7
  %v2637 = vsub.s32 %v1401, %v2636
  %v2638 = vrot.slane %v2352, %v2637
  %v2639 = vlaneseq
  %v2640 = vshrl.u32 %v2639, 7
  %v2641 = vsub.s32 %v1406, %v2640
  %v2642 = vrot.slane %v2355, %v2641
  %v2643 = vsel %vm1411, %v2642, %v2638
  %v2644 = vsel %vm1692, %v2373, %v2364
  %v2645 = vsel %vm1694, %v2382, %v2644
  %v2646 = vsel %vm1696, %v2391, %v2645
  %v2647 = vsel %vm1698, %v2400, %v2646
  %v2648 = vsel %vm1700, %v2409, %v2647
  %v2649 = vsel %vm1702, %v2418, %v2648
  %v2650 = vsel %vm1704, %v2427, %v2649
  %v2651 = vsel %vm1692, %v2445, %v2436
  %v2652 = vsel %vm1694, %v2454, %v2651
  %v2653 = vsel %vm1696, %v2463, %v2652
  %v2654 = vsel %vm1698, %v2472, %v2653
  %v2655 = vsel %vm1700, %v2481, %v2654
  %v2656 = vsel %vm1702, %v2490, %v2655
  %v2657 = vsel %vm1704, %v2499, %v2656
  %v2658 = vsel %vm1692, %v2517, %v2508
  %v2659 = vsel %vm1694, %v2526, %v2658
  %v2660 = vsel %vm1696, %v2535, %v2659
  %v2661 = vsel %vm1698, %v2544, %v2660
  %v2662 = vsel %vm1700, %v2553, %v2661
  %v2663 = vsel %vm1702, %v2562, %v2662
  %v2664 = vsel %vm1704, %v2571, %v2663
  %v2665 = vsel %vm1692, %v2589, %v2580
  %v2666 = vsel %vm1694, %v2598, %v2665
  %v2667 = vsel %vm1696, %v2607, %v2666
  %v2668 = vsel %vm1698, %v2616, %v2667
  %v2669 = vsel %vm1700, %v2625, %v2668
  %v2670 = vsel %vm1702, %v2634, %v2669
  %v2671 = vsel %vm1704, %v2643, %v2670
  %v2676 = vsel %vm1731, %v2650, 0.0
  %2677 = vadd.xlane.f32.xlu0 %v2676
  %v2678 = vpop.xlane.xlu0 %2677
  %v2679 = vsel %vm1731, %v2657, 0.0
  %2680 = vadd.xlane.f32.xlu0 %v2679
  %v2681 = vpop.xlane.xlu0 %2680
  %v2682 = vsel %vm1731, %v2664, 0.0
  %2683 = vadd.xlane.f32.xlu0 %v2682
  %v2684 = vpop.xlane.xlu0 %2683
  %v2685 = vsel %vm1731, %v2671, 0.0
  %2686 = vadd.xlane.f32.xlu0 %v2685
  %v2687 = vpop.xlane.xlu0 %2686
  %v2688 = vrcp.pop %v2678
  %v2689 = vrcp.pop %v2681
  %v2690 = vrcp.pop %v2684
  %v2691 = vrcp.pop %v2687
  %v2692 = vmul.f32 %v2678, %v2688
  %v2693 = vmul.f32 %v2681, %v2689
  %v2694 = vmul.f32 %v2684, %v2690
  %v2695 = vmul.f32 %v2687, %v2691
  %v2696 = vsub.f32 2.0, %v2692
  %v2697 = vsub.f32 2.0, %v2693
  %v2698 = vsub.f32 2.0, %v2694
  %v2699 = vsub.f32 2.0, %v2695
  %v2700 = vmul.f32 %v2688, %v2696
  %v2701 = vmul.f32 %v2689, %v2697
  %v2702 = vmul.f32 %v2690, %v2698
  %v2703 = vmul.f32 %v2691, %v2699
  %v2708 = vlaneseq
  %v2709 = vshrl.u32 %v2708, 7
  %v2710 = vsub.s32 0, %v2709
  %v2711 = vrot.slane %v2700, %v2710
  %v2712 = vlaneseq
  %v2713 = vshrl.u32 %v2712, 7
  %v2714 = vsub.s32 1, %v2713
  %v2715 = vrot.slane %v2700, %v2714
  %v2716 = vlaneseq
  %v2717 = vshrl.u32 %v2716, 7
  %v2718 = vsub.s32 2, %v2717
  %v2719 = vrot.slane %v2700, %v2718
  %v2720 = vlaneseq
  %v2721 = vshrl.u32 %v2720, 7
  %v2722 = vsub.s32 3, %v2721
  %v2723 = vrot.slane %v2700, %v2722
  %v2724 = vlaneseq
  %v2725 = vshrl.u32 %v2724, 7
  %v2726 = vsub.s32 4, %v2725
  %v2727 = vrot.slane %v2700, %v2726
  %v2728 = vlaneseq
  %v2729 = vshrl.u32 %v2728, 7
  %v2730 = vsub.s32 5, %v2729
  %v2731 = vrot.slane %v2700, %v2730
  %v2732 = vlaneseq
  %v2733 = vshrl.u32 %v2732, 7
  %v2734 = vsub.s32 6, %v2733
  %v2735 = vrot.slane %v2700, %v2734
  %v2736 = vlaneseq
  %v2737 = vshrl.u32 %v2736, 7
  %v2738 = vsub.s32 7, %v2737
  %v2739 = vrot.slane %v2700, %v2738
  %v2740 = vlaneseq
  %v2741 = vshrl.u32 %v2740, 7
  %v2742 = vsub.s32 0, %v2741
  %v2743 = vrot.slane %v2701, %v2742
  %v2744 = vlaneseq
  %v2745 = vshrl.u32 %v2744, 7
  %v2746 = vsub.s32 1, %v2745
  %v2747 = vrot.slane %v2701, %v2746
  %v2748 = vlaneseq
  %v2749 = vshrl.u32 %v2748, 7
  %v2750 = vsub.s32 2, %v2749
  %v2751 = vrot.slane %v2701, %v2750
  %v2752 = vlaneseq
  %v2753 = vshrl.u32 %v2752, 7
  %v2754 = vsub.s32 3, %v2753
  %v2755 = vrot.slane %v2701, %v2754
  %v2756 = vlaneseq
  %v2757 = vshrl.u32 %v2756, 7
  %v2758 = vsub.s32 4, %v2757
  %v2759 = vrot.slane %v2701, %v2758
  %v2760 = vlaneseq
  %v2761 = vshrl.u32 %v2760, 7
  %v2762 = vsub.s32 5, %v2761
  %v2763 = vrot.slane %v2701, %v2762
  %v2764 = vlaneseq
  %v2765 = vshrl.u32 %v2764, 7
  %v2766 = vsub.s32 6, %v2765
  %v2767 = vrot.slane %v2701, %v2766
  %v2768 = vlaneseq
  %v2769 = vshrl.u32 %v2768, 7
  %v2770 = vsub.s32 7, %v2769
  %v2771 = vrot.slane %v2701, %v2770
  %v2772 = vlaneseq
  %v2773 = vshrl.u32 %v2772, 7
  %v2774 = vsub.s32 0, %v2773
  %v2775 = vrot.slane %v2702, %v2774
  %v2776 = vlaneseq
  %v2777 = vshrl.u32 %v2776, 7
  %v2778 = vsub.s32 1, %v2777
  %v2779 = vrot.slane %v2702, %v2778
  %v2780 = vlaneseq
  %v2781 = vshrl.u32 %v2780, 7
  %v2782 = vsub.s32 2, %v2781
  %v2783 = vrot.slane %v2702, %v2782
  %v2784 = vlaneseq
  %v2785 = vshrl.u32 %v2784, 7
  %v2786 = vsub.s32 3, %v2785
  %v2787 = vrot.slane %v2702, %v2786
  %v2788 = vlaneseq
  %v2789 = vshrl.u32 %v2788, 7
  %v2790 = vsub.s32 4, %v2789
  %v2791 = vrot.slane %v2702, %v2790
  %v2792 = vlaneseq
  %v2793 = vshrl.u32 %v2792, 7
  %v2794 = vsub.s32 5, %v2793
  %v2795 = vrot.slane %v2702, %v2794
  %v2796 = vlaneseq
  %v2797 = vshrl.u32 %v2796, 7
  %v2798 = vsub.s32 6, %v2797
  %v2799 = vrot.slane %v2702, %v2798
  %v2800 = vlaneseq
  %v2801 = vshrl.u32 %v2800, 7
  %v2802 = vsub.s32 7, %v2801
  %v2803 = vrot.slane %v2702, %v2802
  %v2804 = vlaneseq
  %v2805 = vshrl.u32 %v2804, 7
  %v2806 = vsub.s32 0, %v2805
  %v2807 = vrot.slane %v2703, %v2806
  %v2808 = vlaneseq
  %v2809 = vshrl.u32 %v2808, 7
  %v2810 = vsub.s32 1, %v2809
  %v2811 = vrot.slane %v2703, %v2810
  %v2812 = vlaneseq
  %v2813 = vshrl.u32 %v2812, 7
  %v2814 = vsub.s32 2, %v2813
  %v2815 = vrot.slane %v2703, %v2814
  %v2816 = vlaneseq
  %v2817 = vshrl.u32 %v2816, 7
  %v2818 = vsub.s32 3, %v2817
  %v2819 = vrot.slane %v2703, %v2818
  %v2820 = vlaneseq
  %v2821 = vshrl.u32 %v2820, 7
  %v2822 = vsub.s32 4, %v2821
  %v2823 = vrot.slane %v2703, %v2822
  %v2824 = vlaneseq
  %v2825 = vshrl.u32 %v2824, 7
  %v2826 = vsub.s32 5, %v2825
  %v2827 = vrot.slane %v2703, %v2826
  %v2828 = vlaneseq
  %v2829 = vshrl.u32 %v2828, 7
  %v2830 = vsub.s32 6, %v2829
  %v2831 = vrot.slane %v2703, %v2830
  %v2832 = vlaneseq
  %v2833 = vshrl.u32 %v2832, 7
  %v2834 = vsub.s32 7, %v2833
  %v2835 = vrot.slane %v2703, %v2834
  %v2868 = vmul.f32 %v1973, %v2711
  %v2869 = vmul.f32 %v1975, %v2711
  %v2870 = vmul.f32 %v1977, %v2715
  %v2871 = vmul.f32 %v1979, %v2715
  %v2872 = vmul.f32 %v1981, %v2719
  %v2873 = vmul.f32 %v1983, %v2719
  %v2874 = vmul.f32 %v1985, %v2723
  %v2875 = vmul.f32 %v1987, %v2723
  %v2876 = vmul.f32 %v1989, %v2727
  %v2877 = vmul.f32 %v1991, %v2727
  %v2878 = vmul.f32 %v1993, %v2731
  %v2879 = vmul.f32 %v1995, %v2731
  %v2880 = vmul.f32 %v1997, %v2735
  %v2881 = vmul.f32 %v1999, %v2735
  %v2882 = vmul.f32 %v2001, %v2739
  %v2883 = vmul.f32 %v2003, %v2739
  %v2884 = vmul.f32 %v2005, %v2743
  %v2885 = vmul.f32 %v2007, %v2743
  %v2886 = vmul.f32 %v2009, %v2747
  %v2887 = vmul.f32 %v2011, %v2747
  %v2888 = vmul.f32 %v2013, %v2751
  %v2889 = vmul.f32 %v2015, %v2751
  %v2890 = vmul.f32 %v2017, %v2755
  %v2891 = vmul.f32 %v2019, %v2755
  %v2892 = vmul.f32 %v2021, %v2759
  %v2893 = vmul.f32 %v2023, %v2759
  %v2894 = vmul.f32 %v2025, %v2763
  %v2895 = vmul.f32 %v2027, %v2763
  %v2896 = vmul.f32 %v2029, %v2767
  %v2897 = vmul.f32 %v2031, %v2767
  %v2898 = vmul.f32 %v2033, %v2771
  %v2899 = vmul.f32 %v2035, %v2771
  %v2900 = vmul.f32 %v2037, %v2775
  %v2901 = vmul.f32 %v2039, %v2775
  %v2902 = vmul.f32 %v2041, %v2779
  %v2903 = vmul.f32 %v2043, %v2779
  %v2904 = vmul.f32 %v2045, %v2783
  %v2905 = vmul.f32 %v2047, %v2783
  %v2906 = vmul.f32 %v2049, %v2787
  %v2907 = vmul.f32 %v2051, %v2787
  %v2908 = vmul.f32 %v2053, %v2791
  %v2909 = vmul.f32 %v2055, %v2791
  %v2910 = vmul.f32 %v2057, %v2795
  %v2911 = vmul.f32 %v2059, %v2795
  %v2912 = vmul.f32 %v2061, %v2799
  %v2913 = vmul.f32 %v2063, %v2799
  %v2914 = vmul.f32 %v2065, %v2803
  %v2915 = vmul.f32 %v2067, %v2803
  %v2916 = vmul.f32 %v2069, %v2807
  %v2917 = vmul.f32 %v2071, %v2807
  %v2918 = vmul.f32 %v2073, %v2811
  %v2919 = vmul.f32 %v2075, %v2811
  %v2920 = vmul.f32 %v2077, %v2815
  %v2921 = vmul.f32 %v2079, %v2815
  %v2922 = vmul.f32 %v2081, %v2819
  %v2923 = vmul.f32 %v2083, %v2819
  %v2924 = vmul.f32 %v2085, %v2823
  %v2925 = vmul.f32 %v2087, %v2823
  %v2926 = vmul.f32 %v2089, %v2827
  %v2927 = vmul.f32 %v2091, %v2827
  %v2928 = vmul.f32 %v2093, %v2831
  %v2929 = vmul.f32 %v2095, %v2831
  %v2930 = vmul.f32 %v2097, %v2835
  %v2931 = vmul.f32 %v2099, %v2835
  %2933 = vset.pattern.permute.xlu0 0
  %2934 = vperm.xlu0 %2933, %v2868
  %v2935 = vpop.permute.xlu0 %2934
  %2938 = vset.pattern.permute.xlu0 0
  %2939 = vperm.xlu0 %2938, %v2869
  %v2940 = vpop.permute.xlu0 %2939
  %2943 = vset.pattern.permute.xlu0 0
  %2944 = vperm.xlu0 %2943, %v2870
  %v2945 = vpop.permute.xlu0 %2944
  %2948 = vset.pattern.permute.xlu0 0
  %2949 = vperm.xlu0 %2948, %v2871
  %v2950 = vpop.permute.xlu0 %2949
  %2953 = vset.pattern.permute.xlu0 0
  %2954 = vperm.xlu0 %2953, %v2872
  %v2955 = vpop.permute.xlu0 %2954
  %2958 = vset.pattern.permute.xlu0 0
  %2959 = vperm.xlu0 %2958, %v2873
  %v2960 = vpop.permute.xlu0 %2959
  %2963 = vset.pattern.permute.xlu0 0
  %2964 = vperm.xlu0 %2963, %v2874
  %v2965 = vpop.permute.xlu0 %2964
  %2968 = vset.pattern.permute.xlu0 0
  %2969 = vperm.xlu0 %2968, %v2875
  %v2970 = vpop.permute.xlu0 %2969
  %2973 = vset.pattern.permute.xlu0 0
  %2974 = vperm.xlu0 %2973, %v2876
  %v2975 = vpop.permute.xlu0 %2974
  %2978 = vset.pattern.permute.xlu0 0
  %2979 = vperm.xlu0 %2978, %v2877
  %v2980 = vpop.permute.xlu0 %2979
  %2983 = vset.pattern.permute.xlu0 0
  %2984 = vperm.xlu0 %2983, %v2878
  %v2985 = vpop.permute.xlu0 %2984
  %2988 = vset.pattern.permute.xlu0 0
  %2989 = vperm.xlu0 %2988, %v2879
  %v2990 = vpop.permute.xlu0 %2989
  %2993 = vset.pattern.permute.xlu0 0
  %2994 = vperm.xlu0 %2993, %v2880
  %v2995 = vpop.permute.xlu0 %2994
  %2998 = vset.pattern.permute.xlu0 0
  %2999 = vperm.xlu0 %2998, %v2881
  %v3000 = vpop.permute.xlu0 %2999
  %3003 = vset.pattern.permute.xlu0 0
  %3004 = vperm.xlu0 %3003, %v2882
  %v3005 = vpop.permute.xlu0 %3004
  %3008 = vset.pattern.permute.xlu0 0
  %3009 = vperm.xlu0 %3008, %v2883
  %v3010 = vpop.permute.xlu0 %3009
  %3013 = vset.pattern.permute.xlu0 0
  %3014 = vperm.xlu0 %3013, %v2884
  %v3015 = vpop.permute.xlu0 %3014
  %3018 = vset.pattern.permute.xlu0 0
  %3019 = vperm.xlu0 %3018, %v2885
  %v3020 = vpop.permute.xlu0 %3019
  %3023 = vset.pattern.permute.xlu0 0
  %3024 = vperm.xlu0 %3023, %v2886
  %v3025 = vpop.permute.xlu0 %3024
  %3028 = vset.pattern.permute.xlu0 0
  %3029 = vperm.xlu0 %3028, %v2887
  %v3030 = vpop.permute.xlu0 %3029
  %3033 = vset.pattern.permute.xlu0 0
  %3034 = vperm.xlu0 %3033, %v2888
  %v3035 = vpop.permute.xlu0 %3034
  %3038 = vset.pattern.permute.xlu0 0
  %3039 = vperm.xlu0 %3038, %v2889
  %v3040 = vpop.permute.xlu0 %3039
  %3043 = vset.pattern.permute.xlu0 0
  %3044 = vperm.xlu0 %3043, %v2890
  %v3045 = vpop.permute.xlu0 %3044
  %3048 = vset.pattern.permute.xlu0 0
  %3049 = vperm.xlu0 %3048, %v2891
  %v3050 = vpop.permute.xlu0 %3049
  %3053 = vset.pattern.permute.xlu0 0
  %3054 = vperm.xlu0 %3053, %v2892
  %v3055 = vpop.permute.xlu0 %3054
  %3058 = vset.pattern.permute.xlu0 0
  %3059 = vperm.xlu0 %3058, %v2893
  %v3060 = vpop.permute.xlu0 %3059
  %3063 = vset.pattern.permute.xlu0 0
  %3064 = vperm.xlu0 %3063, %v2894
  %v3065 = vpop.permute.xlu0 %3064
  %3068 = vset.pattern.permute.xlu0 0
  %3069 = vperm.xlu0 %3068, %v2895
  %v3070 = vpop.permute.xlu0 %3069
  %3073 = vset.pattern.permute.xlu0 0
  %3074 = vperm.xlu0 %3073, %v2896
  %v3075 = vpop.permute.xlu0 %3074
  %3078 = vset.pattern.permute.xlu0 0
  %3079 = vperm.xlu0 %3078, %v2897
  %v3080 = vpop.permute.xlu0 %3079
  %3083 = vset.pattern.permute.xlu0 0
  %3084 = vperm.xlu0 %3083, %v2898
  %v3085 = vpop.permute.xlu0 %3084
  %3088 = vset.pattern.permute.xlu0 0
  %3089 = vperm.xlu0 %3088, %v2899
  %v3090 = vpop.permute.xlu0 %3089
  %3093 = vset.pattern.permute.xlu0 0
  %3094 = vperm.xlu0 %3093, %v2900
  %v3095 = vpop.permute.xlu0 %3094
  %3098 = vset.pattern.permute.xlu0 0
  %3099 = vperm.xlu0 %3098, %v2901
  %v3100 = vpop.permute.xlu0 %3099
  %3103 = vset.pattern.permute.xlu0 0
  %3104 = vperm.xlu0 %3103, %v2902
  %v3105 = vpop.permute.xlu0 %3104
  %3108 = vset.pattern.permute.xlu0 0
  %3109 = vperm.xlu0 %3108, %v2903
  %v3110 = vpop.permute.xlu0 %3109
  %3113 = vset.pattern.permute.xlu0 0
  %3114 = vperm.xlu0 %3113, %v2904
  %v3115 = vpop.permute.xlu0 %3114
  %3118 = vset.pattern.permute.xlu0 0
  %3119 = vperm.xlu0 %3118, %v2905
  %v3120 = vpop.permute.xlu0 %3119
  %3123 = vset.pattern.permute.xlu0 0
  %3124 = vperm.xlu0 %3123, %v2906
  %v3125 = vpop.permute.xlu0 %3124
  %3128 = vset.pattern.permute.xlu0 0
  %3129 = vperm.xlu0 %3128, %v2907
  %v3130 = vpop.permute.xlu0 %3129
  %3133 = vset.pattern.permute.xlu0 0
  %3134 = vperm.xlu0 %3133, %v2908
  %v3135 = vpop.permute.xlu0 %3134
  %3138 = vset.pattern.permute.xlu0 0
  %3139 = vperm.xlu0 %3138, %v2909
  %v3140 = vpop.permute.xlu0 %3139
  %3143 = vset.pattern.permute.xlu0 0
  %3144 = vperm.xlu0 %3143, %v2910
  %v3145 = vpop.permute.xlu0 %3144
  %3148 = vset.pattern.permute.xlu0 0
  %3149 = vperm.xlu0 %3148, %v2911
  %v3150 = vpop.permute.xlu0 %3149
  %3153 = vset.pattern.permute.xlu0 0
  %3154 = vperm.xlu0 %3153, %v2912
  %v3155 = vpop.permute.xlu0 %3154
  %3158 = vset.pattern.permute.xlu0 0
  %3159 = vperm.xlu0 %3158, %v2913
  %v3160 = vpop.permute.xlu0 %3159
  %3163 = vset.pattern.permute.xlu0 0
  %3164 = vperm.xlu0 %3163, %v2914
  %v3165 = vpop.permute.xlu0 %3164
  %3168 = vset.pattern.permute.xlu0 0
  %3169 = vperm.xlu0 %3168, %v2915
  %v3170 = vpop.permute.xlu0 %3169
  %3173 = vset.pattern.permute.xlu0 0
  %3174 = vperm.xlu0 %3173, %v2916
  %v3175 = vpop.permute.xlu0 %3174
  %3178 = vset.pattern.permute.xlu0 0
  %3179 = vperm.xlu0 %3178, %v2917
  %v3180 = vpop.permute.xlu0 %3179
  %3183 = vset.pattern.permute.xlu0 0
  %3184 = vperm.xlu0 %3183, %v2918
  %v3185 = vpop.permute.xlu0 %3184
  %3188 = vset.pattern.permute.xlu0 0
  %3189 = vperm.xlu0 %3188, %v2919
  %v3190 = vpop.permute.xlu0 %3189
  %3193 = vset.pattern.permute.xlu0 0
  %3194 = vperm.xlu0 %3193, %v2920
  %v3195 = vpop.permute.xlu0 %3194
  %3198 = vset.pattern.permute.xlu0 0
  %3199 = vperm.xlu0 %3198, %v2921
  %v3200 = vpop.permute.xlu0 %3199
  %3203 = vset.pattern.permute.xlu0 0
  %3204 = vperm.xlu0 %3203, %v2922
  %v3205 = vpop.permute.xlu0 %3204
  %3208 = vset.pattern.permute.xlu0 0
  %3209 = vperm.xlu0 %3208, %v2923
  %v3210 = vpop.permute.xlu0 %3209
  %3213 = vset.pattern.permute.xlu0 0
  %3214 = vperm.xlu0 %3213, %v2924
  %v3215 = vpop.permute.xlu0 %3214
  %3218 = vset.pattern.permute.xlu0 0
  %3219 = vperm.xlu0 %3218, %v2925
  %v3220 = vpop.permute.xlu0 %3219
  %3223 = vset.pattern.permute.xlu0 0
  %3224 = vperm.xlu0 %3223, %v2926
  %v3225 = vpop.permute.xlu0 %3224
  %3228 = vset.pattern.permute.xlu0 0
  %3229 = vperm.xlu0 %3228, %v2927
  %v3230 = vpop.permute.xlu0 %3229
  %3233 = vset.pattern.permute.xlu0 0
  %3234 = vperm.xlu0 %3233, %v2928
  %v3235 = vpop.permute.xlu0 %3234
  %3238 = vset.pattern.permute.xlu0 0
  %3239 = vperm.xlu0 %3238, %v2929
  %v3240 = vpop.permute.xlu0 %3239
  %3243 = vset.pattern.permute.xlu0 0
  %3244 = vperm.xlu0 %3243, %v2930
  %v3245 = vpop.permute.xlu0 %3244
  %3248 = vset.pattern.permute.xlu0 0
  %3249 = vperm.xlu0 %3248, %v2931
  %v3250 = vpop.permute.xlu0 %3249
  %v3252 = vmul.f32 %v826, %v2935
  %v3253 = vmul.f32 %v831, %v2940
  %v3254 = vmul.f32 %v836, %v2945
  %v3255 = vmul.f32 %v841, %v2950
  %v3256 = vmul.f32 %v846, %v2955
  %v3257 = vmul.f32 %v851, %v2960
  %v3258 = vmul.f32 %v856, %v2965
  %v3259 = vmul.f32 %v861, %v2970
  %v3260 = vmul.f32 %v866, %v2975
  %v3261 = vmul.f32 %v871, %v2980
  %v3262 = vmul.f32 %v876, %v2985
  %v3263 = vmul.f32 %v881, %v2990
  %v3264 = vmul.f32 %v886, %v2995
  %v3265 = vmul.f32 %v891, %v3000
  %v3266 = vmul.f32 %v896, %v3005
  %v3267 = vmul.f32 %v901, %v3010
  %v3268 = vmul.f32 %v906, %v3015
  %v3269 = vmul.f32 %v911, %v3020
  %v3270 = vmul.f32 %v916, %v3025
  %v3271 = vmul.f32 %v921, %v3030
  %v3272 = vmul.f32 %v926, %v3035
  %v3273 = vmul.f32 %v931, %v3040
  %v3274 = vmul.f32 %v936, %v3045
  %v3275 = vmul.f32 %v941, %v3050
  %v3276 = vmul.f32 %v946, %v3055
  %v3277 = vmul.f32 %v951, %v3060
  %v3278 = vmul.f32 %v956, %v3065
  %v3279 = vmul.f32 %v961, %v3070
  %v3280 = vmul.f32 %v966, %v3075
  %v3281 = vmul.f32 %v971, %v3080
  %v3282 = vmul.f32 %v976, %v3085
  %v3283 = vmul.f32 %v981, %v3090
  %v3284 = vmul.f32 %v986, %v3095
  %v3285 = vmul.f32 %v991, %v3100
  %v3286 = vmul.f32 %v996, %v3105
  %v3287 = vmul.f32 %v1001, %v3110
  %v3288 = vmul.f32 %v1006, %v3115
  %v3289 = vmul.f32 %v1011, %v3120
  %v3290 = vmul.f32 %v1016, %v3125
  %v3291 = vmul.f32 %v1021, %v3130
  %v3292 = vmul.f32 %v1026, %v3135
  %v3293 = vmul.f32 %v1031, %v3140
  %v3294 = vmul.f32 %v1036, %v3145
  %v3295 = vmul.f32 %v1041, %v3150
  %v3296 = vmul.f32 %v1046, %v3155
  %v3297 = vmul.f32 %v1051, %v3160
  %v3298 = vmul.f32 %v1056, %v3165
  %v3299 = vmul.f32 %v1061, %v3170
  %v3300 = vmul.f32 %v1066, %v3175
  %v3301 = vmul.f32 %v1071, %v3180
  %v3302 = vmul.f32 %v1076, %v3185
  %v3303 = vmul.f32 %v1081, %v3190
  %v3304 = vmul.f32 %v1086, %v3195
  %v3305 = vmul.f32 %v1091, %v3200
  %v3306 = vmul.f32 %v1096, %v3205
  %v3307 = vmul.f32 %v1101, %v3210
  %v3308 = vmul.f32 %v1106, %v3215
  %v3309 = vmul.f32 %v1111, %v3220
  %v3310 = vmul.f32 %v1116, %v3225
  %v3311 = vmul.f32 %v1121, %v3230
  %v3312 = vmul.f32 %v1126, %v3235
  %v3313 = vmul.f32 %v1131, %v3240
  %v3314 = vmul.f32 %v1136, %v3245
  %v3315 = vmul.f32 %v1141, %v3250
  %v3316 = vld [vmem:[%s3] sm:$0xff]
  %v3317 = vld [vmem:[%s3 + $0x8] sm:$0xff]
  %v3318 = vld [vmem:[%s3 + $0x10] sm:$0xff]
  %v3319 = vld [vmem:[%s3 + $0x18] sm:$0xff]
  %v3320 = vld [vmem:[%s3 + $0x20] sm:$0xff]
  %v3321 = vld [vmem:[%s3 + $0x28] sm:$0xff]
  %v3322 = vld [vmem:[%s3 + $0x30] sm:$0xff]
  %v3323 = vld [vmem:[%s3 + $0x38] sm:$0xff]
  %v3324 = vld [vmem:[%s3 + $0x40] sm:$0xff]
  %v3325 = vld [vmem:[%s3 + $0x48] sm:$0xff]
  %v3326 = vld [vmem:[%s3 + $0x50] sm:$0xff]
  %v3327 = vld [vmem:[%s3 + $0x58] sm:$0xff]
  %v3328 = vld [vmem:[%s3 + $0x60] sm:$0xff]
  %v3329 = vld [vmem:[%s3 + $0x68] sm:$0xff]
  %v3330 = vld [vmem:[%s3 + $0x70] sm:$0xff]
  %v3331 = vld [vmem:[%s3 + $0x78] sm:$0xff]
  %v3332 = vld [vmem:[%s4] sm:$0x1]
  %v3334 = vlaneseq
  %v3335 = vshrl.u32 %v3334, 7
  %v3336 = vsub.s32 0, %v3335
  %v3337 = vrot.slane %v3332, %v3336
  %3339 = vmatprep.subr.mxu0 0.0
  %3340 = vmatpush1.msra.mxu0 %v3331
  %3341 = vmatprep.subr.mxu0 0.0
  %3342 = vmatpush1.msra.mxu0 %v3330
  %3343 = vmatprep.subr.mxu0 0.0
  %3344 = vmatpush1.msra.mxu0 %v3329
  %3345 = vmatprep.subr.mxu0 0.0
  %3346 = vmatpush1.msra.mxu0 %v3328
  %3347 = vmatprep.subr.mxu0 0.0
  %3348 = vmatpush1.msra.mxu0 %v3327
  %3349 = vmatprep.subr.mxu0 0.0
  %3350 = vmatpush1.msra.mxu0 %v3326
  %3351 = vmatprep.subr.mxu0 0.0
  %3352 = vmatpush1.msra.mxu0 %v3325
  %3353 = vmatprep.subr.mxu0 0.0
  %3354 = vmatpush1.msra.mxu0 %v3324
  %3355 = vmatprep.subr.mxu0 0.0
  %3356 = vmatpush1.msra.mxu0 %v3323
  %3357 = vmatprep.subr.mxu0 0.0
  %3358 = vmatpush1.msra.mxu0 %v3322
  %3359 = vmatprep.subr.mxu0 0.0
  %3360 = vmatpush1.msra.mxu0 %v3321
  %3361 = vmatprep.subr.mxu0 0.0
  %3362 = vmatpush1.msra.mxu0 %v3320
  %3363 = vmatprep.subr.mxu0 0.0
  %3364 = vmatpush1.msra.mxu0 %v3319
  %3365 = vmatprep.subr.mxu0 0.0
  %3366 = vmatpush1.msra.mxu0 %v3318
  %3367 = vmatprep.subr.mxu0 0.0
  %3368 = vmatpush1.msra.mxu0 %v3317
  %3369 = vmatprep.subr.mxu0 0.0
  %3370 = vmatpush1.msra.mxu0 %v3316
  %3371 = vmatprep.subr.mxu0 0.0
  %3372 = vmatpush2.msra.mxu0 0.0
  %3373 = vmatprep.subr.mxu0 0.0
  %3374 = vmatpush2.msra.mxu0 0.0
  %3375 = vmatprep.subr.mxu0 0.0
  %3376 = vmatpush2.msra.mxu0 0.0
  %3377 = vmatprep.subr.mxu0 0.0
  %3378 = vmatpush2.msra.mxu0 0.0
  %3379 = vmatprep.subr.mxu0 0.0
  %3380 = vmatpush2.msra.mxu0 0.0
  %3381 = vmatprep.subr.mxu0 0.0
  %3382 = vmatpush2.msra.mxu0 0.0
  %3383 = vmatprep.subr.mxu0 0.0
  %3384 = vmatpush2.msra.mxu0 0.0
  %3385 = vmatprep.subr.mxu0 0.0
  %3386 = vmatpush2.msra.mxu0 0.0
  %3387 = vmatprep.subr.mxu0 0.0
  %3388 = vmatpush2.msra.mxu0 0.0
  %3389 = vmatprep.subr.mxu0 0.0
  %3390 = vmatpush2.msra.mxu0 0.0
  %3391 = vmatprep.subr.mxu0 0.0
  %3392 = vmatpush2.msra.mxu0 0.0
  %3393 = vmatprep.subr.mxu0 0.0
  %3394 = vmatpush2.msra.mxu0 0.0
  %3395 = vmatprep.subr.mxu0 0.0
  %3396 = vmatpush2.msra.mxu0 0.0
  %3397 = vmatprep.subr.mxu0 0.0
  %3398 = vmatpush2.msra.mxu0 0.0
  %3399 = vmatprep.subr.mxu0 0.0
  %3400 = vmatpush2.msra.mxu0 0.0
  %3401 = vmatprep.subr.mxu0 0.0
  %3402 = vmatpush2.msra.mxu0 0.0
  %3403 = vmatprep.mubr.f32.mxu0 0.0
  %3404 = vmatmul.mubr.f32.gmra.mxu0 %v3252
  %v3405 = vpop.f32.mrf.mxu0
  %v3406 = vadd.f32 %v3337, %v3405
  %v3407 = vpop.f32.mrf.mxu0
  %3408 = vmatprep.mubr.f32.mxu0 0.0
  %3409 = vmatmul.mubr.f32.gmra.mxu0 %v3253
  %v3410 = vpop.f32.mrf.mxu0
  %v3411 = vadd.f32 %v3337, %v3410
  %v3412 = vpop.f32.mrf.mxu0
  %3413 = vmatprep.mubr.f32.mxu0 0.0
  %3414 = vmatmul.mubr.f32.gmra.mxu0 %v3254
  %v3415 = vpop.f32.mrf.mxu0
  %v3416 = vadd.f32 %v3337, %v3415
  %v3417 = vpop.f32.mrf.mxu0
  %3418 = vmatprep.mubr.f32.mxu0 0.0
  %3419 = vmatmul.mubr.f32.gmra.mxu0 %v3255
  %v3420 = vpop.f32.mrf.mxu0
  %v3421 = vadd.f32 %v3337, %v3420
  %v3422 = vpop.f32.mrf.mxu0
  %3423 = vmatprep.mubr.f32.mxu0 0.0
  %3424 = vmatmul.mubr.f32.gmra.mxu0 %v3256
  %v3425 = vpop.f32.mrf.mxu0
  %v3426 = vadd.f32 %v3337, %v3425
  %v3427 = vpop.f32.mrf.mxu0
  %3428 = vmatprep.mubr.f32.mxu0 0.0
  %3429 = vmatmul.mubr.f32.gmra.mxu0 %v3257
  %v3430 = vpop.f32.mrf.mxu0
  %v3431 = vadd.f32 %v3337, %v3430
  %v3432 = vpop.f32.mrf.mxu0
  %3433 = vmatprep.mubr.f32.mxu0 0.0
  %3434 = vmatmul.mubr.f32.gmra.mxu0 %v3258
  %v3435 = vpop.f32.mrf.mxu0
  %v3436 = vadd.f32 %v3337, %v3435
  %v3437 = vpop.f32.mrf.mxu0
  %3438 = vmatprep.mubr.f32.mxu0 0.0
  %3439 = vmatmul.mubr.f32.gmra.mxu0 %v3259
  %v3440 = vpop.f32.mrf.mxu0
  %v3441 = vadd.f32 %v3337, %v3440
  %v3442 = vpop.f32.mrf.mxu0
  %3443 = vmatprep.mubr.f32.mxu0 0.0
  %3444 = vmatmul.mubr.f32.gmra.mxu0 %v3260
  %v3445 = vpop.f32.mrf.mxu0
  %v3446 = vadd.f32 %v3337, %v3445
  %v3447 = vpop.f32.mrf.mxu0
  %3448 = vmatprep.mubr.f32.mxu0 0.0
  %3449 = vmatmul.mubr.f32.gmra.mxu0 %v3261
  %v3450 = vpop.f32.mrf.mxu0
  %v3451 = vadd.f32 %v3337, %v3450
  %v3452 = vpop.f32.mrf.mxu0
  %3453 = vmatprep.mubr.f32.mxu0 0.0
  %3454 = vmatmul.mubr.f32.gmra.mxu0 %v3262
  %v3455 = vpop.f32.mrf.mxu0
  %v3456 = vadd.f32 %v3337, %v3455
  %v3457 = vpop.f32.mrf.mxu0
  %3458 = vmatprep.mubr.f32.mxu0 0.0
  %3459 = vmatmul.mubr.f32.gmra.mxu0 %v3263
  %v3460 = vpop.f32.mrf.mxu0
  %v3461 = vadd.f32 %v3337, %v3460
  %v3462 = vpop.f32.mrf.mxu0
  %3463 = vmatprep.mubr.f32.mxu0 0.0
  %3464 = vmatmul.mubr.f32.gmra.mxu0 %v3264
  %v3465 = vpop.f32.mrf.mxu0
  %v3466 = vadd.f32 %v3337, %v3465
  %v3467 = vpop.f32.mrf.mxu0
  %3468 = vmatprep.mubr.f32.mxu0 0.0
  %3469 = vmatmul.mubr.f32.gmra.mxu0 %v3265
  %v3470 = vpop.f32.mrf.mxu0
  %v3471 = vadd.f32 %v3337, %v3470
  %v3472 = vpop.f32.mrf.mxu0
  %3473 = vmatprep.mubr.f32.mxu0 0.0
  %3474 = vmatmul.mubr.f32.gmra.mxu0 %v3266
  %v3475 = vpop.f32.mrf.mxu0
  %v3476 = vadd.f32 %v3337, %v3475
  %v3477 = vpop.f32.mrf.mxu0
  %3478 = vmatprep.mubr.f32.mxu0 0.0
  %3479 = vmatmul.mubr.f32.gmra.mxu0 %v3267
  %v3480 = vpop.f32.mrf.mxu0
  %v3481 = vadd.f32 %v3337, %v3480
  %v3482 = vpop.f32.mrf.mxu0
  %3483 = vmatprep.mubr.f32.mxu0 0.0
  %3484 = vmatmul.mubr.f32.gmra.mxu0 %v3268
  %v3485 = vpop.f32.mrf.mxu0
  %v3486 = vadd.f32 %v3337, %v3485
  %v3487 = vpop.f32.mrf.mxu0
  %3488 = vmatprep.mubr.f32.mxu0 0.0
  %3489 = vmatmul.mubr.f32.gmra.mxu0 %v3269
  %v3490 = vpop.f32.mrf.mxu0
  %v3491 = vadd.f32 %v3337, %v3490
  %v3492 = vpop.f32.mrf.mxu0
  %3493 = vmatprep.mubr.f32.mxu0 0.0
  %3494 = vmatmul.mubr.f32.gmra.mxu0 %v3270
  %v3495 = vpop.f32.mrf.mxu0
  %v3496 = vadd.f32 %v3337, %v3495
  %v3497 = vpop.f32.mrf.mxu0
  %3498 = vmatprep.mubr.f32.mxu0 0.0
  %3499 = vmatmul.mubr.f32.gmra.mxu0 %v3271
  %v3500 = vpop.f32.mrf.mxu0
  %v3501 = vadd.f32 %v3337, %v3500
  %v3502 = vpop.f32.mrf.mxu0
  %3503 = vmatprep.mubr.f32.mxu0 0.0
  %3504 = vmatmul.mubr.f32.gmra.mxu0 %v3272
  %v3505 = vpop.f32.mrf.mxu0
  %v3506 = vadd.f32 %v3337, %v3505
  %v3507 = vpop.f32.mrf.mxu0
  %3508 = vmatprep.mubr.f32.mxu0 0.0
  %3509 = vmatmul.mubr.f32.gmra.mxu0 %v3273
  %v3510 = vpop.f32.mrf.mxu0
  %v3511 = vadd.f32 %v3337, %v3510
  %v3512 = vpop.f32.mrf.mxu0
  %3513 = vmatprep.mubr.f32.mxu0 0.0
  %3514 = vmatmul.mubr.f32.gmra.mxu0 %v3274
  %v3515 = vpop.f32.mrf.mxu0
  %v3516 = vadd.f32 %v3337, %v3515
  %v3517 = vpop.f32.mrf.mxu0
  %3518 = vmatprep.mubr.f32.mxu0 0.0
  %3519 = vmatmul.mubr.f32.gmra.mxu0 %v3275
  %v3520 = vpop.f32.mrf.mxu0
  %v3521 = vadd.f32 %v3337, %v3520
  %v3522 = vpop.f32.mrf.mxu0
  %3523 = vmatprep.mubr.f32.mxu0 0.0
  %3524 = vmatmul.mubr.f32.gmra.mxu0 %v3276
  %v3525 = vpop.f32.mrf.mxu0
  %v3526 = vadd.f32 %v3337, %v3525
  %v3527 = vpop.f32.mrf.mxu0
  %3528 = vmatprep.mubr.f32.mxu0 0.0
  %3529 = vmatmul.mubr.f32.gmra.mxu0 %v3277
  %v3530 = vpop.f32.mrf.mxu0
  %v3531 = vadd.f32 %v3337, %v3530
  %v3532 = vpop.f32.mrf.mxu0
  %3533 = vmatprep.mubr.f32.mxu0 0.0
  %3534 = vmatmul.mubr.f32.gmra.mxu0 %v3278
  %v3535 = vpop.f32.mrf.mxu0
  %v3536 = vadd.f32 %v3337, %v3535
  %v3537 = vpop.f32.mrf.mxu0
  %3538 = vmatprep.mubr.f32.mxu0 0.0
  %3539 = vmatmul.mubr.f32.gmra.mxu0 %v3279
  %v3540 = vpop.f32.mrf.mxu0
  %v3541 = vadd.f32 %v3337, %v3540
  %v3542 = vpop.f32.mrf.mxu0
  %3543 = vmatprep.mubr.f32.mxu0 0.0
  %3544 = vmatmul.mubr.f32.gmra.mxu0 %v3280
  %v3545 = vpop.f32.mrf.mxu0
  %v3546 = vadd.f32 %v3337, %v3545
  %v3547 = vpop.f32.mrf.mxu0
  %3548 = vmatprep.mubr.f32.mxu0 0.0
  %3549 = vmatmul.mubr.f32.gmra.mxu0 %v3281
  %v3550 = vpop.f32.mrf.mxu0
  %v3551 = vadd.f32 %v3337, %v3550
  %v3552 = vpop.f32.mrf.mxu0
  %3553 = vmatprep.mubr.f32.mxu0 0.0
  %3554 = vmatmul.mubr.f32.gmra.mxu0 %v3282
  %v3555 = vpop.f32.mrf.mxu0
  %v3556 = vadd.f32 %v3337, %v3555
  %v3557 = vpop.f32.mrf.mxu0
  %3558 = vmatprep.mubr.f32.mxu0 0.0
  %3559 = vmatmul.mubr.f32.gmra.mxu0 %v3283
  %v3560 = vpop.f32.mrf.mxu0
  %v3561 = vadd.f32 %v3337, %v3560
  %v3562 = vpop.f32.mrf.mxu0
  %3563 = vmatprep.mubr.f32.mxu0 0.0
  %3564 = vmatmul.mubr.f32.gmra.mxu0 %v3284
  %v3565 = vpop.f32.mrf.mxu0
  %v3566 = vadd.f32 %v3337, %v3565
  %v3567 = vpop.f32.mrf.mxu0
  %3568 = vmatprep.mubr.f32.mxu0 0.0
  %3569 = vmatmul.mubr.f32.gmra.mxu0 %v3285
  %v3570 = vpop.f32.mrf.mxu0
  %v3571 = vadd.f32 %v3337, %v3570
  %v3572 = vpop.f32.mrf.mxu0
  %3573 = vmatprep.mubr.f32.mxu0 0.0
  %3574 = vmatmul.mubr.f32.gmra.mxu0 %v3286
  %v3575 = vpop.f32.mrf.mxu0
  %v3576 = vadd.f32 %v3337, %v3575
  %v3577 = vpop.f32.mrf.mxu0
  %3578 = vmatprep.mubr.f32.mxu0 0.0
  %3579 = vmatmul.mubr.f32.gmra.mxu0 %v3287
  %v3580 = vpop.f32.mrf.mxu0
  %v3581 = vadd.f32 %v3337, %v3580
  %v3582 = vpop.f32.mrf.mxu0
  %3583 = vmatprep.mubr.f32.mxu0 0.0
  %3584 = vmatmul.mubr.f32.gmra.mxu0 %v3288
  %v3585 = vpop.f32.mrf.mxu0
  %v3586 = vadd.f32 %v3337, %v3585
  %v3587 = vpop.f32.mrf.mxu0
  %3588 = vmatprep.mubr.f32.mxu0 0.0
  %3589 = vmatmul.mubr.f32.gmra.mxu0 %v3289
  %v3590 = vpop.f32.mrf.mxu0
  %v3591 = vadd.f32 %v3337, %v3590
  %v3592 = vpop.f32.mrf.mxu0
  %3593 = vmatprep.mubr.f32.mxu0 0.0
  %3594 = vmatmul.mubr.f32.gmra.mxu0 %v3290
  %v3595 = vpop.f32.mrf.mxu0
  %v3596 = vadd.f32 %v3337, %v3595
  %v3597 = vpop.f32.mrf.mxu0
  %3598 = vmatprep.mubr.f32.mxu0 0.0
  %3599 = vmatmul.mubr.f32.gmra.mxu0 %v3291
  %v3600 = vpop.f32.mrf.mxu0
  %v3601 = vadd.f32 %v3337, %v3600
  %v3602 = vpop.f32.mrf.mxu0
  %3603 = vmatprep.mubr.f32.mxu0 0.0
  %3604 = vmatmul.mubr.f32.gmra.mxu0 %v3292
  %v3605 = vpop.f32.mrf.mxu0
  %v3606 = vadd.f32 %v3337, %v3605
  %v3607 = vpop.f32.mrf.mxu0
  %3608 = vmatprep.mubr.f32.mxu0 0.0
  %3609 = vmatmul.mubr.f32.gmra.mxu0 %v3293
  %v3610 = vpop.f32.mrf.mxu0
  %v3611 = vadd.f32 %v3337, %v3610
  %v3612 = vpop.f32.mrf.mxu0
  %3613 = vmatprep.mubr.f32.mxu0 0.0
  %3614 = vmatmul.mubr.f32.gmra.mxu0 %v3294
  %v3615 = vpop.f32.mrf.mxu0
  %v3616 = vadd.f32 %v3337, %v3615
  %v3617 = vpop.f32.mrf.mxu0
  %3618 = vmatprep.mubr.f32.mxu0 0.0
  %3619 = vmatmul.mubr.f32.gmra.mxu0 %v3295
  %v3620 = vpop.f32.mrf.mxu0
  %v3621 = vadd.f32 %v3337, %v3620
  %v3622 = vpop.f32.mrf.mxu0
  %3623 = vmatprep.mubr.f32.mxu0 0.0
  %3624 = vmatmul.mubr.f32.gmra.mxu0 %v3296
  %v3625 = vpop.f32.mrf.mxu0
  %v3626 = vadd.f32 %v3337, %v3625
  %v3627 = vpop.f32.mrf.mxu0
  %3628 = vmatprep.mubr.f32.mxu0 0.0
  %3629 = vmatmul.mubr.f32.gmra.mxu0 %v3297
  %v3630 = vpop.f32.mrf.mxu0
  %v3631 = vadd.f32 %v3337, %v3630
  %v3632 = vpop.f32.mrf.mxu0
  %3633 = vmatprep.mubr.f32.mxu0 0.0
  %3634 = vmatmul.mubr.f32.gmra.mxu0 %v3298
  %v3635 = vpop.f32.mrf.mxu0
  %v3636 = vadd.f32 %v3337, %v3635
  %v3637 = vpop.f32.mrf.mxu0
  %3638 = vmatprep.mubr.f32.mxu0 0.0
  %3639 = vmatmul.mubr.f32.gmra.mxu0 %v3299
  %v3640 = vpop.f32.mrf.mxu0
  %v3641 = vadd.f32 %v3337, %v3640
  %v3642 = vpop.f32.mrf.mxu0
  %3643 = vmatprep.mubr.f32.mxu0 0.0
  %3644 = vmatmul.mubr.f32.gmra.mxu0 %v3300
  %v3645 = vpop.f32.mrf.mxu0
  %v3646 = vadd.f32 %v3337, %v3645
  %v3647 = vpop.f32.mrf.mxu0
  %3648 = vmatprep.mubr.f32.mxu0 0.0
  %3649 = vmatmul.mubr.f32.gmra.mxu0 %v3301
  %v3650 = vpop.f32.mrf.mxu0
  %v3651 = vadd.f32 %v3337, %v3650
  %v3652 = vpop.f32.mrf.mxu0
  %3653 = vmatprep.mubr.f32.mxu0 0.0
  %3654 = vmatmul.mubr.f32.gmra.mxu0 %v3302
  %v3655 = vpop.f32.mrf.mxu0
  %v3656 = vadd.f32 %v3337, %v3655
  %v3657 = vpop.f32.mrf.mxu0
  %3658 = vmatprep.mubr.f32.mxu0 0.0
  %3659 = vmatmul.mubr.f32.gmra.mxu0 %v3303
  %v3660 = vpop.f32.mrf.mxu0
  %v3661 = vadd.f32 %v3337, %v3660
  %v3662 = vpop.f32.mrf.mxu0
  %3663 = vmatprep.mubr.f32.mxu0 0.0
  %3664 = vmatmul.mubr.f32.gmra.mxu0 %v3304
  %v3665 = vpop.f32.mrf.mxu0
  %v3666 = vadd.f32 %v3337, %v3665
  %v3667 = vpop.f32.mrf.mxu0
  %3668 = vmatprep.mubr.f32.mxu0 0.0
  %3669 = vmatmul.mubr.f32.gmra.mxu0 %v3305
  %v3670 = vpop.f32.mrf.mxu0
  %v3671 = vadd.f32 %v3337, %v3670
  %v3672 = vpop.f32.mrf.mxu0
  %3673 = vmatprep.mubr.f32.mxu0 0.0
  %3674 = vmatmul.mubr.f32.gmra.mxu0 %v3306
  %v3675 = vpop.f32.mrf.mxu0
  %v3676 = vadd.f32 %v3337, %v3675
  %v3677 = vpop.f32.mrf.mxu0
  %3678 = vmatprep.mubr.f32.mxu0 0.0
  %3679 = vmatmul.mubr.f32.gmra.mxu0 %v3307
  %v3680 = vpop.f32.mrf.mxu0
  %v3681 = vadd.f32 %v3337, %v3680
  %v3682 = vpop.f32.mrf.mxu0
  %3683 = vmatprep.mubr.f32.mxu0 0.0
  %3684 = vmatmul.mubr.f32.gmra.mxu0 %v3308
  %v3685 = vpop.f32.mrf.mxu0
  %v3686 = vadd.f32 %v3337, %v3685
  %v3687 = vpop.f32.mrf.mxu0
  %3688 = vmatprep.mubr.f32.mxu0 0.0
  %3689 = vmatmul.mubr.f32.gmra.mxu0 %v3309
  %v3690 = vpop.f32.mrf.mxu0
  %v3691 = vadd.f32 %v3337, %v3690
  %v3692 = vpop.f32.mrf.mxu0
  %3693 = vmatprep.mubr.f32.mxu0 0.0
  %3694 = vmatmul.mubr.f32.gmra.mxu0 %v3310
  %v3695 = vpop.f32.mrf.mxu0
  %v3696 = vadd.f32 %v3337, %v3695
  %v3697 = vpop.f32.mrf.mxu0
  %3698 = vmatprep.mubr.f32.mxu0 0.0
  %3699 = vmatmul.mubr.f32.gmra.mxu0 %v3311
  %v3700 = vpop.f32.mrf.mxu0
  %v3701 = vadd.f32 %v3337, %v3700
  %v3702 = vpop.f32.mrf.mxu0
  %3703 = vmatprep.mubr.f32.mxu0 0.0
  %3704 = vmatmul.mubr.f32.gmra.mxu0 %v3312
  %v3705 = vpop.f32.mrf.mxu0
  %v3706 = vadd.f32 %v3337, %v3705
  %v3707 = vpop.f32.mrf.mxu0
  %3708 = vmatprep.mubr.f32.mxu0 0.0
  %3709 = vmatmul.mubr.f32.gmra.mxu0 %v3313
  %v3710 = vpop.f32.mrf.mxu0
  %v3711 = vadd.f32 %v3337, %v3710
  %v3712 = vpop.f32.mrf.mxu0
  %3713 = vmatprep.mubr.f32.mxu0 0.0
  %3714 = vmatmul.mubr.f32.gmra.mxu0 %v3314
  %v3715 = vpop.f32.mrf.mxu0
  %v3716 = vadd.f32 %v3337, %v3715
  %v3717 = vpop.f32.mrf.mxu0
  %3718 = vmatprep.mubr.f32.mxu0 0.0
  %3719 = vmatmul.mubr.f32.gmra.mxu0 %v3315
  %v3720 = vpop.f32.mrf.mxu0
  %v3721 = vadd.f32 %v3337, %v3720
  %v3722 = vpop.f32.mrf.mxu0
  %3723 = vdwg.mxu0
  %s3724 = sld [smem:[#allocation2]]
  %v3725 = vstv %s3724
  %v3726 = vmul.f32 %v3725, %v3406
  %v3727 = vmul.f32 %v3725, %v3411
  %v3728 = vmul.f32 %v3725, %v3416
  %v3729 = vmul.f32 %v3725, %v3421
  %v3730 = vmul.f32 %v3725, %v3426
  %v3731 = vmul.f32 %v3725, %v3431
  %v3732 = vmul.f32 %v3725, %v3436
  %v3733 = vmul.f32 %v3725, %v3441
  %v3734 = vmul.f32 %v3725, %v3446
  %v3735 = vmul.f32 %v3725, %v3451
  %v3736 = vmul.f32 %v3725, %v3456
  %v3737 = vmul.f32 %v3725, %v3461
  %v3738 = vmul.f32 %v3725, %v3466
  %v3739 = vmul.f32 %v3725, %v3471
  %v3740 = vmul.f32 %v3725, %v3476
  %v3741 = vmul.f32 %v3725, %v3481
  %v3742 = vmul.f32 %v3725, %v3486
  %v3743 = vmul.f32 %v3725, %v3491
  %v3744 = vmul.f32 %v3725, %v3496
  %v3745 = vmul.f32 %v3725, %v3501
  %v3746 = vmul.f32 %v3725, %v3506
  %v3747 = vmul.f32 %v3725, %v3511
  %v3748 = vmul.f32 %v3725, %v3516
  %v3749 = vmul.f32 %v3725, %v3521
  %v3750 = vmul.f32 %v3725, %v3526
  %v3751 = vmul.f32 %v3725, %v3531
  %v3752 = vmul.f32 %v3725, %v3536
  %v3753 = vmul.f32 %v3725, %v3541
  %v3754 = vmul.f32 %v3725, %v3546
  %v3755 = vmul.f32 %v3725, %v3551
  %v3756 = vmul.f32 %v3725, %v3556
  %v3757 = vmul.f32 %v3725, %v3561
  %v3758 = vmul.f32 %v3725, %v3566
  %v3759 = vmul.f32 %v3725, %v3571
  %v3760 = vmul.f32 %v3725, %v3576
  %v3761 = vmul.f32 %v3725, %v3581
  %v3762 = vmul.f32 %v3725, %v3586
  %v3763 = vmul.f32 %v3725, %v3591
  %v3764 = vmul.f32 %v3725, %v3596
  %v3765 = vmul.f32 %v3725, %v3601
  %v3766 = vmul.f32 %v3725, %v3606
  %v3767 = vmul.f32 %v3725, %v3611
  %v3768 = vmul.f32 %v3725, %v3616
  %v3769 = vmul.f32 %v3725, %v3621
  %v3770 = vmul.f32 %v3725, %v3626
  %v3771 = vmul.f32 %v3725, %v3631
  %v3772 = vmul.f32 %v3725, %v3636
  %v3773 = vmul.f32 %v3725, %v3641
  %v3774 = vmul.f32 %v3725, %v3646
  %v3775 = vmul.f32 %v3725, %v3651
  %v3776 = vmul.f32 %v3725, %v3656
  %v3777 = vmul.f32 %v3725, %v3661
  %v3778 = vmul.f32 %v3725, %v3666
  %v3779 = vmul.f32 %v3725, %v3671
  %v3780 = vmul.f32 %v3725, %v3676
  %v3781 = vmul.f32 %v3725, %v3681
  %v3782 = vmul.f32 %v3725, %v3686
  %v3783 = vmul.f32 %v3725, %v3691
  %v3784 = vmul.f32 %v3725, %v3696
  %v3785 = vmul.f32 %v3725, %v3701
  %v3786 = vmul.f32 %v3725, %v3706
  %v3787 = vmul.f32 %v3725, %v3711
  %v3788 = vmul.f32 %v3725, %v3716
  %v3789 = vmul.f32 %v3725, %v3721
  %v3790 = vadd.f32 %v24, %v3726
  %v3791 = vadd.f32 %v25, %v3727
  %v3792 = vadd.f32 %v26, %v3728
  %v3793 = vadd.f32 %v27, %v3729
  %v3794 = vadd.f32 %v28, %v3730
  %v3795 = vadd.f32 %v29, %v3731
  %v3796 = vadd.f32 %v30, %v3732
  %v3797 = vadd.f32 %v31, %v3733
  %v3798 = vadd.f32 %v32, %v3734
  %v3799 = vadd.f32 %v33, %v3735
  %v3800 = vadd.f32 %v34, %v3736
  %v3801 = vadd.f32 %v35, %v3737
  %v3802 = vadd.f32 %v36, %v3738
  %v3803 = vadd.f32 %v37, %v3739
  %v3804 = vadd.f32 %v38, %v3740
  %v3805 = vadd.f32 %v39, %v3741
  %v3806 = vadd.f32 %v40, %v3742
  %v3807 = vadd.f32 %v41, %v3743
  %v3808 = vadd.f32 %v42, %v3744
  %v3809 = vadd.f32 %v43, %v3745
  %v3810 = vadd.f32 %v44, %v3746
  %v3811 = vadd.f32 %v45, %v3747
  %v3812 = vadd.f32 %v46, %v3748
  %v3813 = vadd.f32 %v47, %v3749
  %v3814 = vadd.f32 %v48, %v3750
  %v3815 = vadd.f32 %v49, %v3751
  %v3816 = vadd.f32 %v50, %v3752
  %v3817 = vadd.f32 %v51, %v3753
  %v3818 = vadd.f32 %v52, %v3754
  %v3819 = vadd.f32 %v53, %v3755
  %v3820 = vadd.f32 %v54, %v3756
  %v3821 = vadd.f32 %v55, %v3757
  %v3822 = vadd.f32 %v56, %v3758
  %v3823 = vadd.f32 %v57, %v3759
  %v3824 = vadd.f32 %v58, %v3760
  %v3825 = vadd.f32 %v59, %v3761
  %v3826 = vadd.f32 %v60, %v3762
  %v3827 = vadd.f32 %v61, %v3763
  %v3828 = vadd.f32 %v62, %v3764
  %v3829 = vadd.f32 %v63, %v3765
  %v3830 = vadd.f32 %v64, %v3766
  %v3831 = vadd.f32 %v65, %v3767
  %v3832 = vadd.f32 %v66, %v3768
  %v3833 = vadd.f32 %v67, %v3769
  %v3834 = vadd.f32 %v68, %v3770
  %v3835 = vadd.f32 %v69, %v3771
  %v3836 = vadd.f32 %v70, %v3772
  %v3837 = vadd.f32 %v71, %v3773
  %v3838 = vadd.f32 %v72, %v3774
  %v3839 = vadd.f32 %v73, %v3775
  %v3840 = vadd.f32 %v74, %v3776
  %v3841 = vadd.f32 %v75, %v3777
  %v3842 = vadd.f32 %v76, %v3778
  %v3843 = vadd.f32 %v77, %v3779
  %v3844 = vadd.f32 %v78, %v3780
  %v3845 = vadd.f32 %v79, %v3781
  %v3846 = vadd.f32 %v80, %v3782
  %v3847 = vadd.f32 %v81, %v3783
  %v3848 = vadd.f32 %v82, %v3784
  %v3849 = vadd.f32 %v83, %v3785
  %v3850 = vadd.f32 %v84, %v3786
  %v3851 = vadd.f32 %v85, %v3787
  %v3852 = vadd.f32 %v86, %v3788
  %v3853 = vadd.f32 %v87, %v3789
  %3854 = vst.msk [vmem:[%s6] sm:$0xff] %vm117, %v3790
  %3855 = vst.msk [vmem:[%s6 + $0x8] sm:$0xff] %vm117, %v3791
  %3856 = vst.msk [vmem:[%s6 + $0x10] sm:$0xff] %vm117, %v3792
  %3857 = vst.msk [vmem:[%s6 + $0x18] sm:$0xff] %vm117, %v3793
  %3858 = vst.msk [vmem:[%s6 + $0x20] sm:$0xff] %vm117, %v3794
  %3859 = vst.msk [vmem:[%s6 + $0x28] sm:$0xff] %vm117, %v3795
  %3860 = vst.msk [vmem:[%s6 + $0x30] sm:$0xff] %vm117, %v3796
  %3861 = vst.msk [vmem:[%s6 + $0x38] sm:$0xff] %vm117, %v3797
  %3862 = vst.msk [vmem:[%s6 + $0x40] sm:$0xff] %vm117, %v3798
  %3863 = vst.msk [vmem:[%s6 + $0x48] sm:$0xff] %vm117, %v3799
  %3864 = vst.msk [vmem:[%s6 + $0x50] sm:$0xff] %vm117, %v3800
  %3865 = vst.msk [vmem:[%s6 + $0x58] sm:$0xff] %vm117, %v3801
  %3866 = vst.msk [vmem:[%s6 + $0x60] sm:$0xff] %vm117, %v3802
  %3867 = vst.msk [vmem:[%s6 + $0x68] sm:$0xff] %vm117, %v3803
  %3868 = vst.msk [vmem:[%s6 + $0x70] sm:$0xff] %vm117, %v3804
  %3869 = vst.msk [vmem:[%s6 + $0x78] sm:$0xff] %vm117, %v3805
  %3870 = vst.msk [vmem:[%s6 + $0x80] sm:$0xff] %vm117, %v3806
  %3871 = vst.msk [vmem:[%s6 + $0x88] sm:$0xff] %vm117, %v3807
  %3872 = vst.msk [vmem:[%s6 + $0x90] sm:$0xff] %vm117, %v3808
  %3873 = vst.msk [vmem:[%s6 + $0x98] sm:$0xff] %vm117, %v3809
  %3874 = vst.msk [vmem:[%s6 + $0xa0] sm:$0xff] %vm117, %v3810
  %3875 = vst.msk [vmem:[%s6 + $0xa8] sm:$0xff] %vm117, %v3811
  %3876 = vst.msk [vmem:[%s6 + $0xb0] sm:$0xff] %vm117, %v3812
  %3877 = vst.msk [vmem:[%s6 + $0xb8] sm:$0xff] %vm117, %v3813
  %3878 = vst.msk [vmem:[%s6 + $0xc0] sm:$0xff] %vm117, %v3814
  %3879 = vst.msk [vmem:[%s6 + $0xc8] sm:$0xff] %vm117, %v3815
  %3880 = vst.msk [vmem:[%s6 + $0xd0] sm:$0xff] %vm117, %v3816
  %3881 = vst.msk [vmem:[%s6 + $0xd8] sm:$0xff] %vm117, %v3817
  %3882 = vst.msk [vmem:[%s6 + $0xe0] sm:$0xff] %vm117, %v3818
  %3883 = vst.msk [vmem:[%s6 + $0xe8] sm:$0xff] %vm117, %v3819
  %3884 = vst.msk [vmem:[%s6 + $0xf0] sm:$0xff] %vm117, %v3820
  %3885 = vst.msk [vmem:[%s6 + $0xf8] sm:$0xff] %vm117, %v3821
  %3886 = vst.msk [vmem:[%s6 + $0x100] sm:$0xff] %vm117, %v3822
  %3887 = vst.msk [vmem:[%s6 + $0x108] sm:$0xff] %vm117, %v3823
  %3888 = vst.msk [vmem:[%s6 + $0x110] sm:$0xff] %vm117, %v3824
  %3889 = vst.msk [vmem:[%s6 + $0x118] sm:$0xff] %vm117, %v3825
  %3890 = vst.msk [vmem:[%s6 + $0x120] sm:$0xff] %vm117, %v3826
  %3891 = vst.msk [vmem:[%s6 + $0x128] sm:$0xff] %vm117, %v3827
  %3892 = vst.msk [vmem:[%s6 + $0x130] sm:$0xff] %vm117, %v3828
  %3893 = vst.msk [vmem:[%s6 + $0x138] sm:$0xff] %vm117, %v3829
  %3894 = vst.msk [vmem:[%s6 + $0x140] sm:$0xff] %vm117, %v3830
  %3895 = vst.msk [vmem:[%s6 + $0x148] sm:$0xff] %vm117, %v3831
  %3896 = vst.msk [vmem:[%s6 + $0x150] sm:$0xff] %vm117, %v3832
  %3897 = vst.msk [vmem:[%s6 + $0x158] sm:$0xff] %vm117, %v3833
  %3898 = vst.msk [vmem:[%s6 + $0x160] sm:$0xff] %vm117, %v3834
  %3899 = vst.msk [vmem:[%s6 + $0x168] sm:$0xff] %vm117, %v3835
  %3900 = vst.msk [vmem:[%s6 + $0x170] sm:$0xff] %vm117, %v3836
  %3901 = vst.msk [vmem:[%s6 + $0x178] sm:$0xff] %vm117, %v3837
  %3902 = vst.msk [vmem:[%s6 + $0x180] sm:$0xff] %vm117, %v3838
  %3903 = vst.msk [vmem:[%s6 + $0x188] sm:$0xff] %vm117, %v3839
  %3904 = vst.msk [vmem:[%s6 + $0x190] sm:$0xff] %vm117, %v3840
  %3905 = vst.msk [vmem:[%s6 + $0x198] sm:$0xff] %vm117, %v3841
  %3906 = vst.msk [vmem:[%s6 + $0x1a0] sm:$0xff] %vm117, %v3842
  %3907 = vst.msk [vmem:[%s6 + $0x1a8] sm:$0xff] %vm117, %v3843
  %3908 = vst.msk [vmem:[%s6 + $0x1b0] sm:$0xff] %vm117, %v3844
  %3909 = vst.msk [vmem:[%s6 + $0x1b8] sm:$0xff] %vm117, %v3845
  %3910 = vst.msk [vmem:[%s6 + $0x1c0] sm:$0xff] %vm117, %v3846
  %3911 = vst.msk [vmem:[%s6 + $0x1c8] sm:$0xff] %vm117, %v3847
  %3912 = vst.msk [vmem:[%s6 + $0x1d0] sm:$0xff] %vm117, %v3848
  %3913 = vst.msk [vmem:[%s6 + $0x1d8] sm:$0xff] %vm117, %v3849
  %3914 = vst.msk [vmem:[%s6 + $0x1e0] sm:$0xff] %vm117, %v3850
  %3915 = vst.msk [vmem:[%s6 + $0x1e8] sm:$0xff] %vm117, %v3851
  %3916 = vst.msk [vmem:[%s6 + $0x1f0] sm:$0xff] %vm117, %v3852
  %3917 = vst.msk [vmem:[%s6 + $0x1f8] sm:$0xff] %vm117, %v3853
  // Predicated region
  $region26: #{tpu_custom_call.1} parent=0 // pred_check
    _
  $region27: #{tpu_custom_call.1} parent=0 // pred_check_branch
    %3919 = sbr.rel (0) target = $region29
  $region28: #{tpu_custom_call.1} parent=0 // pred_region
    _
  $region29: #{tpu_custom_call.1} parent=0 // pred_fallthru
    _
  // Predicated region
  $region30: #{tpu_custom_call.1} parent=0 // pred_check
    _
  $region31: #{tpu_custom_call.1} parent=0 // pred_check_branch
    %3921 = sbr.rel (0) target = $region33
  $region32: #{tpu_custom_call.1} parent=0 // pred_region
    _
  $region33: #{tpu_custom_call.1} parent=0 // pred_fallthru
    _

</llo_original>
